<compile_context>
chip_gen: v5e
topology: v5e:2x2
jax: 0.10.0
libtpu: 0.0.40
codegen_flags: <defaults>
</compile_context>

<pallas_src>
import functools

import jax
import jax.numpy as jnp
from jax import lax
from jax.experimental import pallas as pl
from jax.experimental.pallas import tpu as pltpu

_EPS = 1e-5
_LANE = 128


def _round_up(x, m):
    return (x + m - 1) // m * m


def _silu(v):
    # SiLU(x) = x * sigmoid(x).  exp() and the reciprocal estimate issue on
    # the (otherwise idle) EUP; one Newton step restores ~f32 accuracy.
    d = 1.0 + jnp.exp(jnp.minimum(-v, 60.0))
    r = pl.reciprocal(d, approx=True)
    r = r * (2.0 - d * r)
    return v * r


def _double_blaze_kernel(
        x_ref, wdw_ref, bdw_ref, wpw1_ref, bpw1_ref, w5_ref, wz_ref, bz_ref,
        o_ref,
        xpad_ref, ypad_ref, *pool_scratch,
        stride, use_pool, nb, h, w, ho, wo, rb_a, rb_b,
        cin_real, cin, cmid, cout):
    f32 = jnp.float32
    dt = wpw1_ref.dtype                       # MXU operand dtype (bf16 / f32)
    if use_pool:
        xrow_ref, pool_ref = pool_scratch

    # ---- stage x into the zero-padded scratch -------------------------------
    # The 2-wide halo and the lane padding [cin_real:cin] are re-zeroed every
    # step: scratch is core-private under a "parallel" grid axis, so a
    # program_id()==0 "zero once" guard is not portable to megacore.
    xpad_ref[:, 0:2, :, :] = jnp.zeros((nb, 2, w + 4, cin), f32)
    xpad_ref[:, h + 2:h + 4, :, :] = jnp.zeros((nb, 2, w + 4, cin), f32)
    xpad_ref[:, 2:2 + h, 0:2, :] = jnp.zeros((nb, h, 2, cin), f32)
    xpad_ref[:, 2:2 + h, w + 2:w + 4, :] = jnp.zeros((nb, h, 2, cin), f32)
    xpad_ref[:, 2:2 + h, 2:2 + w, 0:cin_real] = x_ref[...]
    if cin_real < cin:
        xpad_ref[:, 2:2 + h, 2:2 + w, cin_real:] = (
            jnp.zeros((nb, h, w, cin - cin_real), f32))

    # ypad halo (interior is fully rewritten every step below)
    ydt = ypad_ref.dtype
    ypad_ref[:, 0:2, :, :] = jnp.zeros((nb, 2, wo + 4, cmid), ydt)
    ypad_ref[:, ho + 2:ho + 4, :, :] = jnp.zeros((nb, 2, wo + 4, cmid), ydt)
    ypad_ref[:, 2:2 + ho, 0:2, :] = jnp.zeros((nb, ho, 2, cmid), ydt)
    ypad_ref[:, 2:2 + ho, wo + 2:wo + 4, :] = jnp.zeros((nb, ho, 2, cmid), ydt)

    wdw_v = wdw_ref[...]                      # (25, cin): loaded once, indexed

    # ---------- pass A: depthwise 5x5 + BN1 -> 1x1 + BN2 -> SiLU -------------
    for r0 in range(0, ho, rb_a):
        rbl = min(rb_a, ho - r0)
        mb = nb * rbl * wo
        acc = jnp.zeros((nb, rbl, wo, cin), f32)
        pool = None
        for dh in range(5):
            if stride == 2:
                # single-strided H gather staged once per (band, dh);
                # taps below then only need a strided W window.
                xrow_ref[:, 0:rbl, :, :] = (
                    xpad_ref[:, pl.ds(2 * r0 + dh, rbl, 2), :, :])
            for dw in range(5):
                if stride == 1:
                    tap = xpad_ref[:, r0 + dh:r0 + dh + rbl, dw:dw + wo, :]
                else:
                    tap = xrow_ref[:, 0:rbl, pl.ds(dw, wo, 2), :]
                acc = acc + tap * wdw_v[dh * 5 + dw]
                if use_pool and dh in (2, 3) and dw in (2, 3):
                    # these four taps are exactly the 2x2 MaxPool window
                    pool = tap if pool is None else jnp.maximum(pool, tap)
        acc2d = acc.reshape(mb, cin) + bdw_ref[...]
        y = _silu(jnp.dot(acc2d.astype(dt), wpw1_ref[...],
                          preferred_element_type=f32) + bpw1_ref[...])
        ypad_ref[:, 2 + r0:2 + r0 + rbl, 2:2 + wo, :] = (
            y.reshape(nb, rbl, wo, cmid).astype(ydt))
        if use_pool:
            pool_ref[:, r0:r0 + rbl, :, :] = pool.astype(pool_ref.dtype)

    # ---------- pass B: dense 5x5 + BN3 -> fused (1x1+BN4 [+shortcut]) -------
    for r0 in range(0, ho, rb_b):
        rbl = min(rb_b, ho - r0)
        mb = nb * rbl * wo
        acc2 = jnp.zeros((mb, cmid), f32)
        for dh in range(5):
            for dw in range(5):
                tap = ypad_ref[:, r0 + dh:r0 + dh + rbl, dw:dw + wo, :]
                acc2 = acc2 + jnp.dot(tap.reshape(mb, cmid),
                                      w5_ref[dh * 5 + dw],
                                      preferred_element_type=f32)
        if use_pool:
            # K = cp_mid + cp_in fused matmul: [acc2 | pool] @ [wpw2 ; wsc]
            opnd = jnp.concatenate(
                [acc2.astype(dt),
                 pool_ref[:, r0:r0 + rbl, :, :].reshape(mb, cin)], axis=-1)
        else:
            opnd = acc2.astype(dt)
        z = jnp.dot(opnd, wz_ref[...], preferred_element_type=f32) + bz_ref[...]
        if not use_pool:
            # identity shortcut (cin == cout)
            z = z + xpad_ref[:, 2 + r0:2 + r0 + rbl, 2:2 + w, :].reshape(mb, cin)
        o_ref[:, r0 * wo:(r0 + rbl) * wo, :] = (
            _silu(z).reshape(nb, rbl * wo, cout))


# ----------------------------- wrapper / glue -----------------------------
def _fold_bn(w, b, bn):
    """Fold inference-mode BatchNorm into a conv whose OUT channel is the
    last weight axis.  Exact in real arithmetic."""
    gamma, beta, mean, var = bn
    scale = gamma / jnp.sqrt(var + _EPS)
    return w * scale, (b - mean) * scale + beta


def _pad_last(a, c):
    pads = [(0, 0)] * (a.ndim - 1) + [(0, c - a.shape[-1])]
    return jnp.pad(a, pads)


def _pad2(a, r, c):
    return jnp.pad(a, ((0, r - a.shape[0]), (0, c - a.shape[1])))


def double_blaze_block(x_nchw, params, *, stride, matmul_dtype=jnp.bfloat16):
    """Forward pass of DoubleBlazeBlock.  x_nchw: (N, Cin, H, W) float32."""
    assert stride in (1, 2)
    N, Cin, H, W = x_nchw.shape
    assert H % stride == 0 and W % stride == 0
    use_pool = stride > 1
    Cmid = params['wpw1'].shape[1]
    Cout = params['wpw2'].shape[1]
    if not use_pool:
        assert Cin == Cout, "stride=1 requires in_channels == out_channels"
    Ho, Wo = H // stride, W // stride

    # Kernel-internal channel axes are lane-dense (multiples of 128); the x
    # input stays at its real Cin in HBM (no 32x read inflation).
    cp_in, cp_mid, cp_out = (_round_up(c, _LANE) for c in (Cin, Cmid, Cout))

    # Batch sub-block: amortize per-step overhead but keep >= ~4 grid steps
    # when the batch allows (pipelining + v7x second TensorCore).
    nb = max(1, 512 // (Ho * Wo))
    nb = min(nb, max(1, N // 4), N)
    n_pad = _round_up(N, nb)

    # Row-band sizes: live accumulators stay <= ~16 f32 vregs (no spills).
    rb_a = min(Ho, max(1, (64 if use_pool else 128) // (nb * Wo)))
    rb_b = min(Ho, max(1, 128 // (nb * Wo)))

    x = jnp.transpose(x_nchw, (0, 2, 3, 1)).astype(jnp.float32)   # NHWC, real Cin
    if n_pad != N:
        x = jnp.pad(x, ((0, n_pad - N), (0, 0), (0, 0), (0, 0)))

    # ---- fold inference BatchNorms into the convs, pad/stack/cast weights ----
    wdw, bdw = _fold_bn(params['wdw'], params['bdw'], params['bn1'])
    wpw1, bpw1 = _fold_bn(params['wpw1'], params['bpw1'], params['bn2'])
    w5, b5 = _fold_bn(params['w5'], params['b5'], params['bn3'])
    wpw2, bpw2 = _fold_bn(params['wpw2'], params['bpw2'], params['bn4'])

    wdw = _pad_last(wdw.reshape(25, Cin), cp_in)                   # (25,cp_in) f32
    bdw = _pad_last(bdw, cp_in).reshape(1, cp_in)
    wpw1 = _pad2(wpw1, cp_in, cp_mid).astype(matmul_dtype)
    bpw1 = _pad_last(bpw1, cp_mid).reshape(1, cp_mid)
    w5p = jnp.pad(w5, ((0, 0), (0, 0), (0, cp_mid - Cmid), (0, cp_mid - Cmid)))
    w5p = w5p.reshape(25, cp_mid, cp_mid).astype(matmul_dtype)
    wpw2p = _pad2(wpw2, cp_mid, cp_out)
    # Distribute b5 through the final 1x1 (exact in real arithmetic) and fuse
    # the shortcut 1x1 into the same matmul: z = [acc2 | pool] @ [wpw2; wsc] + bz
    bz = _pad_last(b5, cp_mid) @ wpw2p + _pad_last(bpw2, cp_out)
    if use_pool:
        wsc, bsc = _fold_bn(params['wsc'], params['bsc'], params['bn5'])
        wz = jnp.concatenate([wpw2p, _pad2(wsc, cp_in, cp_out)], axis=0)
        bz = bz + _pad_last(bsc, cp_out)
    else:
        wz = wpw2p
    wz = wz.astype(matmul_dtype)
    bz = bz.reshape(1, cp_out)                                     # f32

    kernel = functools.partial(
        _double_blaze_kernel, stride=stride, use_pool=use_pool, nb=nb,
        h=H, w=W, ho=Ho, wo=Wo, rb_a=rb_a, rb_b=rb_b,
        cin_real=Cin, cin=cp_in, cmid=cp_mid, cout=cp_out)

    def _full_spec(arr):
        zeros = (0,) * arr.ndim
        return pl.BlockSpec(arr.shape, lambda n, z=zeros: z)

    scratch = [
        pltpu.VMEM((nb, H + 4, W + 4, cp_in), jnp.float32),        # padded input
        pltpu.VMEM((nb, Ho + 4, Wo + 4, cp_mid), matmul_dtype),    # padded mid act
    ]
    if use_pool:
        scratch += [
            pltpu.VMEM((nb, rb_a, W + 4, cp_in), jnp.float32),     # strided-row stage
            pltpu.VMEM((nb, Ho, Wo, cp_in), matmul_dtype),         # 2x2 maxpool(x)
        ]

    grid_spec = pltpu.PrefetchScalarGridSpec(
        num_scalar_prefetch=0,
        grid=(n_pad // nb,),
        in_specs=[
            pl.BlockSpec((nb, H, W, Cin), lambda n: (n, 0, 0, 0)),  # x at real Cin
            _full_spec(wdw), _full_spec(bdw),
            _full_spec(wpw1), _full_spec(bpw1),
            _full_spec(w5p),
            _full_spec(wz), _full_spec(bz),
        ],
        out_specs=pl.BlockSpec((nb, Ho * Wo, cp_out), lambda n: (n, 0, 0)),
        scratch_shapes=scratch,
    )

    # Generation-aware VMEM budget (~3/4 of physical, capped at 100 MiB):
    # v7x: 64 MiB -> 48 MiB; v5e/v6e: 128 MiB -> 96 MiB.
    try:
        vmem_cap = int(pltpu.get_tpu_info().vmem_capacity_bytes)
    except Exception:
        vmem_cap = 64 * 1024 * 1024
    vmem_limit = max(32 * 1024 * 1024,
                     min(vmem_cap * 3 // 4, 100 * 1024 * 1024))

    out_p = pl.pallas_call(
        kernel,
        out_shape=jax.ShapeDtypeStruct((n_pad, Ho * Wo, cp_out), jnp.float32),
        grid_spec=grid_spec,
        compiler_params=pltpu.CompilerParams(
            dimension_semantics=("parallel",),
            vmem_limit_bytes=int(vmem_limit)),
    )(x, wdw, bdw, wpw1, bpw1, w5p, wz, bz)

    out = out_p[:N, :, :Cout].reshape(N, Ho, Wo, Cout)
    return jnp.transpose(out, (0, 3, 1, 2))                        # back to NCHW


# ------------------------- parameters (synthetic) -------------------------
def make_params(key, Cin, Cmid, Cout, use_pool):
    ks = jax.random.split(key, 16)

    def w(k, shape, scale=0.2):
        return jax.random.normal(k, shape, jnp.float32) * scale

    def bnp(k, C):
        k1, k2, k3, k4 = jax.random.split(k, 4)
        gamma = 1.0 + 0.1 * jax.random.normal(k1, (C,), jnp.float32)
        beta = 0.1 * jax.random.normal(k2, (C,), jnp.float32)
        mean = 0.1 * jax.random.normal(k3, (C,), jnp.float32)
        var = jnp.abs(jax.random.normal(k4, (C,), jnp.float32)) * 0.5 + 0.5
        return (gamma, beta, mean, var)

    params = dict(
        wdw=w(ks[0], (5, 5, 1, Cin)), bdw=w(ks[1], (Cin,)), bn1=bnp(ks[2], Cin),
        wpw1=w(ks[3], (Cin, Cmid)), bpw1=w(ks[4], (Cmid,)), bn2=bnp(ks[5], Cmid),
        w5=w(ks[6], (5, 5, Cmid, Cmid)), b5=w(ks[7], (Cmid,)), bn3=bnp(ks[8], Cmid),
        wpw2=w(ks[9], (Cmid, Cout)), bpw2=w(ks[10], (Cout,)), bn4=bnp(ks[11], Cout),
    )
    if use_pool:
        params.update(wsc=w(ks[12], (Cin, Cout)), bsc=w(ks[13], (Cout,)),
                      bn5=bnp(ks[14], Cout))
    return params


# ------------------------- pure-JAX reference (NCHW) -------------------------
def _reference(x, params, *, stride):
    def bn(y, p):
        gamma, beta, mean, var = p
        inv = (1.0 / jnp.sqrt(var + _EPS))[None, :, None, None]
        return (y - mean[None, :, None, None]) * inv * gamma[None, :, None, None] \
            + beta[None, :, None, None]

    def conv(y, w_oihw, b, s=1, pad=0, groups=1):
        out = lax.conv_general_dilated(
            y, w_oihw, (s, s), ((pad, pad), (pad, pad)),
            feature_group_count=groups,
            dimension_numbers=('NCHW', 'OIHW', 'NCHW'))
        return out + b[None, :, None, None]

    Cin = x.shape[1]
    wdw = jnp.transpose(params['wdw'], (3, 2, 0, 1))             # (Cin,1,5,5)
    y = bn(conv(x, wdw, params['bdw'], s=stride, pad=2, groups=Cin), params['bn1'])
    wpw1 = jnp.transpose(params['wpw1'], (1, 0))[:, :, None, None]
    y = bn(conv(y, wpw1, params['bpw1']), params['bn2'])
    y = y * jax.nn.sigmoid(y)
    w5 = jnp.transpose(params['w5'], (3, 2, 0, 1))
    y = bn(conv(y, w5, params['b5'], pad=2), params['bn3'])
    wpw2 = jnp.transpose(params['wpw2'], (1, 0))[:, :, None, None]
    y = bn(conv(y, wpw2, params['bpw2']), params['bn4'])
    if stride > 1:
        sc = lax.reduce_window(x, -jnp.inf, lax.max, (1, 1, stride, stride),
                               (1, 1, stride, stride), 'VALID')
        wsc = jnp.transpose(params['wsc'], (1, 0))[:, :, None, None]
        sc = bn(conv(sc, wsc, params['bsc']), params['bn5'])
    else:
        sc = x
    out = y + sc
    return out * jax.nn.sigmoid(out)


if __name__ == "__main__":
    key = jax.random.PRNGKey(0)
    kx, kp1, kp2 = jax.random.split(key, 3)

    N, Cin, H, W = 2, 4, 16, 16
    x = jax.random.normal(kx, (N, Cin, H, W), jnp.float32)

    # --- Case 1: stride=2 -> MaxPool + 1x1-conv + BN shortcut (f32 MXU path) ---
    Cmid, Cout = 8, 8
    p2 = make_params(kp1, Cin, Cmid, Cout, use_pool=True)
    ref2 = _reference(x, p2, stride=2)
    out2 = double_blaze_block(x, p2, stride=2, matmul_dtype=jnp.float32)
    jax.block_until_ready(out2)
    assert out2.shape == (N, Cout, H // 2, W // 2)
    assert jnp.allclose(out2, ref2, rtol=2e-3, atol=2e-3), \
        float(jnp.max(jnp.abs(out2 - ref2)))

    # --- Case 2: stride=1 -> identity shortcut (f32 MXU path) ---
    p1 = make_params(kp2, Cin, 8, Cin, use_pool=False)
    ref1 = _reference(x, p1, stride=1)
    out1 = double_blaze_block(x, p1, stride=1, matmul_dtype=jnp.float32)
    jax.block_until_ready(out1)
    assert out1.shape == (N, Cin, H, W)
    assert jnp.allclose(out1, ref1, rtol=2e-3, atol=2e-3), \
        float(jnp.max(jnp.abs(out1 - ref1)))

    # --- Case 3: default bf16 MXU-operand fast path (f32 accumulation) ---
    # Loose sanity bound: bf16 operand rounding through the K=25*Cmid dense
    # conv dominates the error budget (~sqrt(25*Cmid) * 2^-8 of the operand
    # magnitudes); observed errors are typically a few 1e-2 at most.
    out2b = double_blaze_block(x, p2, stride=2)
    jax.block_until_ready(out2b)
    max_err_bf16 = float(jnp.max(jnp.abs(out2b - ref2)))
    assert max_err_bf16 < 0.15, max_err_bf16

    print("KERNEL_OK")
</pallas_src>

<mosaic_0001>
module attributes {stable_mosaic.version = 11 : i64} {
  func.func @_double_blaze_kernel(%arg0: i32, %arg1: memref<1x16x16x4xf32, #tpu.memory_space<vmem>>, %arg2: memref<25x128xf32, #tpu.memory_space<vmem>>, %arg3: memref<1x128xf32, #tpu.memory_space<vmem>>, %arg4: memref<128x128xf32, #tpu.memory_space<vmem>>, %arg5: memref<1x128xf32, #tpu.memory_space<vmem>>, %arg6: memref<25x128x128xf32, #tpu.memory_space<vmem>>, %arg7: memref<256x128xf32, #tpu.memory_space<vmem>>, %arg8: memref<1x128xf32, #tpu.memory_space<vmem>>, %arg9: memref<1x64x128xf32, #tpu.memory_space<vmem>>, %arg10: memref<1x20x20x128xf32, #tpu.memory_space<vmem>>, %arg11: memref<1x12x12x128xf32, #tpu.memory_space<vmem>>, %arg12: memref<1x8x20x128xf32, #tpu.memory_space<vmem>>, %arg13: memref<1x8x8x128xf32, #tpu.memory_space<vmem>>) attributes {dimension_semantics = [#tpu.dimension_semantics<parallel>], iteration_bounds = array<i64: 2>, scalar_prefetch = 0 : i64, scratch_operands = 4 : i64, tpu.core_type = #tpu.core_type<tc>, window_params = [{transform_indices = @transform_0, window_bounds = array<i64: 1, 16, 16, 4>}, {pipeline_mode = #tpu.pipeline_mode<synchronous>, transform_indices = @transform_1, window_bounds = array<i64: 25, 128>}, {pipeline_mode = #tpu.pipeline_mode<synchronous>, transform_indices = @transform_2, window_bounds = array<i64: 1, 128>}, {pipeline_mode = #tpu.pipeline_mode<synchronous>, transform_indices = @transform_3, window_bounds = array<i64: 128, 128>}, {pipeline_mode = #tpu.pipeline_mode<synchronous>, transform_indices = @transform_4, window_bounds = array<i64: 1, 128>}, {pipeline_mode = #tpu.pipeline_mode<synchronous>, transform_indices = @transform_5, window_bounds = array<i64: 25, 128, 128>}, {pipeline_mode = #tpu.pipeline_mode<synchronous>, transform_indices = @transform_6, window_bounds = array<i64: 256, 128>}, {pipeline_mode = #tpu.pipeline_mode<synchronous>, transform_indices = @transform_7, window_bounds = array<i64: 1, 128>}, {transform_indices = @transform_8, window_bounds = array<i64: 1, 64, 128>}]} {
    %cst = arith.constant 0.000000e+00 : f32
    %0 = vector.broadcast %cst : f32 to vector<1x2x20x128xf32>
    %c0 = arith.constant 0 : index
    %c0_0 = arith.constant 0 : index
    %c0_1 = arith.constant 0 : index
    %c0_2 = arith.constant 0 : index
    %1 = vector.load %arg10[%c0, %c0_0, %c0_1, %c0_2] : memref<1x20x20x128xf32, #tpu.memory_space<vmem>>, vector<1x2x20x128xf32>
    tpu.vector_store %arg10[%c0, %c0_0, %c0_1, %c0_2], %0 {strides = array<i32>} : memref<1x20x20x128xf32, #tpu.memory_space<vmem>>, vector<1x2x20x128xf32>,
    %cst_3 = arith.constant 0.000000e+00 : f32
    %2 = vector.broadcast %cst_3 : f32 to vector<1x2x20x128xf32>
    %c0_4 = arith.constant 0 : index
    %c18 = arith.constant 18 : index
    %c0_5 = arith.constant 0 : index
    %c0_6 = arith.constant 0 : index
    %3 = vector.load %arg10[%c0_4, %c18, %c0_5, %c0_6] : memref<1x20x20x128xf32, #tpu.memory_space<vmem>>, vector<1x2x20x128xf32>
    tpu.vector_store %arg10[%c0_4, %c18, %c0_5, %c0_6], %2 {strides = array<i32>} : memref<1x20x20x128xf32, #tpu.memory_space<vmem>>, vector<1x2x20x128xf32>,
    %cst_7 = arith.constant 0.000000e+00 : f32
    %4 = vector.broadcast %cst_7 : f32 to vector<1x16x2x128xf32>
    %c0_8 = arith.constant 0 : index
    %c2 = arith.constant 2 : index
    %c0_9 = arith.constant 0 : index
    %c0_10 = arith.constant 0 : index
    %5 = vector.load %arg10[%c0_8, %c2, %c0_9, %c0_10] : memref<1x20x20x128xf32, #tpu.memory_space<vmem>>, vector<1x16x2x128xf32>
    tpu.vector_store %arg10[%c0_8, %c2, %c0_9, %c0_10], %4 {strides = array<i32>} : memref<1x20x20x128xf32, #tpu.memory_space<vmem>>, vector<1x16x2x128xf32>,
    %cst_11 = arith.constant 0.000000e+00 : f32
    %6 = vector.broadcast %cst_11 : f32 to vector<1x16x2x128xf32>
    %c0_12 = arith.constant 0 : index
    %c2_13 = arith.constant 2 : index
    %c18_14 = arith.constant 18 : index
    %c0_15 = arith.constant 0 : index
    %7 = vector.load %arg10[%c0_12, %c2_13, %c18_14, %c0_15] : memref<1x20x20x128xf32, #tpu.memory_space<vmem>>, vector<1x16x2x128xf32>
    tpu.vector_store %arg10[%c0_12, %c2_13, %c18_14, %c0_15], %6 {strides = array<i32>} : memref<1x20x20x128xf32, #tpu.memory_space<vmem>>, vector<1x16x2x128xf32>,
    %c0_16 = arith.constant 0 : index
    %c0_17 = arith.constant 0 : index
    %c0_18 = arith.constant 0 : index
    %c0_19 = arith.constant 0 : index
    %8 = vector.load %arg1[%c0_16, %c0_17, %c0_18, %c0_19] : memref<1x16x16x4xf32, #tpu.memory_space<vmem>>, vector<1x16x16x4xf32>
    %c0_20 = arith.constant 0 : index
    %c2_21 = arith.constant 2 : index
    %c2_22 = arith.constant 2 : index
    %c0_23 = arith.constant 0 : index
    %9 = vector.load %arg10[%c0_20, %c2_21, %c2_22, %c0_23] : memref<1x20x20x128xf32, #tpu.memory_space<vmem>>, vector<1x16x16x4xf32>
    tpu.vector_store %arg10[%c0_20, %c2_21, %c2_22, %c0_23], %8 {strides = array<i32>} : memref<1x20x20x128xf32, #tpu.memory_space<vmem>>, vector<1x16x16x4xf32>,
    %cst_24 = arith.constant 0.000000e+00 : f32
    %10 = vector.broadcast %cst_24 : f32 to vector<1x16x16x124xf32>
    %c0_25 = arith.constant 0 : index
    %c2_26 = arith.constant 2 : index
    %c2_27 = arith.constant 2 : index
    %c4 = arith.constant 4 : index
    %11 = vector.load %arg10[%c0_25, %c2_26, %c2_27, %c4] : memref<1x20x20x128xf32, #tpu.memory_space<vmem>>, vector<1x16x16x124xf32>
    tpu.vector_store %arg10[%c0_25, %c2_26, %c2_27, %c4], %10 {strides = array<i32>} : memref<1x20x20x128xf32, #tpu.memory_space<vmem>>, vector<1x16x16x124xf32>,
    %cst_28 = arith.constant 0.000000e+00 : f32
    %12 = vector.broadcast %cst_28 : f32 to vector<1x2x12x128xf32>
    %c0_29 = arith.constant 0 : index
    %c0_30 = arith.constant 0 : index
    %c0_31 = arith.constant 0 : index
    %c0_32 = arith.constant 0 : index
    %13 = vector.load %arg11[%c0_29, %c0_30, %c0_31, %c0_32] : memref<1x12x12x128xf32, #tpu.memory_space<vmem>>, vector<1x2x12x128xf32>
    tpu.vector_store %arg11[%c0_29, %c0_30, %c0_31, %c0_32], %12 {strides = array<i32>} : memref<1x12x12x128xf32, #tpu.memory_space<vmem>>, vector<1x2x12x128xf32>,
    %cst_33 = arith.constant 0.000000e+00 : f32
    %14 = vector.broadcast %cst_33 : f32 to vector<1x2x12x128xf32>
    %c0_34 = arith.constant 0 : index
    %c10 = arith.constant 10 : index
    %c0_35 = arith.constant 0 : index
    %c0_36 = arith.constant 0 : index
    %15 = vector.load %arg11[%c0_34, %c10, %c0_35, %c0_36] : memref<1x12x12x128xf32, #tpu.memory_space<vmem>>, vector<1x2x12x128xf32>
    tpu.vector_store %arg11[%c0_34, %c10, %c0_35, %c0_36], %14 {strides = array<i32>} : memref<1x12x12x128xf32, #tpu.memory_space<vmem>>, vector<1x2x12x128xf32>,
    %cst_37 = arith.constant 0.000000e+00 : f32
    %16 = vector.broadcast %cst_37 : f32 to vector<1x8x2x128xf32>
    %c0_38 = arith.constant 0 : index
    %c2_39 = arith.constant 2 : index
    %c0_40 = arith.constant 0 : index
    %c0_41 = arith.constant 0 : index
    %17 = vector.load %arg11[%c0_38, %c2_39, %c0_40, %c0_41] : memref<1x12x12x128xf32, #tpu.memory_space<vmem>>, vector<1x8x2x128xf32>
    tpu.vector_store %arg11[%c0_38, %c2_39, %c0_40, %c0_41], %16 {strides = array<i32>} : memref<1x12x12x128xf32, #tpu.memory_space<vmem>>, vector<1x8x2x128xf32>,
    %cst_42 = arith.constant 0.000000e+00 : f32
    %18 = vector.broadcast %cst_42 : f32 to vector<1x8x2x128xf32>
    %c0_43 = arith.constant 0 : index
    %c2_44 = arith.constant 2 : index
    %c10_45 = arith.constant 10 : index
    %c0_46 = arith.constant 0 : index
    %19 = vector.load %arg11[%c0_43, %c2_44, %c10_45, %c0_46] : memref<1x12x12x128xf32, #tpu.memory_space<vmem>>, vector<1x8x2x128xf32>
    tpu.vector_store %arg11[%c0_43, %c2_44, %c10_45, %c0_46], %18 {strides = array<i32>} : memref<1x12x12x128xf32, #tpu.memory_space<vmem>>, vector<1x8x2x128xf32>,
    %c0_47 = arith.constant 0 : index
    %c0_48 = arith.constant 0 : index
    %20 = vector.load %arg2[%c0_47, %c0_48] : memref<25x128xf32, #tpu.memory_space<vmem>>, vector<25x128xf32>
    %cst_49 = arith.constant 0.000000e+00 : f32
    %21 = vector.broadcast %cst_49 : f32 to vector<1x8x8x128xf32>
    %c0_50 = arith.constant 0 : index
    %c0_51 = arith.constant 0 : index
    %c0_52 = arith.constant 0 : index
    %c0_53 = arith.constant 0 : index
    %22 = tpu.strided_load %arg10[%c0_50, %c0_51, %c0_52, %c0_53] {strides = array<i32: 1, 2, 1, 1>} : memref<1x20x20x128xf32, #tpu.memory_space<vmem>>, vector<1x8x20x128xf32>
    %c0_54 = arith.constant 0 : index
    %c0_55 = arith.constant 0 : index
    %c0_56 = arith.constant 0 : index
    %c0_57 = arith.constant 0 : index
    %23 = vector.load %arg12[%c0_54, %c0_55, %c0_56, %c0_57] : memref<1x8x20x128xf32, #tpu.memory_space<vmem>>, vector<1x8x20x128xf32>
    tpu.vector_store %arg12[%c0_54, %c0_55, %c0_56, %c0_57], %22 {strides = array<i32>} : memref<1x8x20x128xf32, #tpu.memory_space<vmem>>, vector<1x8x20x128xf32>,
    %c0_58 = arith.constant 0 : index
    %c0_59 = arith.constant 0 : index
    %c0_60 = arith.constant 0 : index
    %c0_61 = arith.constant 0 : index
    %24 = tpu.strided_load %arg12[%c0_58, %c0_59, %c0_60, %c0_61] {strides = array<i32: 1, 1, 2, 1>} : memref<1x8x20x128xf32, #tpu.memory_space<vmem>>, vector<1x8x8x128xf32>
    %25 = vector.extract_strided_slice %20 {offsets = [0, 0], sizes = [1, 128], strides = [1, 1]} : vector<25x128xf32> to vector<1x128xf32>
    %26 = vector.shape_cast %25 : vector<1x128xf32> to vector<128xf32>
    %27 = vector.shape_cast %26 : vector<128xf32> to vector<1x1x1x128xf32>
    %28 = vector.broadcast %27 : vector<1x1x1x128xf32> to vector<1x8x8x128xf32>
    %29 = arith.mulf %24, %28 : vector<1x8x8x128xf32>
    %30 = arith.addf %21, %29 : vector<1x8x8x128xf32>
    %c0_62 = arith.constant 0 : index
    %c0_63 = arith.constant 0 : index
    %c1 = arith.constant 1 : index
    %c0_64 = arith.constant 0 : index
    %31 = tpu.strided_load %arg12[%c0_62, %c0_63, %c1, %c0_64] {strides = array<i32: 1, 1, 2, 1>} : memref<1x8x20x128xf32, #tpu.memory_space<vmem>>, vector<1x8x8x128xf32>
    %32 = vector.extract_strided_slice %20 {offsets = [1, 0], sizes = [1, 128], strides = [1, 1]} : vector<25x128xf32> to vector<1x128xf32>
    %33 = vector.shape_cast %32 : vector<1x128xf32> to vector<128xf32>
    %34 = vector.shape_cast %33 : vector<128xf32> to vector<1x1x1x128xf32>
    %35 = vector.broadcast %34 : vector<1x1x1x128xf32> to vector<1x8x8x128xf32>
    %36 = arith.mulf %31, %35 : vector<1x8x8x128xf32>
    %37 = arith.addf %30, %36 : vector<1x8x8x128xf32>
    %c0_65 = arith.constant 0 : index
    %c0_66 = arith.constant 0 : index
    %c2_67 = arith.constant 2 : index
    %c0_68 = arith.constant 0 : index
    %38 = tpu.strided_load %arg12[%c0_65, %c0_66, %c2_67, %c0_68] {strides = array<i32: 1, 1, 2, 1>} : memref<1x8x20x128xf32, #tpu.memory_space<vmem>>, vector<1x8x8x128xf32>
    %39 = vector.extract_strided_slice %20 {offsets = [2, 0], sizes = [1, 128], strides = [1, 1]} : vector<25x128xf32> to vector<1x128xf32>
    %40 = vector.shape_cast %39 : vector<1x128xf32> to vector<128xf32>
    %41 = vector.shape_cast %40 : vector<128xf32> to vector<1x1x1x128xf32>
    %42 = vector.broadcast %41 : vector<1x1x1x128xf32> to vector<1x8x8x128xf32>
    %43 = arith.mulf %38, %42 : vector<1x8x8x128xf32>
    %44 = arith.addf %37, %43 : vector<1x8x8x128xf32>
    %c0_69 = arith.constant 0 : index
    %c0_70 = arith.constant 0 : index
    %c3 = arith.constant 3 : index
    %c0_71 = arith.constant 0 : index
    %45 = tpu.strided_load %arg12[%c0_69, %c0_70, %c3, %c0_71] {strides = array<i32: 1, 1, 2, 1>} : memref<1x8x20x128xf32, #tpu.memory_space<vmem>>, vector<1x8x8x128xf32>
    %46 = vector.extract_strided_slice %20 {offsets = [3, 0], sizes = [1, 128], strides = [1, 1]} : vector<25x128xf32> to vector<1x128xf32>
    %47 = vector.shape_cast %46 : vector<1x128xf32> to vector<128xf32>
    %48 = vector.shape_cast %47 : vector<128xf32> to vector<1x1x1x128xf32>
    %49 = vector.broadcast %48 : vector<1x1x1x128xf32> to vector<1x8x8x128xf32>
    %50 = arith.mulf %45, %49 : vector<1x8x8x128xf32>
    %51 = arith.addf %44, %50 : vector<1x8x8x128xf32>
    %c0_72 = arith.constant 0 : index
    %c0_73 = arith.constant 0 : index
    %c4_74 = arith.constant 4 : index
    %c0_75 = arith.constant 0 : index
    %52 = tpu.strided_load %arg12[%c0_72, %c0_73, %c4_74, %c0_75] {strides = array<i32: 1, 1, 2, 1>} : memref<1x8x20x128xf32, #tpu.memory_space<vmem>>, vector<1x8x8x128xf32>
    %53 = vector.extract_strided_slice %20 {offsets = [4, 0], sizes = [1, 128], strides = [1, 1]} : vector<25x128xf32> to vector<1x128xf32>
    %54 = vector.shape_cast %53 : vector<1x128xf32> to vector<128xf32>
    %55 = vector.shape_cast %54 : vector<128xf32> to vector<1x1x1x128xf32>
    %56 = vector.broadcast %55 : vector<1x1x1x128xf32> to vector<1x8x8x128xf32>
    %57 = arith.mulf %52, %56 : vector<1x8x8x128xf32>
    %58 = arith.addf %51, %57 : vector<1x8x8x128xf32>
    %c0_76 = arith.constant 0 : index
    %c1_77 = arith.constant 1 : index
    %c0_78 = arith.constant 0 : index
    %c0_79 = arith.constant 0 : index
    %59 = tpu.strided_load %arg10[%c0_76, %c1_77, %c0_78, %c0_79] {strides = array<i32: 1, 2, 1, 1>} : memref<1x20x20x128xf32, #tpu.memory_space<vmem>>, vector<1x8x20x128xf32>
    %c0_80 = arith.constant 0 : index
    %c0_81 = arith.constant 0 : index
    %c0_82 = arith.constant 0 : index
    %c0_83 = arith.constant 0 : index
    %60 = vector.load %arg12[%c0_80, %c0_81, %c0_82, %c0_83] : memref<1x8x20x128xf32, #tpu.memory_space<vmem>>, vector<1x8x20x128xf32>
    tpu.vector_store %arg12[%c0_80, %c0_81, %c0_82, %c0_83], %59 {strides = array<i32>} : memref<1x8x20x128xf32, #tpu.memory_space<vmem>>, vector<1x8x20x128xf32>,
    %c0_84 = arith.constant 0 : index
    %c0_85 = arith.constant 0 : index
    %c0_86 = arith.constant 0 : index
    %c0_87 = arith.constant 0 : index
    %61 = tpu.strided_load %arg12[%c0_84, %c0_85, %c0_86, %c0_87] {strides = array<i32: 1, 1, 2, 1>} : memref<1x8x20x128xf32, #tpu.memory_space<vmem>>, vector<1x8x8x128xf32>
    %62 = vector.extract_strided_slice %20 {offsets = [5, 0], sizes = [1, 128], strides = [1, 1]} : vector<25x128xf32> to vector<1x128xf32>
    %63 = vector.shape_cast %62 : vector<1x128xf32> to vector<128xf32>
    %64 = vector.shape_cast %63 : vector<128xf32> to vector<1x1x1x128xf32>
    %65 = vector.broadcast %64 : vector<1x1x1x128xf32> to vector<1x8x8x128xf32>
    %66 = arith.mulf %61, %65 : vector<1x8x8x128xf32>
    %67 = arith.addf %58, %66 : vector<1x8x8x128xf32>
    %c0_88 = arith.constant 0 : index
    %c0_89 = arith.constant 0 : index
    %c1_90 = arith.constant 1 : index
    %c0_91 = arith.constant 0 : index
    %68 = tpu.strided_load %arg12[%c0_88, %c0_89, %c1_90, %c0_91] {strides = array<i32: 1, 1, 2, 1>} : memref<1x8x20x128xf32, #tpu.memory_space<vmem>>, vector<1x8x8x128xf32>
    %69 = vector.extract_strided_slice %20 {offsets = [6, 0], sizes = [1, 128], strides = [1, 1]} : vector<25x128xf32> to vector<1x128xf32>
    %70 = vector.shape_cast %69 : vector<1x128xf32> to vector<128xf32>
    %71 = vector.shape_cast %70 : vector<128xf32> to vector<1x1x1x128xf32>
    %72 = vector.broadcast %71 : vector<1x1x1x128xf32> to vector<1x8x8x128xf32>
    %73 = arith.mulf %68, %72 : vector<1x8x8x128xf32>
    %74 = arith.addf %67, %73 : vector<1x8x8x128xf32>
    %c0_92 = arith.constant 0 : index
    %c0_93 = arith.constant 0 : index
    %c2_94 = arith.constant 2 : index
    %c0_95 = arith.constant 0 : index
    %75 = tpu.strided_load %arg12[%c0_92, %c0_93, %c2_94, %c0_95] {strides = array<i32: 1, 1, 2, 1>} : memref<1x8x20x128xf32, #tpu.memory_space<vmem>>, vector<1x8x8x128xf32>
    %76 = vector.extract_strided_slice %20 {offsets = [7, 0], sizes = [1, 128], strides = [1, 1]} : vector<25x128xf32> to vector<1x128xf32>
    %77 = vector.shape_cast %76 : vector<1x128xf32> to vector<128xf32>
    %78 = vector.shape_cast %77 : vector<128xf32> to vector<1x1x1x128xf32>
    %79 = vector.broadcast %78 : vector<1x1x1x128xf32> to vector<1x8x8x128xf32>
    %80 = arith.mulf %75, %79 : vector<1x8x8x128xf32>
    %81 = arith.addf %74, %80 : vector<1x8x8x128xf32>
    %c0_96 = arith.constant 0 : index
    %c0_97 = arith.constant 0 : index
    %c3_98 = arith.constant 3 : index
    %c0_99 = arith.constant 0 : index
    %82 = tpu.strided_load %arg12[%c0_96, %c0_97, %c3_98, %c0_99] {strides = array<i32: 1, 1, 2, 1>} : memref<1x8x20x128xf32, #tpu.memory_space<vmem>>, vector<1x8x8x128xf32>
    %83 = vector.extract_strided_slice %20 {offsets = [8, 0], sizes = [1, 128], strides = [1, 1]} : vector<25x128xf32> to vector<1x128xf32>
    %84 = vector.shape_cast %83 : vector<1x128xf32> to vector<128xf32>
    %85 = vector.shape_cast %84 : vector<128xf32> to vector<1x1x1x128xf32>
    %86 = vector.broadcast %85 : vector<1x1x1x128xf32> to vector<1x8x8x128xf32>
    %87 = arith.mulf %82, %86 : vector<1x8x8x128xf32>
    %88 = arith.addf %81, %87 : vector<1x8x8x128xf32>
    %c0_100 = arith.constant 0 : index
    %c0_101 = arith.constant 0 : index
    %c4_102 = arith.constant 4 : index
    %c0_103 = arith.constant 0 : index
    %89 = tpu.strided_load %arg12[%c0_100, %c0_101, %c4_102, %c0_103] {strides = array<i32: 1, 1, 2, 1>} : memref<1x8x20x128xf32, #tpu.memory_space<vmem>>, vector<1x8x8x128xf32>
    %90 = vector.extract_strided_slice %20 {offsets = [9, 0], sizes = [1, 128], strides = [1, 1]} : vector<25x128xf32> to vector<1x128xf32>
    %91 = vector.shape_cast %90 : vector<1x128xf32> to vector<128xf32>
    %92 = vector.shape_cast %91 : vector<128xf32> to vector<1x1x1x128xf32>
    %93 = vector.broadcast %92 : vector<1x1x1x128xf32> to vector<1x8x8x128xf32>
    %94 = arith.mulf %89, %93 : vector<1x8x8x128xf32>
    %95 = arith.addf %88, %94 : vector<1x8x8x128xf32>
    %c0_104 = arith.constant 0 : index
    %c2_105 = arith.constant 2 : index
    %c0_106 = arith.constant 0 : index
    %c0_107 = arith.constant 0 : index
    %96 = tpu.strided_load %arg10[%c0_104, %c2_105, %c0_106, %c0_107] {strides = array<i32: 1, 2, 1, 1>} : memref<1x20x20x128xf32, #tpu.memory_space<vmem>>, vector<1x8x20x128xf32>
    %c0_108 = arith.constant 0 : index
    %c0_109 = arith.constant 0 : index
    %c0_110 = arith.constant 0 : index
    %c0_111 = arith.constant 0 : index
    %97 = vector.load %arg12[%c0_108, %c0_109, %c0_110, %c0_111] : memref<1x8x20x128xf32, #tpu.memory_space<vmem>>, vector<1x8x20x128xf32>
    tpu.vector_store %arg12[%c0_108, %c0_109, %c0_110, %c0_111], %96 {strides = array<i32>} : memref<1x8x20x128xf32, #tpu.memory_space<vmem>>, vector<1x8x20x128xf32>,
    %c0_112 = arith.constant 0 : index
    %c0_113 = arith.constant 0 : index
    %c0_114 = arith.constant 0 : index
    %c0_115 = arith.constant 0 : index
    %98 = tpu.strided_load %arg12[%c0_112, %c0_113, %c0_114, %c0_115] {strides = array<i32: 1, 1, 2, 1>} : memref<1x8x20x128xf32, #tpu.memory_space<vmem>>, vector<1x8x8x128xf32>
    %99 = vector.extract_strided_slice %20 {offsets = [10, 0], sizes = [1, 128], strides = [1, 1]} : vector<25x128xf32> to vector<1x128xf32>
    %100 = vector.shape_cast %99 : vector<1x128xf32> to vector<128xf32>
    %101 = vector.shape_cast %100 : vector<128xf32> to vector<1x1x1x128xf32>
    %102 = vector.broadcast %101 : vector<1x1x1x128xf32> to vector<1x8x8x128xf32>
    %103 = arith.mulf %98, %102 : vector<1x8x8x128xf32>
    %104 = arith.addf %95, %103 : vector<1x8x8x128xf32>
    %c0_116 = arith.constant 0 : index
    %c0_117 = arith.constant 0 : index
    %c1_118 = arith.constant 1 : index
    %c0_119 = arith.constant 0 : index
    %105 = tpu.strided_load %arg12[%c0_116, %c0_117, %c1_118, %c0_119] {strides = array<i32: 1, 1, 2, 1>} : memref<1x8x20x128xf32, #tpu.memory_space<vmem>>, vector<1x8x8x128xf32>
    %106 = vector.extract_strided_slice %20 {offsets = [11, 0], sizes = [1, 128], strides = [1, 1]} : vector<25x128xf32> to vector<1x128xf32>
    %107 = vector.shape_cast %106 : vector<1x128xf32> to vector<128xf32>
    %108 = vector.shape_cast %107 : vector<128xf32> to vector<1x1x1x128xf32>
    %109 = vector.broadcast %108 : vector<1x1x1x128xf32> to vector<1x8x8x128xf32>
    %110 = arith.mulf %105, %109 : vector<1x8x8x128xf32>
    %111 = arith.addf %104, %110 : vector<1x8x8x128xf32>
    %c0_120 = arith.constant 0 : index
    %c0_121 = arith.constant 0 : index
    %c2_122 = arith.constant 2 : index
    %c0_123 = arith.constant 0 : index
    %112 = tpu.strided_load %arg12[%c0_120, %c0_121, %c2_122, %c0_123] {strides = array<i32: 1, 1, 2, 1>} : memref<1x8x20x128xf32, #tpu.memory_space<vmem>>, vector<1x8x8x128xf32>
    %113 = vector.extract_strided_slice %20 {offsets = [12, 0], sizes = [1, 128], strides = [1, 1]} : vector<25x128xf32> to vector<1x128xf32>
    %114 = vector.shape_cast %113 : vector<1x128xf32> to vector<128xf32>
    %115 = vector.shape_cast %114 : vector<128xf32> to vector<1x1x1x128xf32>
    %116 = vector.broadcast %115 : vector<1x1x1x128xf32> to vector<1x8x8x128xf32>
    %117 = arith.mulf %112, %116 : vector<1x8x8x128xf32>
    %118 = arith.addf %111, %117 : vector<1x8x8x128xf32>
    %c0_124 = arith.constant 0 : index
    %c0_125 = arith.constant 0 : index
    %c3_126 = arith.constant 3 : index
    %c0_127 = arith.constant 0 : index
    %119 = tpu.strided_load %arg12[%c0_124, %c0_125, %c3_126, %c0_127] {strides = array<i32: 1, 1, 2, 1>} : memref<1x8x20x128xf32, #tpu.memory_space<vmem>>, vector<1x8x8x128xf32>
    %120 = vector.extract_strided_slice %20 {offsets = [13, 0], sizes = [1, 128], strides = [1, 1]} : vector<25x128xf32> to vector<1x128xf32>
    %121 = vector.shape_cast %120 : vector<1x128xf32> to vector<128xf32>
    %122 = vector.shape_cast %121 : vector<128xf32> to vector<1x1x1x128xf32>
    %123 = vector.broadcast %122 : vector<1x1x1x128xf32> to vector<1x8x8x128xf32>
    %124 = arith.mulf %119, %123 : vector<1x8x8x128xf32>
    %125 = arith.addf %118, %124 : vector<1x8x8x128xf32>
    %126 = arith.maximumf %112, %119 : vector<1x8x8x128xf32>
    %c0_128 = arith.constant 0 : index
    %c0_129 = arith.constant 0 : index
    %c4_130 = arith.constant 4 : index
    %c0_131 = arith.constant 0 : index
    %127 = tpu.strided_load %arg12[%c0_128, %c0_129, %c4_130, %c0_131] {strides = array<i32: 1, 1, 2, 1>} : memref<1x8x20x128xf32, #tpu.memory_space<vmem>>, vector<1x8x8x128xf32>
    %128 = vector.extract_strided_slice %20 {offsets = [14, 0], sizes = [1, 128], strides = [1, 1]} : vector<25x128xf32> to vector<1x128xf32>
    %129 = vector.shape_cast %128 : vector<1x128xf32> to vector<128xf32>
    %130 = vector.shape_cast %129 : vector<128xf32> to vector<1x1x1x128xf32>
    %131 = vector.broadcast %130 : vector<1x1x1x128xf32> to vector<1x8x8x128xf32>
    %132 = arith.mulf %127, %131 : vector<1x8x8x128xf32>
    %133 = arith.addf %125, %132 : vector<1x8x8x128xf32>
    %c0_132 = arith.constant 0 : index
    %c3_133 = arith.constant 3 : index
    %c0_134 = arith.constant 0 : index
    %c0_135 = arith.constant 0 : index
    %134 = tpu.strided_load %arg10[%c0_132, %c3_133, %c0_134, %c0_135] {strides = array<i32: 1, 2, 1, 1>} : memref<1x20x20x128xf32, #tpu.memory_space<vmem>>, vector<1x8x20x128xf32>
    %c0_136 = arith.constant 0 : index
    %c0_137 = arith.constant 0 : index
    %c0_138 = arith.constant 0 : index
    %c0_139 = arith.constant 0 : index
    %135 = vector.load %arg12[%c0_136, %c0_137, %c0_138, %c0_139] : memref<1x8x20x128xf32, #tpu.memory_space<vmem>>, vector<1x8x20x128xf32>
    tpu.vector_store %arg12[%c0_136, %c0_137, %c0_138, %c0_139], %134 {strides = array<i32>} : memref<1x8x20x128xf32, #tpu.memory_space<vmem>>, vector<1x8x20x128xf32>,
    %c0_140 = arith.constant 0 : index
    %c0_141 = arith.constant 0 : index
    %c0_142 = arith.constant 0 : index
    %c0_143 = arith.constant 0 : index
    %136 = tpu.strided_load %arg12[%c0_140, %c0_141, %c0_142, %c0_143] {strides = array<i32: 1, 1, 2, 1>} : memref<1x8x20x128xf32, #tpu.memory_space<vmem>>, vector<1x8x8x128xf32>
    %137 = vector.extract_strided_slice %20 {offsets = [15, 0], sizes = [1, 128], strides = [1, 1]} : vector<25x128xf32> to vector<1x128xf32>
    %138 = vector.shape_cast %137 : vector<1x128xf32> to vector<128xf32>
    %139 = vector.shape_cast %138 : vector<128xf32> to vector<1x1x1x128xf32>
    %140 = vector.broadcast %139 : vector<1x1x1x128xf32> to vector<1x8x8x128xf32>
    %141 = arith.mulf %136, %140 : vector<1x8x8x128xf32>
    %142 = arith.addf %133, %141 : vector<1x8x8x128xf32>
    %c0_144 = arith.constant 0 : index
    %c0_145 = arith.constant 0 : index
    %c1_146 = arith.constant 1 : index
    %c0_147 = arith.constant 0 : index
    %143 = tpu.strided_load %arg12[%c0_144, %c0_145, %c1_146, %c0_147] {strides = array<i32: 1, 1, 2, 1>} : memref<1x8x20x128xf32, #tpu.memory_space<vmem>>, vector<1x8x8x128xf32>
    %144 = vector.extract_strided_slice %20 {offsets = [16, 0], sizes = [1, 128], strides = [1, 1]} : vector<25x128xf32> to vector<1x128xf32>
    %145 = vector.shape_cast %144 : vector<1x128xf32> to vector<128xf32>
    %146 = vector.shape_cast %145 : vector<128xf32> to vector<1x1x1x128xf32>
    %147 = vector.broadcast %146 : vector<1x1x1x128xf32> to vector<1x8x8x128xf32>
    %148 = arith.mulf %143, %147 : vector<1x8x8x128xf32>
    %149 = arith.addf %142, %148 : vector<1x8x8x128xf32>
    %c0_148 = arith.constant 0 : index
    %c0_149 = arith.constant 0 : index
    %c2_150 = arith.constant 2 : index
    %c0_151 = arith.constant 0 : index
    %150 = tpu.strided_load %arg12[%c0_148, %c0_149, %c2_150, %c0_151] {strides = array<i32: 1, 1, 2, 1>} : memref<1x8x20x128xf32, #tpu.memory_space<vmem>>, vector<1x8x8x128xf32>
    %151 = vector.extract_strided_slice %20 {offsets = [17, 0], sizes = [1, 128], strides = [1, 1]} : vector<25x128xf32> to vector<1x128xf32>
    %152 = vector.shape_cast %151 : vector<1x128xf32> to vector<128xf32>
    %153 = vector.shape_cast %152 : vector<128xf32> to vector<1x1x1x128xf32>
    %154 = vector.broadcast %153 : vector<1x1x1x128xf32> to vector<1x8x8x128xf32>
    %155 = arith.mulf %150, %154 : vector<1x8x8x128xf32>
    %156 = arith.addf %149, %155 : vector<1x8x8x128xf32>
    %157 = arith.maximumf %126, %150 : vector<1x8x8x128xf32>
    %c0_152 = arith.constant 0 : index
    %c0_153 = arith.constant 0 : index
    %c3_154 = arith.constant 3 : index
    %c0_155 = arith.constant 0 : index
    %158 = tpu.strided_load %arg12[%c0_152, %c0_153, %c3_154, %c0_155] {strides = array<i32: 1, 1, 2, 1>} : memref<1x8x20x128xf32, #tpu.memory_space<vmem>>, vector<1x8x8x128xf32>
    %159 = vector.extract_strided_slice %20 {offsets = [18, 0], sizes = [1, 128], strides = [1, 1]} : vector<25x128xf32> to vector<1x128xf32>
    %160 = vector.shape_cast %159 : vector<1x128xf32> to vector<128xf32>
    %161 = vector.shape_cast %160 : vector<128xf32> to vector<1x1x1x128xf32>
    %162 = vector.broadcast %161 : vector<1x1x1x128xf32> to vector<1x8x8x128xf32>
    %163 = arith.mulf %158, %162 : vector<1x8x8x128xf32>
    %164 = arith.addf %156, %163 : vector<1x8x8x128xf32>
    %165 = arith.maximumf %157, %158 : vector<1x8x8x128xf32>
    %c0_156 = arith.constant 0 : index
    %c0_157 = arith.constant 0 : index
    %c4_158 = arith.constant 4 : index
    %c0_159 = arith.constant 0 : index
    %166 = tpu.strided_load %arg12[%c0_156, %c0_157, %c4_158, %c0_159] {strides = array<i32: 1, 1, 2, 1>} : memref<1x8x20x128xf32, #tpu.memory_space<vmem>>, vector<1x8x8x128xf32>
    %167 = vector.extract_strided_slice %20 {offsets = [19, 0], sizes = [1, 128], strides = [1, 1]} : vector<25x128xf32> to vector<1x128xf32>
    %168 = vector.shape_cast %167 : vector<1x128xf32> to vector<128xf32>
    %169 = vector.shape_cast %168 : vector<128xf32> to vector<1x1x1x128xf32>
    %170 = vector.broadcast %169 : vector<1x1x1x128xf32> to vector<1x8x8x128xf32>
    %171 = arith.mulf %166, %170 : vector<1x8x8x128xf32>
    %172 = arith.addf %164, %171 : vector<1x8x8x128xf32>
    %c0_160 = arith.constant 0 : index
    %c4_161 = arith.constant 4 : index
    %c0_162 = arith.constant 0 : index
    %c0_163 = arith.constant 0 : index
    %173 = tpu.strided_load %arg10[%c0_160, %c4_161, %c0_162, %c0_163] {strides = array<i32: 1, 2, 1, 1>} : memref<1x20x20x128xf32, #tpu.memory_space<vmem>>, vector<1x8x20x128xf32>
    %c0_164 = arith.constant 0 : index
    %c0_165 = arith.constant 0 : index
    %c0_166 = arith.constant 0 : index
    %c0_167 = arith.constant 0 : index
    %174 = vector.load %arg12[%c0_164, %c0_165, %c0_166, %c0_167] : memref<1x8x20x128xf32, #tpu.memory_space<vmem>>, vector<1x8x20x128xf32>
    tpu.vector_store %arg12[%c0_164, %c0_165, %c0_166, %c0_167], %173 {strides = array<i32>} : memref<1x8x20x128xf32, #tpu.memory_space<vmem>>, vector<1x8x20x128xf32>,
    %c0_168 = arith.constant 0 : index
    %c0_169 = arith.constant 0 : index
    %c0_170 = arith.constant 0 : index
    %c0_171 = arith.constant 0 : index
    %175 = tpu.strided_load %arg12[%c0_168, %c0_169, %c0_170, %c0_171] {strides = array<i32: 1, 1, 2, 1>} : memref<1x8x20x128xf32, #tpu.memory_space<vmem>>, vector<1x8x8x128xf32>
    %176 = vector.extract_strided_slice %20 {offsets = [20, 0], sizes = [1, 128], strides = [1, 1]} : vector<25x128xf32> to vector<1x128xf32>
    %177 = vector.shape_cast %176 : vector<1x128xf32> to vector<128xf32>
    %178 = vector.shape_cast %177 : vector<128xf32> to vector<1x1x1x128xf32>
    %179 = vector.broadcast %178 : vector<1x1x1x128xf32> to vector<1x8x8x128xf32>
    %180 = arith.mulf %175, %179 : vector<1x8x8x128xf32>
    %181 = arith.addf %172, %180 : vector<1x8x8x128xf32>
    %c0_172 = arith.constant 0 : index
    %c0_173 = arith.constant 0 : index
    %c1_174 = arith.constant 1 : index
    %c0_175 = arith.constant 0 : index
    %182 = tpu.strided_load %arg12[%c0_172, %c0_173, %c1_174, %c0_175] {strides = array<i32: 1, 1, 2, 1>} : memref<1x8x20x128xf32, #tpu.memory_space<vmem>>, vector<1x8x8x128xf32>
    %183 = vector.extract_strided_slice %20 {offsets = [21, 0], sizes = [1, 128], strides = [1, 1]} : vector<25x128xf32> to vector<1x128xf32>
    %184 = vector.shape_cast %183 : vector<1x128xf32> to vector<128xf32>
    %185 = vector.shape_cast %184 : vector<128xf32> to vector<1x1x1x128xf32>
    %186 = vector.broadcast %185 : vector<1x1x1x128xf32> to vector<1x8x8x128xf32>
    %187 = arith.mulf %182, %186 : vector<1x8x8x128xf32>
    %188 = arith.addf %181, %187 : vector<1x8x8x128xf32>
    %c0_176 = arith.constant 0 : index
    %c0_177 = arith.constant 0 : index
    %c2_178 = arith.constant 2 : index
    %c0_179 = arith.constant 0 : index
    %189 = tpu.strided_load %arg12[%c0_176, %c0_177, %c2_178, %c0_179] {strides = array<i32: 1, 1, 2, 1>} : memref<1x8x20x128xf32, #tpu.memory_space<vmem>>, vector<1x8x8x128xf32>
    %190 = vector.extract_strided_slice %20 {offsets = [22, 0], sizes = [1, 128], strides = [1, 1]} : vector<25x128xf32> to vector<1x128xf32>
    %191 = vector.shape_cast %190 : vector<1x128xf32> to vector<128xf32>
    %192 = vector.shape_cast %191 : vector<128xf32> to vector<1x1x1x128xf32>
    %193 = vector.broadcast %192 : vector<1x1x1x128xf32> to vector<1x8x8x128xf32>
    %194 = arith.mulf %189, %193 : vector<1x8x8x128xf32>
    %195 = arith.addf %188, %194 : vector<1x8x8x128xf32>
    %c0_180 = arith.constant 0 : index
    %c0_181 = arith.constant 0 : index
    %c3_182 = arith.constant 3 : index
    %c0_183 = arith.constant 0 : index
    %196 = tpu.strided_load %arg12[%c0_180, %c0_181, %c3_182, %c0_183] {strides = array<i32: 1, 1, 2, 1>} : memref<1x8x20x128xf32, #tpu.memory_space<vmem>>, vector<1x8x8x128xf32>
    %197 = vector.extract_strided_slice %20 {offsets = [23, 0], sizes = [1, 128], strides = [1, 1]} : vector<25x128xf32> to vector<1x128xf32>
    %198 = vector.shape_cast %197 : vector<1x128xf32> to vector<128xf32>
    %199 = vector.shape_cast %198 : vector<128xf32> to vector<1x1x1x128xf32>
    %200 = vector.broadcast %199 : vector<1x1x1x128xf32> to vector<1x8x8x128xf32>
    %201 = arith.mulf %196, %200 : vector<1x8x8x128xf32>
    %202 = arith.addf %195, %201 : vector<1x8x8x128xf32>
    %c0_184 = arith.constant 0 : index
    %c0_185 = arith.constant 0 : index
    %c4_186 = arith.constant 4 : index
    %c0_187 = arith.constant 0 : index
    %203 = tpu.strided_load %arg12[%c0_184, %c0_185, %c4_186, %c0_187] {strides = array<i32: 1, 1, 2, 1>} : memref<1x8x20x128xf32, #tpu.memory_space<vmem>>, vector<1x8x8x128xf32>
    %204 = vector.extract_strided_slice %20 {offsets = [24, 0], sizes = [1, 128], strides = [1, 1]} : vector<25x128xf32> to vector<1x128xf32>
    %205 = vector.shape_cast %204 : vector<1x128xf32> to vector<128xf32>
    %206 = vector.shape_cast %205 : vector<128xf32> to vector<1x1x1x128xf32>
    %207 = vector.broadcast %206 : vector<1x1x1x128xf32> to vector<1x8x8x128xf32>
    %208 = arith.mulf %203, %207 : vector<1x8x8x128xf32>
    %209 = arith.addf %202, %208 : vector<1x8x8x128xf32>
    %210 = vector.shape_cast %209 : vector<1x8x8x128xf32> to vector<64x128xf32>
    %c0_188 = arith.constant 0 : index
    %c0_189 = arith.constant 0 : index
    %211 = vector.load %arg3[%c0_188, %c0_189] : memref<1x128xf32, #tpu.memory_space<vmem>>, vector<1x128xf32>
    %212 = vector.broadcast %211 : vector<1x128xf32> to vector<64x128xf32>
    %213 = arith.addf %210, %212 : vector<64x128xf32>
    %c0_190 = arith.constant 0 : index
    %c0_191 = arith.constant 0 : index
    %214 = vector.load %arg4[%c0_190, %c0_191] : memref<128x128xf32, #tpu.memory_space<vmem>>, vector<128x128xf32>
    %cst_192 = arith.constant dense<0.000000e+00> : vector<64x128xf32>
    %215 = tpu.matmul %213, %214, %cst_192 {dimension_numbers = #tpu.dot_dimension_numbers<[1], [0], [0], [1], [0, 0, 1, 1], [], []>} : vector<64x128xf32>, vector<128x128xf32>, vector<64x128xf32> -> vector<64x128xf32>
    %c0_193 = arith.constant 0 : index
    %c0_194 = arith.constant 0 : index
    %216 = vector.load %arg5[%c0_193, %c0_194] : memref<1x128xf32, #tpu.memory_space<vmem>>, vector<1x128xf32>
    %217 = vector.broadcast %216 : vector<1x128xf32> to vector<64x128xf32>
    %218 = arith.addf %215, %217 : vector<64x128xf32>
    %cst_195 = arith.constant 0.000000e+00 : f32
    %219 = vector.broadcast %cst_195 : f32 to vector<64x128xf32>
    %220 = arith.subf %219, %218 : vector<64x128xf32>
    %cst_196 = arith.constant 6.000000e+01 : f32
    %221 = vector.broadcast %cst_196 : f32 to vector<64x128xf32>
    %222 = arith.minimumf %220, %221 : vector<64x128xf32>
    %223 = math.exp %222 : vector<64x128xf32>
    %cst_197 = arith.constant 1.000000e+00 : f32
    %224 = vector.broadcast %cst_197 : f32 to vector<64x128xf32>
    %225 = arith.addf %224, %223 : vector<64x128xf32>
    %226 = tpu.reciprocal %225 {approx = true} : vector<64x128xf32> -> vector<64x128xf32>
    %227 = arith.mulf %225, %226 : vector<64x128xf32>
    %cst_198 = arith.constant 2.000000e+00 : f32
    %228 = vector.broadcast %cst_198 : f32 to vector<64x128xf32>
    %229 = arith.subf %228, %227 : vector<64x128xf32>
    %230 = arith.mulf %226, %229 : vector<64x128xf32>
    %231 = arith.mulf %218, %230 : vector<64x128xf32>
    %232 = vector.shape_cast %231 : vector<64x128xf32> to vector<1x8x8x128xf32>
    %c0_199 = arith.constant 0 : index
    %c2_200 = arith.constant 2 : index
    %c2_201 = arith.constant 2 : index
    %c0_202 = arith.constant 0 : index
    %233 = vector.load %arg11[%c0_199, %c2_200, %c2_201, %c0_202] : memref<1x12x12x128xf32, #tpu.memory_space<vmem>>, vector<1x8x8x128xf32>
    tpu.vector_store %arg11[%c0_199, %c2_200, %c2_201, %c0_202], %232 {strides = array<i32>} : memref<1x12x12x128xf32, #tpu.memory_space<vmem>>, vector<1x8x8x128xf32>,
    %c0_203 = arith.constant 0 : index
    %c0_204 = arith.constant 0 : index
    %c0_205 = arith.constant 0 : index
    %c0_206 = arith.constant 0 : index
    %234 = vector.load %arg13[%c0_203, %c0_204, %c0_205, %c0_206] : memref<1x8x8x128xf32, #tpu.memory_space<vmem>>, vector<1x8x8x128xf32>
    tpu.vector_store %arg13[%c0_203, %c0_204, %c0_205, %c0_206], %165 {strides = array<i32>} : memref<1x8x8x128xf32, #tpu.memory_space<vmem>>, vector<1x8x8x128xf32>,
    %cst_207 = arith.constant 0.000000e+00 : f32
    %235 = vector.broadcast %cst_207 : f32 to vector<64x128xf32>
    %c0_208 = arith.constant 0 : index
    %c0_209 = arith.constant 0 : index
    %c0_210 = arith.constant 0 : index
    %c0_211 = arith.constant 0 : index
    %236 = vector.load %arg11[%c0_208, %c0_209, %c0_210, %c0_211] : memref<1x12x12x128xf32, #tpu.memory_space<vmem>>, vector<1x8x8x128xf32>
    %237 = vector.shape_cast %236 : vector<1x8x8x128xf32> to vector<64x128xf32>
    %c0_212 = arith.constant 0 : index
    %c0_213 = arith.constant 0 : index
    %c0_214 = arith.constant 0 : index
    %238 = vector.load %arg6[%c0_212, %c0_213, %c0_214] : memref<25x128x128xf32, #tpu.memory_space<vmem>>, vector<1x128x128xf32>
    %239 = vector.shape_cast %238 : vector<1x128x128xf32> to vector<128x128xf32>
    %cst_215 = arith.constant dense<0.000000e+00> : vector<64x128xf32>
    %240 = tpu.matmul %237, %239, %cst_215 {dimension_numbers = #tpu.dot_dimension_numbers<[1], [0], [0], [1], [0, 0, 1, 1], [], []>} : vector<64x128xf32>, vector<128x128xf32>, vector<64x128xf32> -> vector<64x128xf32>
    %241 = arith.addf %235, %240 : vector<64x128xf32>
    %c0_216 = arith.constant 0 : index
    %c0_217 = arith.constant 0 : index
    %c1_218 = arith.constant 1 : index
    %c0_219 = arith.constant 0 : index
    %242 = vector.load %arg11[%c0_216, %c0_217, %c1_218, %c0_219] : memref<1x12x12x128xf32, #tpu.memory_space<vmem>>, vector<1x8x8x128xf32>
    %243 = vector.shape_cast %242 : vector<1x8x8x128xf32> to vector<64x128xf32>
    %c1_220 = arith.constant 1 : index
    %c0_221 = arith.constant 0 : index
    %c0_222 = arith.constant 0 : index
    %244 = vector.load %arg6[%c1_220, %c0_221, %c0_222] : memref<25x128x128xf32, #tpu.memory_space<vmem>>, vector<1x128x128xf32>
    %245 = vector.shape_cast %244 : vector<1x128x128xf32> to vector<128x128xf32>
    %cst_223 = arith.constant dense<0.000000e+00> : vector<64x128xf32>
    %246 = tpu.matmul %243, %245, %cst_223 {dimension_numbers = #tpu.dot_dimension_numbers<[1], [0], [0], [1], [0, 0, 1, 1], [], []>} : vector<64x128xf32>, vector<128x128xf32>, vector<64x128xf32> -> vector<64x128xf32>
    %247 = arith.addf %241, %246 : vector<64x128xf32>
    %c0_224 = arith.constant 0 : index
    %c0_225 = arith.constant 0 : index
    %c2_226 = arith.constant 2 : index
    %c0_227 = arith.constant 0 : index
    %248 = vector.load %arg11[%c0_224, %c0_225, %c2_226, %c0_227] : memref<1x12x12x128xf32, #tpu.memory_space<vmem>>, vector<1x8x8x128xf32>
    %249 = vector.shape_cast %248 : vector<1x8x8x128xf32> to vector<64x128xf32>
    %c2_228 = arith.constant 2 : index
    %c0_229 = arith.constant 0 : index
    %c0_230 = arith.constant 0 : index
    %250 = vector.load %arg6[%c2_228, %c0_229, %c0_230] : memref<25x128x128xf32, #tpu.memory_space<vmem>>, vector<1x128x128xf32>
    %251 = vector.shape_cast %250 : vector<1x128x128xf32> to vector<128x128xf32>
    %cst_231 = arith.constant dense<0.000000e+00> : vector<64x128xf32>
    %252 = tpu.matmul %249, %251, %cst_231 {dimension_numbers = #tpu.dot_dimension_numbers<[1], [0], [0], [1], [0, 0, 1, 1], [], []>} : vector<64x128xf32>, vector<128x128xf32>, vector<64x128xf32> -> vector<64x128xf32>
    %253 = arith.addf %247, %252 : vector<64x128xf32>
    %c0_232 = arith.constant 0 : index
    %c0_233 = arith.constant 0 : index
    %c3_234 = arith.constant 3 : index
    %c0_235 = arith.constant 0 : index
    %254 = vector.load %arg11[%c0_232, %c0_233, %c3_234, %c0_235] : memref<1x12x12x128xf32, #tpu.memory_space<vmem>>, vector<1x8x8x128xf32>
    %255 = vector.shape_cast %254 : vector<1x8x8x128xf32> to vector<64x128xf32>
    %c3_236 = arith.constant 3 : index
    %c0_237 = arith.constant 0 : index
    %c0_238 = arith.constant 0 : index
    %256 = vector.load %arg6[%c3_236, %c0_237, %c0_238] : memref<25x128x128xf32, #tpu.memory_space<vmem>>, vector<1x128x128xf32>
    %257 = vector.shape_cast %256 : vector<1x128x128xf32> to vector<128x128xf32>
    %cst_239 = arith.constant dense<0.000000e+00> : vector<64x128xf32>
    %258 = tpu.matmul %255, %257, %cst_239 {dimension_numbers = #tpu.dot_dimension_numbers<[1], [0], [0], [1], [0, 0, 1, 1], [], []>} : vector<64x128xf32>, vector<128x128xf32>, vector<64x128xf32> -> vector<64x128xf32>
    %259 = arith.addf %253, %258 : vector<64x128xf32>
    %c0_240 = arith.constant 0 : index
    %c0_241 = arith.constant 0 : index
    %c4_242 = arith.constant 4 : index
    %c0_243 = arith.constant 0 : index
    %260 = vector.load %arg11[%c0_240, %c0_241, %c4_242, %c0_243] : memref<1x12x12x128xf32, #tpu.memory_space<vmem>>, vector<1x8x8x128xf32>
    %261 = vector.shape_cast %260 : vector<1x8x8x128xf32> to vector<64x128xf32>
    %c4_244 = arith.constant 4 : index
    %c0_245 = arith.constant 0 : index
    %c0_246 = arith.constant 0 : index
    %262 = vector.load %arg6[%c4_244, %c0_245, %c0_246] : memref<25x128x128xf32, #tpu.memory_space<vmem>>, vector<1x128x128xf32>
    %263 = vector.shape_cast %262 : vector<1x128x128xf32> to vector<128x128xf32>
    %cst_247 = arith.constant dense<0.000000e+00> : vector<64x128xf32>
    %264 = tpu.matmul %261, %263, %cst_247 {dimension_numbers = #tpu.dot_dimension_numbers<[1], [0], [0], [1], [0, 0, 1, 1], [], []>} : vector<64x128xf32>, vector<128x128xf32>, vector<64x128xf32> -> vector<64x128xf32>
    %265 = arith.addf %259, %264 : vector<64x128xf32>
    %c0_248 = arith.constant 0 : index
    %c1_249 = arith.constant 1 : index
    %c0_250 = arith.constant 0 : index
    %c0_251 = arith.constant 0 : index
    %266 = vector.load %arg11[%c0_248, %c1_249, %c0_250, %c0_251] : memref<1x12x12x128xf32, #tpu.memory_space<vmem>>, vector<1x8x8x128xf32>
    %267 = vector.shape_cast %266 : vector<1x8x8x128xf32> to vector<64x128xf32>
    %c5 = arith.constant 5 : index
    %c0_252 = arith.constant 0 : index
    %c0_253 = arith.constant 0 : index
    %268 = vector.load %arg6[%c5, %c0_252, %c0_253] : memref<25x128x128xf32, #tpu.memory_space<vmem>>, vector<1x128x128xf32>
    %269 = vector.shape_cast %268 : vector<1x128x128xf32> to vector<128x128xf32>
    %cst_254 = arith.constant dense<0.000000e+00> : vector<64x128xf32>
    %270 = tpu.matmul %267, %269, %cst_254 {dimension_numbers = #tpu.dot_dimension_numbers<[1], [0], [0], [1], [0, 0, 1, 1], [], []>} : vector<64x128xf32>, vector<128x128xf32>, vector<64x128xf32> -> vector<64x128xf32>
    %271 = arith.addf %265, %270 : vector<64x128xf32>
    %c0_255 = arith.constant 0 : index
    %c1_256 = arith.constant 1 : index
    %c1_257 = arith.constant 1 : index
    %c0_258 = arith.constant 0 : index
    %272 = vector.load %arg11[%c0_255, %c1_256, %c1_257, %c0_258] : memref<1x12x12x128xf32, #tpu.memory_space<vmem>>, vector<1x8x8x128xf32>
    %273 = vector.shape_cast %272 : vector<1x8x8x128xf32> to vector<64x128xf32>
    %c6 = arith.constant 6 : index
    %c0_259 = arith.constant 0 : index
    %c0_260 = arith.constant 0 : index
    %274 = vector.load %arg6[%c6, %c0_259, %c0_260] : memref<25x128x128xf32, #tpu.memory_space<vmem>>, vector<1x128x128xf32>
    %275 = vector.shape_cast %274 : vector<1x128x128xf32> to vector<128x128xf32>
    %cst_261 = arith.constant dense<0.000000e+00> : vector<64x128xf32>
    %276 = tpu.matmul %273, %275, %cst_261 {dimension_numbers = #tpu.dot_dimension_numbers<[1], [0], [0], [1], [0, 0, 1, 1], [], []>} : vector<64x128xf32>, vector<128x128xf32>, vector<64x128xf32> -> vector<64x128xf32>
    %277 = arith.addf %271, %276 : vector<64x128xf32>
    %c0_262 = arith.constant 0 : index
    %c1_263 = arith.constant 1 : index
    %c2_264 = arith.constant 2 : index
    %c0_265 = arith.constant 0 : index
    %278 = vector.load %arg11[%c0_262, %c1_263, %c2_264, %c0_265] : memref<1x12x12x128xf32, #tpu.memory_space<vmem>>, vector<1x8x8x128xf32>
    %279 = vector.shape_cast %278 : vector<1x8x8x128xf32> to vector<64x128xf32>
    %c7 = arith.constant 7 : index
    %c0_266 = arith.constant 0 : index
    %c0_267 = arith.constant 0 : index
    %280 = vector.load %arg6[%c7, %c0_266, %c0_267] : memref<25x128x128xf32, #tpu.memory_space<vmem>>, vector<1x128x128xf32>
    %281 = vector.shape_cast %280 : vector<1x128x128xf32> to vector<128x128xf32>
    %cst_268 = arith.constant dense<0.000000e+00> : vector<64x128xf32>
    %282 = tpu.matmul %279, %281, %cst_268 {dimension_numbers = #tpu.dot_dimension_numbers<[1], [0], [0], [1], [0, 0, 1, 1], [], []>} : vector<64x128xf32>, vector<128x128xf32>, vector<64x128xf32> -> vector<64x128xf32>
    %283 = arith.addf %277, %282 : vector<64x128xf32>
    %c0_269 = arith.constant 0 : index
    %c1_270 = arith.constant 1 : index
    %c3_271 = arith.constant 3 : index
    %c0_272 = arith.constant 0 : index
    %284 = vector.load %arg11[%c0_269, %c1_270, %c3_271, %c0_272] : memref<1x12x12x128xf32, #tpu.memory_space<vmem>>, vector<1x8x8x128xf32>
    %285 = vector.shape_cast %284 : vector<1x8x8x128xf32> to vector<64x128xf32>
    %c8 = arith.constant 8 : index
    %c0_273 = arith.constant 0 : index
    %c0_274 = arith.constant 0 : index
    %286 = vector.load %arg6[%c8, %c0_273, %c0_274] : memref<25x128x128xf32, #tpu.memory_space<vmem>>, vector<1x128x128xf32>
    %287 = vector.shape_cast %286 : vector<1x128x128xf32> to vector<128x128xf32>
    %cst_275 = arith.constant dense<0.000000e+00> : vector<64x128xf32>
    %288 = tpu.matmul %285, %287, %cst_275 {dimension_numbers = #tpu.dot_dimension_numbers<[1], [0], [0], [1], [0, 0, 1, 1], [], []>} : vector<64x128xf32>, vector<128x128xf32>, vector<64x128xf32> -> vector<64x128xf32>
    %289 = arith.addf %283, %288 : vector<64x128xf32>
    %c0_276 = arith.constant 0 : index
    %c1_277 = arith.constant 1 : index
    %c4_278 = arith.constant 4 : index
    %c0_279 = arith.constant 0 : index
    %290 = vector.load %arg11[%c0_276, %c1_277, %c4_278, %c0_279] : memref<1x12x12x128xf32, #tpu.memory_space<vmem>>, vector<1x8x8x128xf32>
    %291 = vector.shape_cast %290 : vector<1x8x8x128xf32> to vector<64x128xf32>
    %c9 = arith.constant 9 : index
    %c0_280 = arith.constant 0 : index
    %c0_281 = arith.constant 0 : index
    %292 = vector.load %arg6[%c9, %c0_280, %c0_281] : memref<25x128x128xf32, #tpu.memory_space<vmem>>, vector<1x128x128xf32>
    %293 = vector.shape_cast %292 : vector<1x128x128xf32> to vector<128x128xf32>
    %cst_282 = arith.constant dense<0.000000e+00> : vector<64x128xf32>
    %294 = tpu.matmul %291, %293, %cst_282 {dimension_numbers = #tpu.dot_dimension_numbers<[1], [0], [0], [1], [0, 0, 1, 1], [], []>} : vector<64x128xf32>, vector<128x128xf32>, vector<64x128xf32> -> vector<64x128xf32>
    %295 = arith.addf %289, %294 : vector<64x128xf32>
    %c0_283 = arith.constant 0 : index
    %c2_284 = arith.constant 2 : index
    %c0_285 = arith.constant 0 : index
    %c0_286 = arith.constant 0 : index
    %296 = vector.load %arg11[%c0_283, %c2_284, %c0_285, %c0_286] : memref<1x12x12x128xf32, #tpu.memory_space<vmem>>, vector<1x8x8x128xf32>
    %297 = vector.shape_cast %296 : vector<1x8x8x128xf32> to vector<64x128xf32>
    %c10_287 = arith.constant 10 : index
    %c0_288 = arith.constant 0 : index
    %c0_289 = arith.constant 0 : index
    %298 = vector.load %arg6[%c10_287, %c0_288, %c0_289] : memref<25x128x128xf32, #tpu.memory_space<vmem>>, vector<1x128x128xf32>
    %299 = vector.shape_cast %298 : vector<1x128x128xf32> to vector<128x128xf32>
    %cst_290 = arith.constant dense<0.000000e+00> : vector<64x128xf32>
    %300 = tpu.matmul %297, %299, %cst_290 {dimension_numbers = #tpu.dot_dimension_numbers<[1], [0], [0], [1], [0, 0, 1, 1], [], []>} : vector<64x128xf32>, vector<128x128xf32>, vector<64x128xf32> -> vector<64x128xf32>
    %301 = arith.addf %295, %300 : vector<64x128xf32>
    %c0_291 = arith.constant 0 : index
    %c2_292 = arith.constant 2 : index
    %c1_293 = arith.constant 1 : index
    %c0_294 = arith.constant 0 : index
    %302 = vector.load %arg11[%c0_291, %c2_292, %c1_293, %c0_294] : memref<1x12x12x128xf32, #tpu.memory_space<vmem>>, vector<1x8x8x128xf32>
    %303 = vector.shape_cast %302 : vector<1x8x8x128xf32> to vector<64x128xf32>
    %c11 = arith.constant 11 : index
    %c0_295 = arith.constant 0 : index
    %c0_296 = arith.constant 0 : index
    %304 = vector.load %arg6[%c11, %c0_295, %c0_296] : memref<25x128x128xf32, #tpu.memory_space<vmem>>, vector<1x128x128xf32>
    %305 = vector.shape_cast %304 : vector<1x128x128xf32> to vector<128x128xf32>
    %cst_297 = arith.constant dense<0.000000e+00> : vector<64x128xf32>
    %306 = tpu.matmul %303, %305, %cst_297 {dimension_numbers = #tpu.dot_dimension_numbers<[1], [0], [0], [1], [0, 0, 1, 1], [], []>} : vector<64x128xf32>, vector<128x128xf32>, vector<64x128xf32> -> vector<64x128xf32>
    %307 = arith.addf %301, %306 : vector<64x128xf32>
    %c0_298 = arith.constant 0 : index
    %c2_299 = arith.constant 2 : index
    %c2_300 = arith.constant 2 : index
    %c0_301 = arith.constant 0 : index
    %308 = vector.load %arg11[%c0_298, %c2_299, %c2_300, %c0_301] : memref<1x12x12x128xf32, #tpu.memory_space<vmem>>, vector<1x8x8x128xf32>
    %309 = vector.shape_cast %308 : vector<1x8x8x128xf32> to vector<64x128xf32>
    %c12 = arith.constant 12 : index
    %c0_302 = arith.constant 0 : index
    %c0_303 = arith.constant 0 : index
    %310 = vector.load %arg6[%c12, %c0_302, %c0_303] : memref<25x128x128xf32, #tpu.memory_space<vmem>>, vector<1x128x128xf32>
    %311 = vector.shape_cast %310 : vector<1x128x128xf32> to vector<128x128xf32>
    %cst_304 = arith.constant dense<0.000000e+00> : vector<64x128xf32>
    %312 = tpu.matmul %309, %311, %cst_304 {dimension_numbers = #tpu.dot_dimension_numbers<[1], [0], [0], [1], [0, 0, 1, 1], [], []>} : vector<64x128xf32>, vector<128x128xf32>, vector<64x128xf32> -> vector<64x128xf32>
    %313 = arith.addf %307, %312 : vector<64x128xf32>
    %c0_305 = arith.constant 0 : index
    %c2_306 = arith.constant 2 : index
    %c3_307 = arith.constant 3 : index
    %c0_308 = arith.constant 0 : index
    %314 = vector.load %arg11[%c0_305, %c2_306, %c3_307, %c0_308] : memref<1x12x12x128xf32, #tpu.memory_space<vmem>>, vector<1x8x8x128xf32>
    %315 = vector.shape_cast %314 : vector<1x8x8x128xf32> to vector<64x128xf32>
    %c13 = arith.constant 13 : index
    %c0_309 = arith.constant 0 : index
    %c0_310 = arith.constant 0 : index
    %316 = vector.load %arg6[%c13, %c0_309, %c0_310] : memref<25x128x128xf32, #tpu.memory_space<vmem>>, vector<1x128x128xf32>
    %317 = vector.shape_cast %316 : vector<1x128x128xf32> to vector<128x128xf32>
    %cst_311 = arith.constant dense<0.000000e+00> : vector<64x128xf32>
    %318 = tpu.matmul %315, %317, %cst_311 {dimension_numbers = #tpu.dot_dimension_numbers<[1], [0], [0], [1], [0, 0, 1, 1], [], []>} : vector<64x128xf32>, vector<128x128xf32>, vector<64x128xf32> -> vector<64x128xf32>
    %319 = arith.addf %313, %318 : vector<64x128xf32>
    %c0_312 = arith.constant 0 : index
    %c2_313 = arith.constant 2 : index
    %c4_314 = arith.constant 4 : index
    %c0_315 = arith.constant 0 : index
    %320 = vector.load %arg11[%c0_312, %c2_313, %c4_314, %c0_315] : memref<1x12x12x128xf32, #tpu.memory_space<vmem>>, vector<1x8x8x128xf32>
    %321 = vector.shape_cast %320 : vector<1x8x8x128xf32> to vector<64x128xf32>
    %c14 = arith.constant 14 : index
    %c0_316 = arith.constant 0 : index
    %c0_317 = arith.constant 0 : index
    %322 = vector.load %arg6[%c14, %c0_316, %c0_317] : memref<25x128x128xf32, #tpu.memory_space<vmem>>, vector<1x128x128xf32>
    %323 = vector.shape_cast %322 : vector<1x128x128xf32> to vector<128x128xf32>
    %cst_318 = arith.constant dense<0.000000e+00> : vector<64x128xf32>
    %324 = tpu.matmul %321, %323, %cst_318 {dimension_numbers = #tpu.dot_dimension_numbers<[1], [0], [0], [1], [0, 0, 1, 1], [], []>} : vector<64x128xf32>, vector<128x128xf32>, vector<64x128xf32> -> vector<64x128xf32>
    %325 = arith.addf %319, %324 : vector<64x128xf32>
    %c0_319 = arith.constant 0 : index
    %c3_320 = arith.constant 3 : index
    %c0_321 = arith.constant 0 : index
    %c0_322 = arith.constant 0 : index
    %326 = vector.load %arg11[%c0_319, %c3_320, %c0_321, %c0_322] : memref<1x12x12x128xf32, #tpu.memory_space<vmem>>, vector<1x8x8x128xf32>
    %327 = vector.shape_cast %326 : vector<1x8x8x128xf32> to vector<64x128xf32>
    %c15 = arith.constant 15 : index
    %c0_323 = arith.constant 0 : index
    %c0_324 = arith.constant 0 : index
    %328 = vector.load %arg6[%c15, %c0_323, %c0_324] : memref<25x128x128xf32, #tpu.memory_space<vmem>>, vector<1x128x128xf32>
    %329 = vector.shape_cast %328 : vector<1x128x128xf32> to vector<128x128xf32>
    %cst_325 = arith.constant dense<0.000000e+00> : vector<64x128xf32>
    %330 = tpu.matmul %327, %329, %cst_325 {dimension_numbers = #tpu.dot_dimension_numbers<[1], [0], [0], [1], [0, 0, 1, 1], [], []>} : vector<64x128xf32>, vector<128x128xf32>, vector<64x128xf32> -> vector<64x128xf32>
    %331 = arith.addf %325, %330 : vector<64x128xf32>
    %c0_326 = arith.constant 0 : index
    %c3_327 = arith.constant 3 : index
    %c1_328 = arith.constant 1 : index
    %c0_329 = arith.constant 0 : index
    %332 = vector.load %arg11[%c0_326, %c3_327, %c1_328, %c0_329] : memref<1x12x12x128xf32, #tpu.memory_space<vmem>>, vector<1x8x8x128xf32>
    %333 = vector.shape_cast %332 : vector<1x8x8x128xf32> to vector<64x128xf32>
    %c16 = arith.constant 16 : index
    %c0_330 = arith.constant 0 : index
    %c0_331 = arith.constant 0 : index
    %334 = vector.load %arg6[%c16, %c0_330, %c0_331] : memref<25x128x128xf32, #tpu.memory_space<vmem>>, vector<1x128x128xf32>
    %335 = vector.shape_cast %334 : vector<1x128x128xf32> to vector<128x128xf32>
    %cst_332 = arith.constant dense<0.000000e+00> : vector<64x128xf32>
    %336 = tpu.matmul %333, %335, %cst_332 {dimension_numbers = #tpu.dot_dimension_numbers<[1], [0], [0], [1], [0, 0, 1, 1], [], []>} : vector<64x128xf32>, vector<128x128xf32>, vector<64x128xf32> -> vector<64x128xf32>
    %337 = arith.addf %331, %336 : vector<64x128xf32>
    %c0_333 = arith.constant 0 : index
    %c3_334 = arith.constant 3 : index
    %c2_335 = arith.constant 2 : index
    %c0_336 = arith.constant 0 : index
    %338 = vector.load %arg11[%c0_333, %c3_334, %c2_335, %c0_336] : memref<1x12x12x128xf32, #tpu.memory_space<vmem>>, vector<1x8x8x128xf32>
    %339 = vector.shape_cast %338 : vector<1x8x8x128xf32> to vector<64x128xf32>
    %c17 = arith.constant 17 : index
    %c0_337 = arith.constant 0 : index
    %c0_338 = arith.constant 0 : index
    %340 = vector.load %arg6[%c17, %c0_337, %c0_338] : memref<25x128x128xf32, #tpu.memory_space<vmem>>, vector<1x128x128xf32>
    %341 = vector.shape_cast %340 : vector<1x128x128xf32> to vector<128x128xf32>
    %cst_339 = arith.constant dense<0.000000e+00> : vector<64x128xf32>
    %342 = tpu.matmul %339, %341, %cst_339 {dimension_numbers = #tpu.dot_dimension_numbers<[1], [0], [0], [1], [0, 0, 1, 1], [], []>} : vector<64x128xf32>, vector<128x128xf32>, vector<64x128xf32> -> vector<64x128xf32>
    %343 = arith.addf %337, %342 : vector<64x128xf32>
    %c0_340 = arith.constant 0 : index
    %c3_341 = arith.constant 3 : index
    %c3_342 = arith.constant 3 : index
    %c0_343 = arith.constant 0 : index
    %344 = vector.load %arg11[%c0_340, %c3_341, %c3_342, %c0_343] : memref<1x12x12x128xf32, #tpu.memory_space<vmem>>, vector<1x8x8x128xf32>
    %345 = vector.shape_cast %344 : vector<1x8x8x128xf32> to vector<64x128xf32>
    %c18_344 = arith.constant 18 : index
    %c0_345 = arith.constant 0 : index
    %c0_346 = arith.constant 0 : index
    %346 = vector.load %arg6[%c18_344, %c0_345, %c0_346] : memref<25x128x128xf32, #tpu.memory_space<vmem>>, vector<1x128x128xf32>
    %347 = vector.shape_cast %346 : vector<1x128x128xf32> to vector<128x128xf32>
    %cst_347 = arith.constant dense<0.000000e+00> : vector<64x128xf32>
    %348 = tpu.matmul %345, %347, %cst_347 {dimension_numbers = #tpu.dot_dimension_numbers<[1], [0], [0], [1], [0, 0, 1, 1], [], []>} : vector<64x128xf32>, vector<128x128xf32>, vector<64x128xf32> -> vector<64x128xf32>
    %349 = arith.addf %343, %348 : vector<64x128xf32>
    %c0_348 = arith.constant 0 : index
    %c3_349 = arith.constant 3 : index
    %c4_350 = arith.constant 4 : index
    %c0_351 = arith.constant 0 : index
    %350 = vector.load %arg11[%c0_348, %c3_349, %c4_350, %c0_351] : memref<1x12x12x128xf32, #tpu.memory_space<vmem>>, vector<1x8x8x128xf32>
    %351 = vector.shape_cast %350 : vector<1x8x8x128xf32> to vector<64x128xf32>
    %c19 = arith.constant 19 : index
    %c0_352 = arith.constant 0 : index
    %c0_353 = arith.constant 0 : index
    %352 = vector.load %arg6[%c19, %c0_352, %c0_353] : memref<25x128x128xf32, #tpu.memory_space<vmem>>, vector<1x128x128xf32>
    %353 = vector.shape_cast %352 : vector<1x128x128xf32> to vector<128x128xf32>
    %cst_354 = arith.constant dense<0.000000e+00> : vector<64x128xf32>
    %354 = tpu.matmul %351, %353, %cst_354 {dimension_numbers = #tpu.dot_dimension_numbers<[1], [0], [0], [1], [0, 0, 1, 1], [], []>} : vector<64x128xf32>, vector<128x128xf32>, vector<64x128xf32> -> vector<64x128xf32>
    %355 = arith.addf %349, %354 : vector<64x128xf32>
    %c0_355 = arith.constant 0 : index
    %c4_356 = arith.constant 4 : index
    %c0_357 = arith.constant 0 : index
    %c0_358 = arith.constant 0 : index
    %356 = vector.load %arg11[%c0_355, %c4_356, %c0_357, %c0_358] : memref<1x12x12x128xf32, #tpu.memory_space<vmem>>, vector<1x8x8x128xf32>
    %357 = vector.shape_cast %356 : vector<1x8x8x128xf32> to vector<64x128xf32>
    %c20 = arith.constant 20 : index
    %c0_359 = arith.constant 0 : index
    %c0_360 = arith.constant 0 : index
    %358 = vector.load %arg6[%c20, %c0_359, %c0_360] : memref<25x128x128xf32, #tpu.memory_space<vmem>>, vector<1x128x128xf32>
    %359 = vector.shape_cast %358 : vector<1x128x128xf32> to vector<128x128xf32>
    %cst_361 = arith.constant dense<0.000000e+00> : vector<64x128xf32>
    %360 = tpu.matmul %357, %359, %cst_361 {dimension_numbers = #tpu.dot_dimension_numbers<[1], [0], [0], [1], [0, 0, 1, 1], [], []>} : vector<64x128xf32>, vector<128x128xf32>, vector<64x128xf32> -> vector<64x128xf32>
    %361 = arith.addf %355, %360 : vector<64x128xf32>
    %c0_362 = arith.constant 0 : index
    %c4_363 = arith.constant 4 : index
    %c1_364 = arith.constant 1 : index
    %c0_365 = arith.constant 0 : index
    %362 = vector.load %arg11[%c0_362, %c4_363, %c1_364, %c0_365] : memref<1x12x12x128xf32, #tpu.memory_space<vmem>>, vector<1x8x8x128xf32>
    %363 = vector.shape_cast %362 : vector<1x8x8x128xf32> to vector<64x128xf32>
    %c21 = arith.constant 21 : index
    %c0_366 = arith.constant 0 : index
    %c0_367 = arith.constant 0 : index
    %364 = vector.load %arg6[%c21, %c0_366, %c0_367] : memref<25x128x128xf32, #tpu.memory_space<vmem>>, vector<1x128x128xf32>
    %365 = vector.shape_cast %364 : vector<1x128x128xf32> to vector<128x128xf32>
    %cst_368 = arith.constant dense<0.000000e+00> : vector<64x128xf32>
    %366 = tpu.matmul %363, %365, %cst_368 {dimension_numbers = #tpu.dot_dimension_numbers<[1], [0], [0], [1], [0, 0, 1, 1], [], []>} : vector<64x128xf32>, vector<128x128xf32>, vector<64x128xf32> -> vector<64x128xf32>
    %367 = arith.addf %361, %366 : vector<64x128xf32>
    %c0_369 = arith.constant 0 : index
    %c4_370 = arith.constant 4 : index
    %c2_371 = arith.constant 2 : index
    %c0_372 = arith.constant 0 : index
    %368 = vector.load %arg11[%c0_369, %c4_370, %c2_371, %c0_372] : memref<1x12x12x128xf32, #tpu.memory_space<vmem>>, vector<1x8x8x128xf32>
    %369 = vector.shape_cast %368 : vector<1x8x8x128xf32> to vector<64x128xf32>
    %c22 = arith.constant 22 : index
    %c0_373 = arith.constant 0 : index
    %c0_374 = arith.constant 0 : index
    %370 = vector.load %arg6[%c22, %c0_373, %c0_374] : memref<25x128x128xf32, #tpu.memory_space<vmem>>, vector<1x128x128xf32>
    %371 = vector.shape_cast %370 : vector<1x128x128xf32> to vector<128x128xf32>
    %cst_375 = arith.constant dense<0.000000e+00> : vector<64x128xf32>
    %372 = tpu.matmul %369, %371, %cst_375 {dimension_numbers = #tpu.dot_dimension_numbers<[1], [0], [0], [1], [0, 0, 1, 1], [], []>} : vector<64x128xf32>, vector<128x128xf32>, vector<64x128xf32> -> vector<64x128xf32>
    %373 = arith.addf %367, %372 : vector<64x128xf32>
    %c0_376 = arith.constant 0 : index
    %c4_377 = arith.constant 4 : index
    %c3_378 = arith.constant 3 : index
    %c0_379 = arith.constant 0 : index
    %374 = vector.load %arg11[%c0_376, %c4_377, %c3_378, %c0_379] : memref<1x12x12x128xf32, #tpu.memory_space<vmem>>, vector<1x8x8x128xf32>
    %375 = vector.shape_cast %374 : vector<1x8x8x128xf32> to vector<64x128xf32>
    %c23 = arith.constant 23 : index
    %c0_380 = arith.constant 0 : index
    %c0_381 = arith.constant 0 : index
    %376 = vector.load %arg6[%c23, %c0_380, %c0_381] : memref<25x128x128xf32, #tpu.memory_space<vmem>>, vector<1x128x128xf32>
    %377 = vector.shape_cast %376 : vector<1x128x128xf32> to vector<128x128xf32>
    %cst_382 = arith.constant dense<0.000000e+00> : vector<64x128xf32>
    %378 = tpu.matmul %375, %377, %cst_382 {dimension_numbers = #tpu.dot_dimension_numbers<[1], [0], [0], [1], [0, 0, 1, 1], [], []>} : vector<64x128xf32>, vector<128x128xf32>, vector<64x128xf32> -> vector<64x128xf32>
    %379 = arith.addf %373, %378 : vector<64x128xf32>
    %c0_383 = arith.constant 0 : index
    %c4_384 = arith.constant 4 : index
    %c4_385 = arith.constant 4 : index
    %c0_386 = arith.constant 0 : index
    %380 = vector.load %arg11[%c0_383, %c4_384, %c4_385, %c0_386] : memref<1x12x12x128xf32, #tpu.memory_space<vmem>>, vector<1x8x8x128xf32>
    %381 = vector.shape_cast %380 : vector<1x8x8x128xf32> to vector<64x128xf32>
    %c24 = arith.constant 24 : index
    %c0_387 = arith.constant 0 : index
    %c0_388 = arith.constant 0 : index
    %382 = vector.load %arg6[%c24, %c0_387, %c0_388] : memref<25x128x128xf32, #tpu.memory_space<vmem>>, vector<1x128x128xf32>
    %383 = vector.shape_cast %382 : vector<1x128x128xf32> to vector<128x128xf32>
    %cst_389 = arith.constant dense<0.000000e+00> : vector<64x128xf32>
    %384 = tpu.matmul %381, %383, %cst_389 {dimension_numbers = #tpu.dot_dimension_numbers<[1], [0], [0], [1], [0, 0, 1, 1], [], []>} : vector<64x128xf32>, vector<128x128xf32>, vector<64x128xf32> -> vector<64x128xf32>
    %385 = arith.addf %379, %384 : vector<64x128xf32>
    %c0_390 = arith.constant 0 : index
    %c0_391 = arith.constant 0 : index
    %c0_392 = arith.constant 0 : index
    %c0_393 = arith.constant 0 : index
    %386 = vector.load %arg13[%c0_390, %c0_391, %c0_392, %c0_393] : memref<1x8x8x128xf32, #tpu.memory_space<vmem>>, vector<1x8x8x128xf32>
    %387 = vector.shape_cast %386 : vector<1x8x8x128xf32> to vector<64x128xf32>
    %388 = tpu.concatenate %385, %387 in 1 : vector<64x128xf32>, vector<64x128xf32> -> vector<64x256xf32>
    %c0_394 = arith.constant 0 : index
    %c0_395 = arith.constant 0 : index
    %389 = vector.load %arg7[%c0_394, %c0_395] : memref<256x128xf32, #tpu.memory_space<vmem>>, vector<256x128xf32>
    %cst_396 = arith.constant dense<0.000000e+00> : vector<64x128xf32>
    %390 = tpu.matmul %388, %389, %cst_396 {dimension_numbers = #tpu.dot_dimension_numbers<[1], [0], [0], [1], [0, 0, 1, 1], [], []>} : vector<64x256xf32>, vector<256x128xf32>, vector<64x128xf32> -> vector<64x128xf32>
    %c0_397 = arith.constant 0 : index
    %c0_398 = arith.constant 0 : index
    %391 = vector.load %arg8[%c0_397, %c0_398] : memref<1x128xf32, #tpu.memory_space<vmem>>, vector<1x128xf32>
    %392 = vector.broadcast %391 : vector<1x128xf32> to vector<64x128xf32>
    %393 = arith.addf %390, %392 : vector<64x128xf32>
    %cst_399 = arith.constant 0.000000e+00 : f32
    %394 = vector.broadcast %cst_399 : f32 to vector<64x128xf32>
    %395 = arith.subf %394, %393 : vector<64x128xf32>
    %cst_400 = arith.constant 6.000000e+01 : f32
    %396 = vector.broadcast %cst_400 : f32 to vector<64x128xf32>
    %397 = arith.minimumf %395, %396 : vector<64x128xf32>
    %398 = math.exp %397 : vector<64x128xf32>
    %cst_401 = arith.constant 1.000000e+00 : f32
    %399 = vector.broadcast %cst_401 : f32 to vector<64x128xf32>
    %400 = arith.addf %399, %398 : vector<64x128xf32>
    %401 = tpu.reciprocal %400 {approx = true} : vector<64x128xf32> -> vector<64x128xf32>
    %402 = arith.mulf %400, %401 : vector<64x128xf32>
    %cst_402 = arith.constant 2.000000e+00 : f32
    %403 = vector.broadcast %cst_402 : f32 to vector<64x128xf32>
    %404 = arith.subf %403, %402 : vector<64x128xf32>
    %405 = arith.mulf %401, %404 : vector<64x128xf32>
    %406 = arith.mulf %393, %405 : vector<64x128xf32>
    %407 = vector.shape_cast %406 : vector<64x128xf32> to vector<1x64x128xf32>
    %c0_403 = arith.constant 0 : index
    %c0_404 = arith.constant 0 : index
    %c0_405 = arith.constant 0 : index
    %408 = vector.load %arg9[%c0_403, %c0_404, %c0_405] : memref<1x64x128xf32, #tpu.memory_space<vmem>>, vector<1x64x128xf32>
    tpu.vector_store %arg9[%c0_403, %c0_404, %c0_405], %407 {strides = array<i32>} : memref<1x64x128xf32, #tpu.memory_space<vmem>>, vector<1x64x128xf32>,
    return
  }
  func.func @transform_0(%arg0: i32) -> (i32, i32, i32, i32) {
    %c0_i32 = arith.constant 0 : i32
    %c0_i32_0 = arith.constant 0 : i32
    %c0_i32_1 = arith.constant 0 : i32
    %c0_i32_2 = arith.constant 0 : i32
    return %arg0, %c0_i32, %c0_i32_0, %c0_i32_1 : i32, i32, i32, i32
  }
  func.func @transform_1(%arg0: i32) -> (i32, i32) {
    %c0_i32 = arith.constant 0 : i32
    %c0_i32_0 = arith.constant 0 : i32
    %c0_i32_1 = arith.constant 0 : i32
    return %c0_i32, %c0_i32_0 : i32, i32
  }
  func.func @transform_2(%arg0: i32) -> (i32, i32) {
    %c0_i32 = arith.constant 0 : i32
    %c0_i32_0 = arith.constant 0 : i32
    %c0_i32_1 = arith.constant 0 : i32
    return %c0_i32, %c0_i32_0 : i32, i32
  }
  func.func @transform_3(%arg0: i32) -> (i32, i32) {
    %c0_i32 = arith.constant 0 : i32
    %c0_i32_0 = arith.constant 0 : i32
    %c0_i32_1 = arith.constant 0 : i32
    return %c0_i32, %c0_i32_0 : i32, i32
  }
  func.func @transform_4(%arg0: i32) -> (i32, i32) {
    %c0_i32 = arith.constant 0 : i32
    %c0_i32_0 = arith.constant 0 : i32
    %c0_i32_1 = arith.constant 0 : i32
    return %c0_i32, %c0_i32_0 : i32, i32
  }
  func.func @transform_5(%arg0: i32) -> (i32, i32, i32) {
    %c0_i32 = arith.constant 0 : i32
    %c0_i32_0 = arith.constant 0 : i32
    %c0_i32_1 = arith.constant 0 : i32
    %c0_i32_2 = arith.constant 0 : i32
    return %c0_i32, %c0_i32_0, %c0_i32_1 : i32, i32, i32
  }
  func.func @transform_6(%arg0: i32) -> (i32, i32) {
    %c0_i32 = arith.constant 0 : i32
    %c0_i32_0 = arith.constant 0 : i32
    %c0_i32_1 = arith.constant 0 : i32
    return %c0_i32, %c0_i32_0 : i32, i32
  }
  func.func @transform_7(%arg0: i32) -> (i32, i32) {
    %c0_i32 = arith.constant 0 : i32
    %c0_i32_0 = arith.constant 0 : i32
    %c0_i32_1 = arith.constant 0 : i32
    return %c0_i32, %c0_i32_0 : i32, i32
  }
  func.func @transform_8(%arg0: i32) -> (i32, i32, i32) {
    %c0_i32 = arith.constant 0 : i32
    %c0_i32_0 = arith.constant 0 : i32
    %c0_i32_1 = arith.constant 0 : i32
    return %arg0, %c0_i32, %c0_i32_0 : i32, i32, i32
  }
}

</mosaic_0001>

<llo_original>
// kernel: tpu_custom_call.1
$region0: #{tpu_custom_call.1}
  #allocation0 [shape = 'u32[]', space=smem, size = 0x4, offset = 0x4, fixed_abs, tag = 'smem constant byte address 0x4 - core index']
  #allocation1 [shape = 'u32[72,128]{1,0:T(1,128)}', space=vmem, size = 0x9000, scoped, tag = 'internal scratch']
  #allocation2 [shape = 'f32[1,20,20,128]{3,2,1,0:T(8,128)}', space=vmem, size = 0x3c000, scoped, tag = 'scratch operand']
  #allocation3 [shape = 'f32[1,12,12,128]{3,2,1,0:T(8,128)}', space=vmem, size = 0x18000, scoped, tag = 'scratch operand']
  #allocation4 [shape = 'f32[1,8,20,128]{3,2,1,0:T(8,128)}', space=vmem, size = 0x18000, scoped, tag = 'scratch operand']
  #allocation5 [shape = 'f32[1,8,8,128]{3,2,1,0:T(8,128)}', space=vmem, size = 0x8000, scoped, tag = 'scratch operand']
  %s0 = inlined_call_operand.vmem [shape: f32[2,16,16,4], index: 0, kind: input, shape index: {}]
  %s1 = inlined_call_operand.hbm [shape: f32[25,128], index: 1, kind: input, shape index: {}]
  %s2 = inlined_call_operand.hbm [shape: f32[1,128], index: 2, kind: input, shape index: {}]
  %s3 = inlined_call_operand.hbm [shape: f32[128,128], index: 3, kind: input, shape index: {}]
  %s4 = inlined_call_operand.hbm [shape: f32[1,128], index: 4, kind: input, shape index: {}]
  %s5 = inlined_call_operand.hbm [shape: f32[25,128,128], index: 5, kind: input, shape index: {}]
  %s6 = inlined_call_operand.hbm [shape: f32[256,128], index: 6, kind: input, shape index: {}]
  %s7 = inlined_call_operand.hbm [shape: f32[1,128], index: 7, kind: input, shape index: {}]
  %s8 = inlined_call_operand.hbm [shape: f32[2,64,128], index: 8, kind: output, shape index: {}]
  %s9 = sld [smem:[#allocation0]]
  $region93: #{tpu_custom_call.1} parent=0
    _
  %s11 = ssub.s32 1, %s9
  %s12 = scalar_select 0, %s11, %s9
  $region1: #{tpu_custom_call.1} parent=0
    #allocation6 [shape = 'u8[16384]{0}', space=vmem, size = 0x4000, scoped, tag = 'input window, operand 1, single buffered']
    #allocation7 [shape = 's32[2]{0}', space=sflag, size = 0x8, scoped, tag = 'scoped memory for tpu_custom_call.1']
    #allocation8 [shape = 's32[2]{0}', space=sflag, size = 0x8, scoped, tag = 'scoped memory for tpu_custom_call.1']
    #allocation9 [shape = 'u8[512]{0}', space=vmem, size = 0x400, scoped, tag = 'input window, operand 2, single buffered']
    #allocation10 [shape = 's32[1]{0}', space=sflag, size = 0x4, scoped, tag = 'scoped memory for tpu_custom_call.1']
    #allocation11 [shape = 'u8[65536]{0}', space=vmem, size = 0x10000, scoped, tag = 'input window, operand 3, single buffered']
    #allocation12 [shape = 'u8[512]{0}', space=vmem, size = 0x400, scoped, tag = 'input window, operand 4, single buffered']
    #allocation13 [shape = 's32[1]{0}', space=sflag, size = 0x4, scoped, tag = 'scoped memory for tpu_custom_call.1']
    #allocation14 [shape = 'u8[1638400]{0}', space=vmem, size = 0x190000, scoped, tag = 'input window, operand 5, single buffered']
    #allocation15 [shape = 'u8[131072]{0}', space=vmem, size = 0x20000, scoped, tag = 'input window, operand 6, single buffered']
    #allocation16 [shape = 's32[1]{0}', space=sflag, size = 0x4, scoped, tag = 'scoped memory for tpu_custom_call.1']
    #allocation17 [shape = 'u8[512]{0}', space=vmem, size = 0x400, scoped, tag = 'input window, operand 7, single buffered']
    #allocation18 [shape = 'u8[65536]{0}', space=vmem, size = 0x10000, scoped, tag = 'output window, operand 0']
    %13 = vsyncpa [#allocation7], 0
    %14 = vsyncpa [#allocation10], 0
    %15 = vsyncpa [#allocation13], 0
    %16 = vsyncpa [#allocation16], 0
    %17 = vsyncpa [#allocation8], 0
    %s18 = scalar_lea.sflag [#allocation8], 1
    %19 = vsyncpa %s18, 0
    loop: start=0, step=1, limit=4
    $region2: #{tpu_custom_call.1} parent=1 // loop_pre_header
      _
    $region3: #{tpu_custom_call.1} parent=1 // loop_header
      %s21 = sphi 0, %s25
      %p22 = scmp.ge.s32.totalorder %s21, 4
      %s31 = sphi 0, %s33
      %s34 = sphi 0, %s31
      %s35 = sphi 0, %s34
      %s51 = sphi 0, %s35
      %s55 = sphi 0, %s55
      %s57 = sphi 0, %s55
      %s58 = sphi 0, %s57
      %s72 = sphi 0, %s58
      %s76 = sphi 0, %s76
      %s78 = sphi 0, %s76
      %s79 = sphi 0, %s78
      %s93 = sphi 0, %s79
      %s97 = sphi 0, %s97
      %s99 = sphi 0, %s97
      %s100 = sphi 0, %s99
      %s114 = sphi 0, %s100
      %s118 = sphi 0, %s118
      %s120 = sphi 0, %s118
      %s121 = sphi 0, %s120
      %s135 = sphi 0, %s121
      %s139 = sphi 0, %s139
      %s141 = sphi 0, %s139
      %s142 = sphi 0, %s141
      %s156 = sphi 0, %s142
      %s160 = sphi 0, %s160
      %s162 = sphi 0, %s160
      %s163 = sphi 0, %s162
      %s177 = sphi 0, %s163
      %s181 = sphi 0, %s181
      %s183 = sphi 0, %s181
      %s184 = sphi 0, %s183
      %s198 = sphi 0, %s184
      %s204 = sphi 0, %s206
      %s207 = sphi 0, %s204
      %s208 = sphi 0, %s207
      %s224 = sphi 0, %s208
    $region4: #{tpu_custom_call.1} parent=1 // loop_header_branch
      %24 = sbr.rel (%p22) target = $region8
    $region5: #{tpu_custom_call.1} parent=1 // loop_body
      %s26 = ssub.s32 %s21, 1
      %s27 = ssub.s32 %s21, 2
      %s28 = sadd.s32 %s21, 1
      %s29 = ssub.s32 %s21, %s28
      %p30 = scmp.eq.s32.totalorder %s29, 0
      %s32 = sadd.s32 %s31, 1
      %s33 = scalar_select %p30, %s31, %s32
      %p36 = pneg %p30
      %p37 = scmp.eq.s32.totalorder %s21, 1
      %p38 = por %p36, %p37
      %p39 = scmp.ne.s32.totalorder %s31, %s34
      %p40 = scmp.eq.s32.totalorder %s21, 0
      %p41 = por %p39, %p40
      %p42 = scmp.ne.s32.totalorder %s31, %s34
      %p43 = scmp.eq.s32.totalorder %s26, 1
      %p44 = por %p42, %p43
      %p45 = scmp.ne.s32.totalorder %s34, %s35
      %p46 = scmp.eq.s32.totalorder %s26, 0
      %p47 = por %p45, %p46
      %p48 = scmp.ne.s32.totalorder %s34, %s35
      %p49 = scmp.eq.s32.totalorder %s27, 1
      %p50 = por %p48, %p49
      %p52 = scmp.ne.s32.totalorder %s35, %s51
      %p53 = scmp.eq.s32.totalorder %s27, 0
      %p54 = por %p52, %p53
      %s56 = sadd.s32 %s55, 1
      %p59 = scmp.eq.s32.totalorder %s21, 1
      %p60 = scmp.ne.s32.totalorder %s55, %s57
      %p61 = scmp.eq.s32.totalorder %s21, 0
      %p62 = por %p60, %p61
      %p63 = scmp.ne.s32.totalorder %s55, %s57
      %p64 = scmp.eq.s32.totalorder %s26, 1
      %p65 = por %p63, %p64
      %p66 = scmp.ne.s32.totalorder %s57, %s58
      %p67 = scmp.eq.s32.totalorder %s26, 0
      %p68 = por %p66, %p67
      %p69 = scmp.ne.s32.totalorder %s57, %s58
      %p70 = scmp.eq.s32.totalorder %s27, 1
      %p71 = por %p69, %p70
      %p73 = scmp.ne.s32.totalorder %s58, %s72
      %p74 = scmp.eq.s32.totalorder %s27, 0
      %p75 = por %p73, %p74
      %s77 = sadd.s32 %s76, 1
      %p80 = scmp.eq.s32.totalorder %s21, 1
      %p81 = scmp.ne.s32.totalorder %s76, %s78
      %p82 = scmp.eq.s32.totalorder %s21, 0
      %p83 = por %p81, %p82
      %p84 = scmp.ne.s32.totalorder %s76, %s78
      %p85 = scmp.eq.s32.totalorder %s26, 1
      %p86 = por %p84, %p85
      %p87 = scmp.ne.s32.totalorder %s78, %s79
      %p88 = scmp.eq.s32.totalorder %s26, 0
      %p89 = por %p87, %p88
      %p90 = scmp.ne.s32.totalorder %s78, %s79
      %p91 = scmp.eq.s32.totalorder %s27, 1
      %p92 = por %p90, %p91
      %p94 = scmp.ne.s32.totalorder %s79, %s93
      %p95 = scmp.eq.s32.totalorder %s27, 0
      %p96 = por %p94, %p95
      %s98 = sadd.s32 %s97, 1
      %p101 = scmp.eq.s32.totalorder %s21, 1
      %p102 = scmp.ne.s32.totalorder %s97, %s99
      %p103 = scmp.eq.s32.totalorder %s21, 0
      %p104 = por %p102, %p103
      %p105 = scmp.ne.s32.totalorder %s97, %s99
      %p106 = scmp.eq.s32.totalorder %s26, 1
      %p107 = por %p105, %p106
      %p108 = scmp.ne.s32.totalorder %s99, %s100
      %p109 = scmp.eq.s32.totalorder %s26, 0
      %p110 = por %p108, %p109
      %p111 = scmp.ne.s32.totalorder %s99, %s100
      %p112 = scmp.eq.s32.totalorder %s27, 1
      %p113 = por %p111, %p112
      %p115 = scmp.ne.s32.totalorder %s100, %s114
      %p116 = scmp.eq.s32.totalorder %s27, 0
      %p117 = por %p115, %p116
      %s119 = sadd.s32 %s118, 1
      %p122 = scmp.eq.s32.totalorder %s21, 1
      %p123 = scmp.ne.s32.totalorder %s118, %s120
      %p124 = scmp.eq.s32.totalorder %s21, 0
      %p125 = por %p123, %p124
      %p126 = scmp.ne.s32.totalorder %s118, %s120
      %p127 = scmp.eq.s32.totalorder %s26, 1
      %p128 = por %p126, %p127
      %p129 = scmp.ne.s32.totalorder %s120, %s121
      %p130 = scmp.eq.s32.totalorder %s26, 0
      %p131 = por %p129, %p130
      %p132 = scmp.ne.s32.totalorder %s120, %s121
      %p133 = scmp.eq.s32.totalorder %s27, 1
      %p134 = por %p132, %p133
      %p136 = scmp.ne.s32.totalorder %s121, %s135
      %p137 = scmp.eq.s32.totalorder %s27, 0
      %p138 = por %p136, %p137
      %s140 = sadd.s32 %s139, 1
      %p143 = scmp.eq.s32.totalorder %s21, 1
      %p144 = scmp.ne.s32.totalorder %s139, %s141
      %p145 = scmp.eq.s32.totalorder %s21, 0
      %p146 = por %p144, %p145
      %p147 = scmp.ne.s32.totalorder %s139, %s141
      %p148 = scmp.eq.s32.totalorder %s26, 1
      %p149 = por %p147, %p148
      %p150 = scmp.ne.s32.totalorder %s141, %s142
      %p151 = scmp.eq.s32.totalorder %s26, 0
      %p152 = por %p150, %p151
      %p153 = scmp.ne.s32.totalorder %s141, %s142
      %p154 = scmp.eq.s32.totalorder %s27, 1
      %p155 = por %p153, %p154
      %p157 = scmp.ne.s32.totalorder %s142, %s156
      %p158 = scmp.eq.s32.totalorder %s27, 0
      %p159 = por %p157, %p158
      %s161 = sadd.s32 %s160, 1
      %p164 = scmp.eq.s32.totalorder %s21, 1
      %p165 = scmp.ne.s32.totalorder %s160, %s162
      %p166 = scmp.eq.s32.totalorder %s21, 0
      %p167 = por %p165, %p166
      %p168 = scmp.ne.s32.totalorder %s160, %s162
      %p169 = scmp.eq.s32.totalorder %s26, 1
      %p170 = por %p168, %p169
      %p171 = scmp.ne.s32.totalorder %s162, %s163
      %p172 = scmp.eq.s32.totalorder %s26, 0
      %p173 = por %p171, %p172
      %p174 = scmp.ne.s32.totalorder %s162, %s163
      %p175 = scmp.eq.s32.totalorder %s27, 1
      %p176 = por %p174, %p175
      %p178 = scmp.ne.s32.totalorder %s163, %s177
      %p179 = scmp.eq.s32.totalorder %s27, 0
      %p180 = por %p178, %p179
      %s182 = sadd.s32 %s181, 1
      %p185 = scmp.eq.s32.totalorder %s21, 1
      %p186 = scmp.ne.s32.totalorder %s181, %s183
      %p187 = scmp.eq.s32.totalorder %s21, 0
      %p188 = por %p186, %p187
      %p189 = scmp.ne.s32.totalorder %s181, %s183
      %p190 = scmp.eq.s32.totalorder %s26, 1
      %p191 = por %p189, %p190
      %p192 = scmp.ne.s32.totalorder %s183, %s184
      %p193 = scmp.eq.s32.totalorder %s26, 0
      %p194 = por %p192, %p193
      %p195 = scmp.ne.s32.totalorder %s183, %s184
      %p196 = scmp.eq.s32.totalorder %s27, 1
      %p197 = por %p195, %p196
      %p199 = scmp.ne.s32.totalorder %s184, %s198
      %p200 = scmp.eq.s32.totalorder %s27, 0
      %p201 = por %p199, %p200
      %s202 = ssub.s32 %s21, %s28
      %p203 = scmp.eq.s32.totalorder %s202, 0
      %s205 = sadd.s32 %s204, 1
      %s206 = scalar_select %p203, %s204, %s205
      %p209 = pneg %p203
      %p210 = scmp.eq.s32.totalorder %s21, 1
      %p211 = por %p209, %p210
      %p212 = scmp.ne.s32.totalorder %s204, %s207
      %p213 = scmp.eq.s32.totalorder %s21, 0
      %p214 = por %p212, %p213
      %p215 = scmp.ne.s32.totalorder %s204, %s207
      %p216 = scmp.eq.s32.totalorder %s26, 1
      %p217 = por %p215, %p216
      %p218 = scmp.ne.s32.totalorder %s207, %s208
      %p219 = scmp.eq.s32.totalorder %s26, 0
      %p220 = por %p218, %p219
      %p221 = scmp.ne.s32.totalorder %s207, %s208
      %p222 = scmp.eq.s32.totalorder %s27, 1
      %p223 = por %p221, %p222
      %p225 = scmp.ne.s32.totalorder %s208, %s224
      %p226 = scmp.eq.s32.totalorder %s27, 0
      %p227 = por %p225, %p226
      %p228 = scmp.le.s32.totalorder 1, %s21
      %p229 = scmp.lt.s32.totalorder %s21, 3
      %p230 = pnand %p228, %p229
      %p231 = pneg %p230
      // Predicated region
      $region9: #{tpu_custom_call.1} parent=5 // pred_check
        _
      $region10: #{tpu_custom_call.1} parent=5 // pred_check_branch
        %233 = sbr.rel (%p230) target = $region12
      $region11: #{tpu_custom_call.1} parent=5 // pred_region
        %s234 = ssub.s32 %s21, 1
        // Predicated region
        $region13: #{tpu_custom_call.1} parent=11 // pred_check
          %p235 = pneg %p68
        $region14: #{tpu_custom_call.1} parent=11 // pred_check_branch
          %237 = sbr.rel (%p235) target = $region16
        $region15: #{tpu_custom_call.1} parent=11 // pred_region
          %239 = vsyncadd [#allocation7], 0
          %s240 = sshll.u32 %s1, 4
          %s241 = int_to_ptr.hbm [resolvable:$true] %s240
          %s242 = sshll.u32 [#allocation6], 4
          %s243 = int_to_ptr.vmem [resolvable:$true] %s242
          %248 = dma.hbm_to_vmem [thread:$0]  %s241, 512, %s243, [#allocation7], 128, 128, 8
        $region16: #{tpu_custom_call.1} parent=11 // pred_fallthru
          _
        // Predicated region
        $region17: #{tpu_custom_call.1} parent=11 // pred_check
          %p249 = pneg %p89
        $region18: #{tpu_custom_call.1} parent=11 // pred_check_branch
          %251 = sbr.rel (%p249) target = $region20
        $region19: #{tpu_custom_call.1} parent=11 // pred_region
          %253 = vsyncadd [#allocation10], 0
          %s255 = sshll.u32 %s2, 4
          %s256 = int_to_ptr.hbm [resolvable:$true] %s255
          %s257 = sshll.u32 [#allocation9], 4
          %s258 = int_to_ptr.vmem [resolvable:$true] %s257
          %260 = dma.hbm_to_vmem [thread:$0]  %s256, 16, %s258, [#allocation10]
        $region20: #{tpu_custom_call.1} parent=11 // pred_fallthru
          _
        // Predicated region
        $region21: #{tpu_custom_call.1} parent=11 // pred_check
          %p261 = pneg %p110
        $region22: #{tpu_custom_call.1} parent=11 // pred_check_branch
          %263 = sbr.rel (%p261) target = $region24
        $region23: #{tpu_custom_call.1} parent=11 // pred_region
          %265 = vsyncadd [#allocation10], 0
          %s266 = sshll.u32 %s3, 4
          %s267 = int_to_ptr.hbm [resolvable:$true] %s266
          %s268 = sshll.u32 [#allocation11], 4
          %s269 = int_to_ptr.vmem [resolvable:$true] %s268
          %274 = dma.hbm_to_vmem [thread:$0]  %s267, 2048, %s269, [#allocation10], 128, 128, 8
        $region24: #{tpu_custom_call.1} parent=11 // pred_fallthru
          _
        // Predicated region
        $region25: #{tpu_custom_call.1} parent=11 // pred_check
          %p275 = pneg %p131
        $region26: #{tpu_custom_call.1} parent=11 // pred_check_branch
          %277 = sbr.rel (%p275) target = $region28
        $region27: #{tpu_custom_call.1} parent=11 // pred_region
          %279 = vsyncadd [#allocation13], 0
          %s281 = sshll.u32 %s4, 4
          %s282 = int_to_ptr.hbm [resolvable:$true] %s281
          %s283 = sshll.u32 [#allocation12], 4
          %s284 = int_to_ptr.vmem [resolvable:$true] %s283
          %286 = dma.hbm_to_vmem [thread:$0]  %s282, 16, %s284, [#allocation13]
        $region28: #{tpu_custom_call.1} parent=11 // pred_fallthru
          _
        // Predicated region
        $region29: #{tpu_custom_call.1} parent=11 // pred_check
          %p287 = pneg %p152
        $region30: #{tpu_custom_call.1} parent=11 // pred_check_branch
          %289 = sbr.rel (%p287) target = $region32
        $region31: #{tpu_custom_call.1} parent=11 // pred_region
          %291 = vsyncadd [#allocation13], 0
          %s292 = sshll.u32 %s5, 4
          %s293 = int_to_ptr.hbm [resolvable:$true] %s292
          %s294 = sshll.u32 [#allocation14], 4
          %s295 = int_to_ptr.vmem [resolvable:$true] %s294
          %300 = dma.hbm_to_vmem [thread:$0]  %s293, 51200, %s295, [#allocation13], 128, 128, 8
        $region32: #{tpu_custom_call.1} parent=11 // pred_fallthru
          _
        // Predicated region
        $region33: #{tpu_custom_call.1} parent=11 // pred_check
          %p301 = pneg %p173
        $region34: #{tpu_custom_call.1} parent=11 // pred_check_branch
          %303 = sbr.rel (%p301) target = $region36
        $region35: #{tpu_custom_call.1} parent=11 // pred_region
          %305 = vsyncadd [#allocation16], 0
          %s306 = sshll.u32 %s6, 4
          %s307 = int_to_ptr.hbm [resolvable:$true] %s306
          %s308 = sshll.u32 [#allocation15], 4
          %s309 = int_to_ptr.vmem [resolvable:$true] %s308
          %314 = dma.hbm_to_vmem [thread:$0]  %s307, 4096, %s309, [#allocation16], 128, 128, 8
        $region36: #{tpu_custom_call.1} parent=11 // pred_fallthru
          _
        // Predicated region
        $region37: #{tpu_custom_call.1} parent=11 // pred_check
          %p315 = pneg %p194
        $region38: #{tpu_custom_call.1} parent=11 // pred_check_branch
          %317 = sbr.rel (%p315) target = $region40
        $region39: #{tpu_custom_call.1} parent=11 // pred_region
          %319 = vsyncadd [#allocation16], 0
          %s321 = sshll.u32 %s7, 4
          %s322 = int_to_ptr.hbm [resolvable:$true] %s321
          %s323 = sshll.u32 [#allocation17], 4
          %s324 = int_to_ptr.vmem [resolvable:$true] %s323
          %326 = dma.hbm_to_vmem [thread:$0]  %s322, 16, %s324, [#allocation16]
        $region40: #{tpu_custom_call.1} parent=11 // pred_fallthru
          _
      $region12: #{tpu_custom_call.1} parent=5 // pred_fallthru
        _
      %p327 = scmp.lt.s32.totalorder %s21, 2
      // Predicated region
      $region41: #{tpu_custom_call.1} parent=5 // pred_check
        %p328 = pneg %p327
      $region42: #{tpu_custom_call.1} parent=5 // pred_check_branch
        %330 = sbr.rel (%p328) target = $region44
      $region43: #{tpu_custom_call.1} parent=5 // pred_region
        // Predicated region
        $region45: #{tpu_custom_call.1} parent=43 // pred_check
          %p331 = pneg %p41
        $region46: #{tpu_custom_call.1} parent=43 // pred_check_branch
          %333 = sbr.rel (%p331) target = $region48
        $region47: #{tpu_custom_call.1} parent=43 // pred_region
          %p334 = scmp.lt.s32.totalorder %s21, 1
          %s335 = scalar_select %p334, %s21, 1
          %s336 = smul.addr %s335, 32
          %s337 = smul.addr %s336, 8
          %s338 = scalar_lea.vmem %s0, %s337
        $region48: #{tpu_custom_call.1} parent=43 // pred_fallthru
          _
      $region44: #{tpu_custom_call.1} parent=5 // pred_fallthru
        _
      %p339 = scmp.le.s32.totalorder 1, %s21
      %p340 = scmp.lt.s32.totalorder %s21, 3
      %p341 = pnand %p339, %p340
      %p342 = pneg %p341
      // Predicated region
      $region49: #{tpu_custom_call.1} parent=5 // pred_check
        _
      $region50: #{tpu_custom_call.1} parent=5 // pred_check_branch
        %344 = sbr.rel (%p341) target = $region52
      $region51: #{tpu_custom_call.1} parent=5 // pred_region
        %s345 = ssub.s32 %s21, 1
        // Predicated region
        $region53: #{tpu_custom_call.1} parent=51 // pred_check
          %p346 = pneg %p68
        $region54: #{tpu_custom_call.1} parent=51 // pred_check_branch
          %348 = sbr.rel (%p346) target = $region56
        $region55: #{tpu_custom_call.1} parent=51 // pred_region
          %350 = dma.done [#allocation7], 512
        $region56: #{tpu_custom_call.1} parent=51 // pred_fallthru
          _
        // Predicated region
        $region57: #{tpu_custom_call.1} parent=51 // pred_check
          %p351 = pneg %p89
        $region58: #{tpu_custom_call.1} parent=51 // pred_check_branch
          %353 = sbr.rel (%p351) target = $region60
        $region59: #{tpu_custom_call.1} parent=51 // pred_region
          %355 = dma.done [#allocation10], 16
        $region60: #{tpu_custom_call.1} parent=51 // pred_fallthru
          _
        // Predicated region
        $region61: #{tpu_custom_call.1} parent=51 // pred_check
          %p356 = pneg %p110
        $region62: #{tpu_custom_call.1} parent=51 // pred_check_branch
          %358 = sbr.rel (%p356) target = $region64
        $region63: #{tpu_custom_call.1} parent=51 // pred_region
          %360 = dma.done [#allocation10], 2048
        $region64: #{tpu_custom_call.1} parent=51 // pred_fallthru
          _
        // Predicated region
        $region65: #{tpu_custom_call.1} parent=51 // pred_check
          %p361 = pneg %p131
        $region66: #{tpu_custom_call.1} parent=51 // pred_check_branch
          %363 = sbr.rel (%p361) target = $region68
        $region67: #{tpu_custom_call.1} parent=51 // pred_region
          %365 = dma.done [#allocation13], 16
        $region68: #{tpu_custom_call.1} parent=51 // pred_fallthru
          _
        // Predicated region
        $region69: #{tpu_custom_call.1} parent=51 // pred_check
          %p366 = pneg %p152
        $region70: #{tpu_custom_call.1} parent=51 // pred_check_branch
          %368 = sbr.rel (%p366) target = $region72
        $region71: #{tpu_custom_call.1} parent=51 // pred_region
          %370 = dma.done [#allocation13], 51200
        $region72: #{tpu_custom_call.1} parent=51 // pred_fallthru
          _
        // Predicated region
        $region73: #{tpu_custom_call.1} parent=51 // pred_check
          %p371 = pneg %p173
        $region74: #{tpu_custom_call.1} parent=51 // pred_check_branch
          %373 = sbr.rel (%p371) target = $region76
        $region75: #{tpu_custom_call.1} parent=51 // pred_region
          %375 = dma.done [#allocation16], 4096
        $region76: #{tpu_custom_call.1} parent=51 // pred_fallthru
          _
        // Predicated region
        $region77: #{tpu_custom_call.1} parent=51 // pred_check
          %p376 = pneg %p194
        $region78: #{tpu_custom_call.1} parent=51 // pred_check_branch
          %378 = sbr.rel (%p376) target = $region80
        $region79: #{tpu_custom_call.1} parent=51 // pred_region
          %380 = dma.done [#allocation16], 16
        $region80: #{tpu_custom_call.1} parent=51 // pred_fallthru
          _
        %p381 = scmp.lt.s32.totalorder %s26, 1
        %s382 = scalar_select %p381, %s26, 1
        %s383 = smul.addr %s382, 32
        %s384 = smul.addr %s383, 8
        %s385 = scalar_lea.vmem %s0, %s384
        %p386 = pneg %p47
        %p387 = pneg %p44
        %p388 = pneg %p68
        %p389 = pneg %p65
        %p390 = pneg %p89
        %p391 = pneg %p86
        %p392 = pneg %p110
        %p393 = pneg %p107
        %p394 = pneg %p131
        %p395 = pneg %p128
        %p396 = pneg %p152
        %p397 = pneg %p149
        %p398 = pneg %p173
        %p399 = pneg %p170
        %p400 = pneg %p194
        %p401 = pneg %p191
        %p402 = pneg %p220
        %p403 = pneg %p217
        %s404 = sand.u32 %s207, 1
        %s405 = scalar_lea.sflag [#allocation8], %s404
        %s406 = sand.u32 %s207, 1
        %s407 = smul.addr %s406, 64
        %s408 = scalar_lea.vmem [#allocation18], %s407
        %p409 = scmp.lt.s32.totalorder %s26, 1
        %s410 = scalar_select %p409, %s26, 1
        %s411 = smul.addr %s410, 32
        %s412 = smul.addr %s411, 8
        %s413 = scalar_lea.vmem %s0, %s412
        %414 = vst [vmem:[#allocation2] sm:$0xff] 0.0
        %415 = vst [vmem:[#allocation2 + $0x8] sm:$0xff] 0.0
        %416 = vst [vmem:[#allocation2 + $0x10] sm:$0xf] 0.0
        %417 = vst [vmem:[#allocation2 + $0x18] sm:$0xff] 0.0
        %418 = vst [vmem:[#allocation2 + $0x20] sm:$0xff] 0.0
        %419 = vst [vmem:[#allocation2 + $0x28] sm:$0xf] 0.0
        %s420 = scalar_lea.vmem [#allocation2], 432
        %421 = vst [vmem:[%s420] sm:$0xff] 0.0
        %422 = vst [vmem:[%s420 + $0x8] sm:$0xff] 0.0
        %423 = vst [vmem:[%s420 + $0x10] sm:$0xf] 0.0
        %424 = vst [vmem:[%s420 + $0x18] sm:$0xff] 0.0
        %425 = vst [vmem:[%s420 + $0x20] sm:$0xff] 0.0
        %426 = vst [vmem:[%s420 + $0x28] sm:$0xf] 0.0
        %s427 = scalar_lea.vmem [#allocation2], 48
        %428 = vst [vmem:[%s427] sm:$0x3] 0.0
        %429 = vst [vmem:[%s427 + $0x18] sm:$0x3] 0.0
        %430 = vst [vmem:[%s427 + $0x30] sm:$0x3] 0.0
        %431 = vst [vmem:[%s427 + $0x48] sm:$0x3] 0.0
        %432 = vst [vmem:[%s427 + $0x60] sm:$0x3] 0.0
        %433 = vst [vmem:[%s427 + $0x78] sm:$0x3] 0.0
        %434 = vst [vmem:[%s427 + $0x90] sm:$0x3] 0.0
        %435 = vst [vmem:[%s427 + $0xa8] sm:$0x3] 0.0
        %436 = vst [vmem:[%s427 + $0xc0] sm:$0x3] 0.0
        %437 = vst [vmem:[%s427 + $0xd8] sm:$0x3] 0.0
        %438 = vst [vmem:[%s427 + $0xf0] sm:$0x3] 0.0
        %439 = vst [vmem:[%s427 + $0x108] sm:$0x3] 0.0
        %440 = vst [vmem:[%s427 + $0x120] sm:$0x3] 0.0
        %441 = vst [vmem:[%s427 + $0x138] sm:$0x3] 0.0
        %442 = vst [vmem:[%s427 + $0x150] sm:$0x3] 0.0
        %443 = vst [vmem:[%s427 + $0x168] sm:$0x3] 0.0
        %444 = vst [vmem:[%s427 + $0x12] sm:$0x3] 0.0
        %445 = vst [vmem:[%s427 + $0x2a] sm:$0x3] 0.0
        %446 = vst [vmem:[%s427 + $0x42] sm:$0x3] 0.0
        %447 = vst [vmem:[%s427 + $0x5a] sm:$0x3] 0.0
        %448 = vst [vmem:[%s427 + $0x72] sm:$0x3] 0.0
        %449 = vst [vmem:[%s427 + $0x8a] sm:$0x3] 0.0
        %450 = vst [vmem:[%s427 + $0xa2] sm:$0x3] 0.0
        %451 = vst [vmem:[%s427 + $0xba] sm:$0x3] 0.0
        %452 = vst [vmem:[%s427 + $0xd2] sm:$0x3] 0.0
        %453 = vst [vmem:[%s427 + $0xea] sm:$0x3] 0.0
        %454 = vst [vmem:[%s427 + $0x102] sm:$0x3] 0.0
        %455 = vst [vmem:[%s427 + $0x11a] sm:$0x3] 0.0
        %456 = vst [vmem:[%s427 + $0x132] sm:$0x3] 0.0
        %457 = vst [vmem:[%s427 + $0x14a] sm:$0x3] 0.0
        %458 = vst [vmem:[%s427 + $0x162] sm:$0x3] 0.0
        %459 = vst [vmem:[%s427 + $0x17a] sm:$0x3] 0.0
        %v460 = vld [vmem:[%s413] sm:$0xff]
        %v461 = vld [vmem:[%s413 + $0x8] sm:$0xff]
        %v462 = vld [vmem:[%s413 + $0x10] sm:$0xff]
        %v463 = vld [vmem:[%s413 + $0x18] sm:$0xff]
        %v464 = vld [vmem:[%s413 + $0x20] sm:$0xff]
        %v465 = vld [vmem:[%s413 + $0x28] sm:$0xff]
        %v466 = vld [vmem:[%s413 + $0x30] sm:$0xff]
        %v467 = vld [vmem:[%s413 + $0x38] sm:$0xff]
        %v468 = vld [vmem:[%s413 + $0x40] sm:$0xff]
        %v469 = vld [vmem:[%s413 + $0x48] sm:$0xff]
        %v470 = vld [vmem:[%s413 + $0x50] sm:$0xff]
        %v471 = vld [vmem:[%s413 + $0x58] sm:$0xff]
        %v472 = vld [vmem:[%s413 + $0x60] sm:$0xff]
        %v473 = vld [vmem:[%s413 + $0x68] sm:$0xff]
        %v474 = vld [vmem:[%s413 + $0x70] sm:$0xff]
        %v475 = vld [vmem:[%s413 + $0x78] sm:$0xff]
        %v476 = vld [vmem:[%s413 + $0x80] sm:$0xff]
        %v477 = vld [vmem:[%s413 + $0x88] sm:$0xff]
        %v478 = vld [vmem:[%s413 + $0x90] sm:$0xff]
        %v479 = vld [vmem:[%s413 + $0x98] sm:$0xff]
        %v480 = vld [vmem:[%s413 + $0xa0] sm:$0xff]
        %v481 = vld [vmem:[%s413 + $0xa8] sm:$0xff]
        %v482 = vld [vmem:[%s413 + $0xb0] sm:$0xff]
        %v483 = vld [vmem:[%s413 + $0xb8] sm:$0xff]
        %v484 = vld [vmem:[%s413 + $0xc0] sm:$0xff]
        %v485 = vld [vmem:[%s413 + $0xc8] sm:$0xff]
        %v486 = vld [vmem:[%s413 + $0xd0] sm:$0xff]
        %v487 = vld [vmem:[%s413 + $0xd8] sm:$0xff]
        %v488 = vld [vmem:[%s413 + $0xe0] sm:$0xff]
        %v489 = vld [vmem:[%s413 + $0xe8] sm:$0xff]
        %v490 = vld [vmem:[%s413 + $0xf0] sm:$0xff]
        %v491 = vld [vmem:[%s413 + $0xf8] sm:$0xff]
        %vm492 = vcmask 31744
        %493 = vst.msk [vmem:[%s427 + $0x2] sm:$0xff] %vm492, %v460
        %494 = vst.msk [vmem:[%s427 + $0xa] sm:$0xff] %vm492, %v461
        %495 = vst.msk [vmem:[%s427 + $0x1a] sm:$0xff] %vm492, %v462
        %496 = vst.msk [vmem:[%s427 + $0x22] sm:$0xff] %vm492, %v463
        %497 = vst.msk [vmem:[%s427 + $0x32] sm:$0xff] %vm492, %v464
        %498 = vst.msk [vmem:[%s427 + $0x3a] sm:$0xff] %vm492, %v465
        %499 = vst.msk [vmem:[%s427 + $0x4a] sm:$0xff] %vm492, %v466
        %500 = vst.msk [vmem:[%s427 + $0x52] sm:$0xff] %vm492, %v467
        %501 = vst.msk [vmem:[%s427 + $0x62] sm:$0xff] %vm492, %v468
        %502 = vst.msk [vmem:[%s427 + $0x6a] sm:$0xff] %vm492, %v469
        %503 = vst.msk [vmem:[%s427 + $0x7a] sm:$0xff] %vm492, %v470
        %504 = vst.msk [vmem:[%s427 + $0x82] sm:$0xff] %vm492, %v471
        %505 = vst.msk [vmem:[%s427 + $0x92] sm:$0xff] %vm492, %v472
        %506 = vst.msk [vmem:[%s427 + $0x9a] sm:$0xff] %vm492, %v473
        %507 = vst.msk [vmem:[%s427 + $0xaa] sm:$0xff] %vm492, %v474
        %508 = vst.msk [vmem:[%s427 + $0xb2] sm:$0xff] %vm492, %v475
        %509 = vst.msk [vmem:[%s427 + $0xc2] sm:$0xff] %vm492, %v476
        %510 = vst.msk [vmem:[%s427 + $0xca] sm:$0xff] %vm492, %v477
        %511 = vst.msk [vmem:[%s427 + $0xda] sm:$0xff] %vm492, %v478
        %512 = vst.msk [vmem:[%s427 + $0xe2] sm:$0xff] %vm492, %v479
        %513 = vst.msk [vmem:[%s427 + $0xf2] sm:$0xff] %vm492, %v480
        %514 = vst.msk [vmem:[%s427 + $0xfa] sm:$0xff] %vm492, %v481
        %515 = vst.msk [vmem:[%s427 + $0x10a] sm:$0xff] %vm492, %v482
        %516 = vst.msk [vmem:[%s427 + $0x112] sm:$0xff] %vm492, %v483
        %517 = vst.msk [vmem:[%s427 + $0x122] sm:$0xff] %vm492, %v484
        %518 = vst.msk [vmem:[%s427 + $0x12a] sm:$0xff] %vm492, %v485
        %519 = vst.msk [vmem:[%s427 + $0x13a] sm:$0xff] %vm492, %v486
        %520 = vst.msk [vmem:[%s427 + $0x142] sm:$0xff] %vm492, %v487
        %521 = vst.msk [vmem:[%s427 + $0x152] sm:$0xff] %vm492, %v488
        %522 = vst.msk [vmem:[%s427 + $0x15a] sm:$0xff] %vm492, %v489
        %523 = vst.msk [vmem:[%s427 + $0x16a] sm:$0xff] %vm492, %v490
        %524 = vst.msk [vmem:[%s427 + $0x172] sm:$0xff] %vm492, %v491
        %vm525 = vcmask 1047584
        %526 = vst.msk [vmem:[%s427 + $0x2] sm:$0xff] %vm525, 0.0
        %527 = vst.msk [vmem:[%s427 + $0xa] sm:$0xff] %vm525, 0.0
        %528 = vst.msk [vmem:[%s427 + $0x1a] sm:$0xff] %vm525, 0.0
        %529 = vst.msk [vmem:[%s427 + $0x22] sm:$0xff] %vm525, 0.0
        %530 = vst.msk [vmem:[%s427 + $0x32] sm:$0xff] %vm525, 0.0
        %531 = vst.msk [vmem:[%s427 + $0x3a] sm:$0xff] %vm525, 0.0
        %532 = vst.msk [vmem:[%s427 + $0x4a] sm:$0xff] %vm525, 0.0
        %533 = vst.msk [vmem:[%s427 + $0x52] sm:$0xff] %vm525, 0.0
        %534 = vst.msk [vmem:[%s427 + $0x62] sm:$0xff] %vm525, 0.0
        %535 = vst.msk [vmem:[%s427 + $0x6a] sm:$0xff] %vm525, 0.0
        %536 = vst.msk [vmem:[%s427 + $0x7a] sm:$0xff] %vm525, 0.0
        %537 = vst.msk [vmem:[%s427 + $0x82] sm:$0xff] %vm525, 0.0
        %538 = vst.msk [vmem:[%s427 + $0x92] sm:$0xff] %vm525, 0.0
        %539 = vst.msk [vmem:[%s427 + $0x9a] sm:$0xff] %vm525, 0.0
        %540 = vst.msk [vmem:[%s427 + $0xaa] sm:$0xff] %vm525, 0.0
        %541 = vst.msk [vmem:[%s427 + $0xb2] sm:$0xff] %vm525, 0.0
        %542 = vst.msk [vmem:[%s427 + $0xc2] sm:$0xff] %vm525, 0.0
        %543 = vst.msk [vmem:[%s427 + $0xca] sm:$0xff] %vm525, 0.0
        %544 = vst.msk [vmem:[%s427 + $0xda] sm:$0xff] %vm525, 0.0
        %545 = vst.msk [vmem:[%s427 + $0xe2] sm:$0xff] %vm525, 0.0
        %546 = vst.msk [vmem:[%s427 + $0xf2] sm:$0xff] %vm525, 0.0
        %547 = vst.msk [vmem:[%s427 + $0xfa] sm:$0xff] %vm525, 0.0
        %548 = vst.msk [vmem:[%s427 + $0x10a] sm:$0xff] %vm525, 0.0
        %549 = vst.msk [vmem:[%s427 + $0x112] sm:$0xff] %vm525, 0.0
        %550 = vst.msk [vmem:[%s427 + $0x122] sm:$0xff] %vm525, 0.0
        %551 = vst.msk [vmem:[%s427 + $0x12a] sm:$0xff] %vm525, 0.0
        %552 = vst.msk [vmem:[%s427 + $0x13a] sm:$0xff] %vm525, 0.0
        %553 = vst.msk [vmem:[%s427 + $0x142] sm:$0xff] %vm525, 0.0
        %554 = vst.msk [vmem:[%s427 + $0x152] sm:$0xff] %vm525, 0.0
        %555 = vst.msk [vmem:[%s427 + $0x15a] sm:$0xff] %vm525, 0.0
        %556 = vst.msk [vmem:[%s427 + $0x16a] sm:$0xff] %vm525, 0.0
        %557 = vst.msk [vmem:[%s427 + $0x172] sm:$0xff] %vm525, 0.0
        %558 = vst [vmem:[#allocation3] sm:$0xff] 0.0
        %559 = vst [vmem:[#allocation3 + $0x8] sm:$0xf] 0.0
        %560 = vst [vmem:[#allocation3 + $0x10] sm:$0xff] 0.0
        %561 = vst [vmem:[#allocation3 + $0x18] sm:$0xf] 0.0
        %s562 = scalar_lea.vmem [#allocation3], 160
        %563 = vst [vmem:[%s562] sm:$0xff] 0.0
        %564 = vst [vmem:[%s562 + $0x8] sm:$0xf] 0.0
        %565 = vst [vmem:[%s562 + $0x10] sm:$0xff] 0.0
        %566 = vst [vmem:[%s562 + $0x18] sm:$0xf] 0.0
        %s567 = scalar_lea.vmem [#allocation3], 32
        %568 = vst [vmem:[%s567] sm:$0x3] 0.0
        %569 = vst [vmem:[%s567 + $0x10] sm:$0x3] 0.0
        %570 = vst [vmem:[%s567 + $0x20] sm:$0x3] 0.0
        %571 = vst [vmem:[%s567 + $0x30] sm:$0x3] 0.0
        %572 = vst [vmem:[%s567 + $0x40] sm:$0x3] 0.0
        %573 = vst [vmem:[%s567 + $0x50] sm:$0x3] 0.0
        %574 = vst [vmem:[%s567 + $0x60] sm:$0x3] 0.0
        %575 = vst [vmem:[%s567 + $0x70] sm:$0x3] 0.0
        %576 = vst [vmem:[%s567 + $0xa] sm:$0x3] 0.0
        %577 = vst [vmem:[%s567 + $0x1a] sm:$0x3] 0.0
        %578 = vst [vmem:[%s567 + $0x2a] sm:$0x3] 0.0
        %579 = vst [vmem:[%s567 + $0x3a] sm:$0x3] 0.0
        %580 = vst [vmem:[%s567 + $0x4a] sm:$0x3] 0.0
        %581 = vst [vmem:[%s567 + $0x5a] sm:$0x3] 0.0
        %582 = vst [vmem:[%s567 + $0x6a] sm:$0x3] 0.0
        %583 = vst [vmem:[%s567 + $0x7a] sm:$0x3] 0.0
        %v584 = vld [vmem:[#allocation6] sm:$0xff]
        %v585 = vld [vmem:[#allocation6 + $0x8] sm:$0xff]
        %v586 = vld [vmem:[#allocation6 + $0x10] sm:$0xff]
        %v587 = vld [vmem:[#allocation6 + $0x18] sm:$0x1]
        %v588 = vld [vmem:[#allocation2] sm:$0xff]
        %v589 = vld [vmem:[#allocation2 + $0x8] sm:$0xff]
        %v590 = vld [vmem:[#allocation2 + $0x10] sm:$0xf]
        %v591 = vld [vmem:[#allocation2 + $0x30] sm:$0xff]
        %v592 = vld [vmem:[#allocation2 + $0x38] sm:$0xff]
        %v593 = vld [vmem:[#allocation2 + $0x40] sm:$0xf]
        %v594 = vld [vmem:[#allocation2 + $0x60] sm:$0xff]
        %v595 = vld [vmem:[#allocation2 + $0x68] sm:$0xff]
        %v596 = vld [vmem:[#allocation2 + $0x70] sm:$0xf]
        %v597 = vld [vmem:[#allocation2 + $0x90] sm:$0xff]
        %v598 = vld [vmem:[#allocation2 + $0x98] sm:$0xff]
        %v599 = vld [vmem:[#allocation2 + $0xa0] sm:$0xf]
        %v600 = vld [vmem:[#allocation2 + $0xc0] sm:$0xff]
        %v601 = vld [vmem:[#allocation2 + $0xc8] sm:$0xff]
        %v602 = vld [vmem:[#allocation2 + $0xd0] sm:$0xf]
        %v603 = vld [vmem:[#allocation2 + $0xf0] sm:$0xff]
        %v604 = vld [vmem:[#allocation2 + $0xf8] sm:$0xff]
        %v605 = vld [vmem:[#allocation2 + $0x100] sm:$0xf]
        %v606 = vld [vmem:[#allocation2 + $0x120] sm:$0xff]
        %v607 = vld [vmem:[#allocation2 + $0x128] sm:$0xff]
        %v608 = vld [vmem:[#allocation2 + $0x130] sm:$0xf]
        %v609 = vld [vmem:[#allocation2 + $0x150] sm:$0xff]
        %v610 = vld [vmem:[#allocation2 + $0x158] sm:$0xff]
        %v611 = vld [vmem:[#allocation2 + $0x160] sm:$0xf]
        %612 = vst [vmem:[#allocation4] sm:$0xff] %v588
        %613 = vst [vmem:[#allocation4 + $0x8] sm:$0xff] %v589
        %614 = vst [vmem:[#allocation4 + $0x10] sm:$0xf] %v590
        %615 = vst [vmem:[#allocation4 + $0x18] sm:$0xff] %v591
        %616 = vst [vmem:[#allocation4 + $0x20] sm:$0xff] %v592
        %617 = vst [vmem:[#allocation4 + $0x28] sm:$0xf] %v593
        %618 = vst [vmem:[#allocation4 + $0x30] sm:$0xff] %v594
        %619 = vst [vmem:[#allocation4 + $0x38] sm:$0xff] %v595
        %620 = vst [vmem:[#allocation4 + $0x40] sm:$0xf] %v596
        %621 = vst [vmem:[#allocation4 + $0x48] sm:$0xff] %v597
        %622 = vst [vmem:[#allocation4 + $0x50] sm:$0xff] %v598
        %623 = vst [vmem:[#allocation4 + $0x58] sm:$0xf] %v599
        %624 = vst [vmem:[#allocation4 + $0x60] sm:$0xff] %v600
        %625 = vst [vmem:[#allocation4 + $0x68] sm:$0xff] %v601
        %626 = vst [vmem:[#allocation4 + $0x70] sm:$0xf] %v602
        %627 = vst [vmem:[#allocation4 + $0x78] sm:$0xff] %v603
        %628 = vst [vmem:[#allocation4 + $0x80] sm:$0xff] %v604
        %629 = vst [vmem:[#allocation4 + $0x88] sm:$0xf] %v605
        %630 = vst [vmem:[#allocation4 + $0x90] sm:$0xff] %v606
        %631 = vst [vmem:[#allocation4 + $0x98] sm:$0xff] %v607
        %632 = vst [vmem:[#allocation4 + $0xa0] sm:$0xf] %v608
        %633 = vst [vmem:[#allocation4 + $0xa8] sm:$0xff] %v609
        %634 = vst [vmem:[#allocation4 + $0xb0] sm:$0xff] %v610
        %635 = vst [vmem:[#allocation4 + $0xb8] sm:$0xf] %v611
        %v636 = vld [vmem:[#allocation4] ss:$2 sm:$0xff]
        %s637 = scalar_lea.vmem [#allocation4], 24
        %v638 = vld [vmem:[%s637] ss:$2 sm:$0xff]
        %s639 = scalar_lea.vmem [#allocation4], 48
        %v640 = vld [vmem:[%s639] ss:$2 sm:$0xff]
        %s641 = scalar_lea.vmem [#allocation4], 72
        %v642 = vld [vmem:[%s641] ss:$2 sm:$0xff]
        %s643 = scalar_lea.vmem [#allocation4], 96
        %v644 = vld [vmem:[%s643] ss:$2 sm:$0xff]
        %s645 = scalar_lea.vmem [#allocation4], 120
        %v646 = vld [vmem:[%s645] ss:$2 sm:$0xff]
        %s647 = scalar_lea.vmem [#allocation4], 144
        %v648 = vld [vmem:[%s647] ss:$2 sm:$0xff]
        %s649 = scalar_lea.vmem [#allocation4], 168
        %v650 = vld [vmem:[%s649] ss:$2 sm:$0xff]
        %v651 = vperm.slane %v584, 0
        %v652 = vmul.f32 %v636, %v651
        %v653 = vmul.f32 %v638, %v651
        %v654 = vmul.f32 %v640, %v651
        %v655 = vmul.f32 %v642, %v651
        %v656 = vmul.f32 %v644, %v651
        %v657 = vmul.f32 %v646, %v651
        %v658 = vmul.f32 %v648, %v651
        %v659 = vmul.f32 %v650, %v651
        %v660 = vadd.f32 %v652, 0.0
        %v661 = vadd.f32 %v653, 0.0
        %v662 = vadd.f32 %v654, 0.0
        %v663 = vadd.f32 %v655, 0.0
        %v664 = vadd.f32 %v656, 0.0
        %v665 = vadd.f32 %v657, 0.0
        %v666 = vadd.f32 %v658, 0.0
        %v667 = vadd.f32 %v659, 0.0
        %s668 = scalar_lea.vmem [#allocation4], 1
        %v669 = vld [vmem:[%s668] ss:$2 sm:$0xff]
        %s670 = scalar_lea.vmem [#allocation4], 25
        %v671 = vld [vmem:[%s670] ss:$2 sm:$0xff]
        %s672 = scalar_lea.vmem [#allocation4], 49
        %v673 = vld [vmem:[%s672] ss:$2 sm:$0xff]
        %s674 = scalar_lea.vmem [#allocation4], 73
        %v675 = vld [vmem:[%s674] ss:$2 sm:$0xff]
        %s676 = scalar_lea.vmem [#allocation4], 97
        %v677 = vld [vmem:[%s676] ss:$2 sm:$0xff]
        %s678 = scalar_lea.vmem [#allocation4], 121
        %v679 = vld [vmem:[%s678] ss:$2 sm:$0xff]
        %s680 = scalar_lea.vmem [#allocation4], 145
        %v681 = vld [vmem:[%s680] ss:$2 sm:$0xff]
        %s682 = scalar_lea.vmem [#allocation4], 169
        %v683 = vld [vmem:[%s682] ss:$2 sm:$0xff]
        %v684 = vperm.slane %v584, 1
        %v685 = vmul.f32 %v669, %v684
        %v686 = vmul.f32 %v671, %v684
        %v687 = vmul.f32 %v673, %v684
        %v688 = vmul.f32 %v675, %v684
        %v689 = vmul.f32 %v677, %v684
        %v690 = vmul.f32 %v679, %v684
        %v691 = vmul.f32 %v681, %v684
        %v692 = vmul.f32 %v683, %v684
        %v693 = vadd.f32 %v660, %v685
        %v694 = vadd.f32 %v661, %v686
        %v695 = vadd.f32 %v662, %v687
        %v696 = vadd.f32 %v663, %v688
        %v697 = vadd.f32 %v664, %v689
        %v698 = vadd.f32 %v665, %v690
        %v699 = vadd.f32 %v666, %v691
        %v700 = vadd.f32 %v667, %v692
        %s701 = scalar_lea.vmem [#allocation4], 2
        %v702 = vld [vmem:[%s701] ss:$2 sm:$0xff]
        %s703 = scalar_lea.vmem [#allocation4], 26
        %v704 = vld [vmem:[%s703] ss:$2 sm:$0xff]
        %s705 = scalar_lea.vmem [#allocation4], 50
        %v706 = vld [vmem:[%s705] ss:$2 sm:$0xff]
        %s707 = scalar_lea.vmem [#allocation4], 74
        %v708 = vld [vmem:[%s707] ss:$2 sm:$0xff]
        %s709 = scalar_lea.vmem [#allocation4], 98
        %v710 = vld [vmem:[%s709] ss:$2 sm:$0xff]
        %s711 = scalar_lea.vmem [#allocation4], 122
        %v712 = vld [vmem:[%s711] ss:$2 sm:$0xff]
        %s713 = scalar_lea.vmem [#allocation4], 146
        %v714 = vld [vmem:[%s713] ss:$2 sm:$0xff]
        %s715 = scalar_lea.vmem [#allocation4], 170
        %v716 = vld [vmem:[%s715] ss:$2 sm:$0xff]
        %v717 = vperm.slane %v584, 2
        %v718 = vmul.f32 %v702, %v717
        %v719 = vmul.f32 %v704, %v717
        %v720 = vmul.f32 %v706, %v717
        %v721 = vmul.f32 %v708, %v717
        %v722 = vmul.f32 %v710, %v717
        %v723 = vmul.f32 %v712, %v717
        %v724 = vmul.f32 %v714, %v717
        %v725 = vmul.f32 %v716, %v717
        %v726 = vadd.f32 %v693, %v718
        %v727 = vadd.f32 %v694, %v719
        %v728 = vadd.f32 %v695, %v720
        %v729 = vadd.f32 %v696, %v721
        %v730 = vadd.f32 %v697, %v722
        %v731 = vadd.f32 %v698, %v723
        %v732 = vadd.f32 %v699, %v724
        %v733 = vadd.f32 %v700, %v725
        %s734 = scalar_lea.vmem [#allocation4], 3
        %v735 = vld [vmem:[%s734] ss:$2 sm:$0xff]
        %s736 = scalar_lea.vmem [#allocation4], 27
        %v737 = vld [vmem:[%s736] ss:$2 sm:$0xff]
        %s738 = scalar_lea.vmem [#allocation4], 51
        %v739 = vld [vmem:[%s738] ss:$2 sm:$0xff]
        %s740 = scalar_lea.vmem [#allocation4], 75
        %v741 = vld [vmem:[%s740] ss:$2 sm:$0xff]
        %s742 = scalar_lea.vmem [#allocation4], 99
        %v743 = vld [vmem:[%s742] ss:$2 sm:$0xff]
        %s744 = scalar_lea.vmem [#allocation4], 123
        %v745 = vld [vmem:[%s744] ss:$2 sm:$0xff]
        %s746 = scalar_lea.vmem [#allocation4], 147
        %v747 = vld [vmem:[%s746] ss:$2 sm:$0xff]
        %s748 = scalar_lea.vmem [#allocation4], 171
        %v749 = vld [vmem:[%s748] ss:$2 sm:$0xff]
        %v750 = vperm.slane %v584, 3
        %v751 = vmul.f32 %v735, %v750
        %v752 = vmul.f32 %v737, %v750
        %v753 = vmul.f32 %v739, %v750
        %v754 = vmul.f32 %v741, %v750
        %v755 = vmul.f32 %v743, %v750
        %v756 = vmul.f32 %v745, %v750
        %v757 = vmul.f32 %v747, %v750
        %v758 = vmul.f32 %v749, %v750
        %v759 = vadd.f32 %v726, %v751
        %v760 = vadd.f32 %v727, %v752
        %v761 = vadd.f32 %v728, %v753
        %v762 = vadd.f32 %v729, %v754
        %v763 = vadd.f32 %v730, %v755
        %v764 = vadd.f32 %v731, %v756
        %v765 = vadd.f32 %v732, %v757
        %v766 = vadd.f32 %v733, %v758
        %s767 = scalar_lea.vmem [#allocation4], 4
        %v768 = vld [vmem:[%s767] ss:$2 sm:$0xff]
        %s769 = scalar_lea.vmem [#allocation4], 28
        %v770 = vld [vmem:[%s769] ss:$2 sm:$0xff]
        %s771 = scalar_lea.vmem [#allocation4], 52
        %v772 = vld [vmem:[%s771] ss:$2 sm:$0xff]
        %s773 = scalar_lea.vmem [#allocation4], 76
        %v774 = vld [vmem:[%s773] ss:$2 sm:$0xff]
        %s775 = scalar_lea.vmem [#allocation4], 100
        %v776 = vld [vmem:[%s775] ss:$2 sm:$0xff]
        %s777 = scalar_lea.vmem [#allocation4], 124
        %v778 = vld [vmem:[%s777] ss:$2 sm:$0xff]
        %s779 = scalar_lea.vmem [#allocation4], 148
        %v780 = vld [vmem:[%s779] ss:$2 sm:$0xff]
        %s781 = scalar_lea.vmem [#allocation4], 172
        %v782 = vld [vmem:[%s781] ss:$2 sm:$0xff]
        %v783 = vperm.slane %v584, 4
        %v784 = vmul.f32 %v768, %v783
        %v785 = vmul.f32 %v770, %v783
        %v786 = vmul.f32 %v772, %v783
        %v787 = vmul.f32 %v774, %v783
        %v788 = vmul.f32 %v776, %v783
        %v789 = vmul.f32 %v778, %v783
        %v790 = vmul.f32 %v780, %v783
        %v791 = vmul.f32 %v782, %v783
        %v792 = vadd.f32 %v759, %v784
        %v793 = vadd.f32 %v760, %v785
        %v794 = vadd.f32 %v761, %v786
        %v795 = vadd.f32 %v762, %v787
        %v796 = vadd.f32 %v763, %v788
        %v797 = vadd.f32 %v764, %v789
        %v798 = vadd.f32 %v765, %v790
        %v799 = vadd.f32 %v766, %v791
        %s800 = scalar_lea.vmem [#allocation2], 24
        %v801 = vld [vmem:[%s800] sm:$0xff]
        %v802 = vld [vmem:[%s800 + $0x8] sm:$0xff]
        %v803 = vld [vmem:[%s800 + $0x10] sm:$0xf]
        %v804 = vld [vmem:[%s800 + $0x30] sm:$0xff]
        %v805 = vld [vmem:[%s800 + $0x38] sm:$0xff]
        %v806 = vld [vmem:[%s800 + $0x40] sm:$0xf]
        %v807 = vld [vmem:[%s800 + $0x60] sm:$0xff]
        %v808 = vld [vmem:[%s800 + $0x68] sm:$0xff]
        %v809 = vld [vmem:[%s800 + $0x70] sm:$0xf]
        %v810 = vld [vmem:[%s800 + $0x90] sm:$0xff]
        %v811 = vld [vmem:[%s800 + $0x98] sm:$0xff]
        %v812 = vld [vmem:[%s800 + $0xa0] sm:$0xf]
        %v813 = vld [vmem:[%s800 + $0xc0] sm:$0xff]
        %v814 = vld [vmem:[%s800 + $0xc8] sm:$0xff]
        %v815 = vld [vmem:[%s800 + $0xd0] sm:$0xf]
        %v816 = vld [vmem:[%s800 + $0xf0] sm:$0xff]
        %v817 = vld [vmem:[%s800 + $0xf8] sm:$0xff]
        %v818 = vld [vmem:[%s800 + $0x100] sm:$0xf]
        %v819 = vld [vmem:[%s800 + $0x120] sm:$0xff]
        %v820 = vld [vmem:[%s800 + $0x128] sm:$0xff]
        %v821 = vld [vmem:[%s800 + $0x130] sm:$0xf]
        %v822 = vld [vmem:[%s800 + $0x150] sm:$0xff]
        %v823 = vld [vmem:[%s800 + $0x158] sm:$0xff]
        %v824 = vld [vmem:[%s800 + $0x160] sm:$0xf]
        %825 = vst [vmem:[#allocation4] sm:$0xff] %v801
        %826 = vst [vmem:[#allocation4 + $0x8] sm:$0xff] %v802
        %827 = vst [vmem:[#allocation4 + $0x10] sm:$0xf] %v803
        %828 = vst [vmem:[#allocation4 + $0x18] sm:$0xff] %v804
        %829 = vst [vmem:[#allocation4 + $0x20] sm:$0xff] %v805
        %830 = vst [vmem:[#allocation4 + $0x28] sm:$0xf] %v806
        %831 = vst [vmem:[#allocation4 + $0x30] sm:$0xff] %v807
        %832 = vst [vmem:[#allocation4 + $0x38] sm:$0xff] %v808
        %833 = vst [vmem:[#allocation4 + $0x40] sm:$0xf] %v809
        %834 = vst [vmem:[#allocation4 + $0x48] sm:$0xff] %v810
        %835 = vst [vmem:[#allocation4 + $0x50] sm:$0xff] %v811
        %836 = vst [vmem:[#allocation4 + $0x58] sm:$0xf] %v812
        %837 = vst [vmem:[#allocation4 + $0x60] sm:$0xff] %v813
        %838 = vst [vmem:[#allocation4 + $0x68] sm:$0xff] %v814
        %839 = vst [vmem:[#allocation4 + $0x70] sm:$0xf] %v815
        %840 = vst [vmem:[#allocation4 + $0x78] sm:$0xff] %v816
        %841 = vst [vmem:[#allocation4 + $0x80] sm:$0xff] %v817
        %842 = vst [vmem:[#allocation4 + $0x88] sm:$0xf] %v818
        %843 = vst [vmem:[#allocation4 + $0x90] sm:$0xff] %v819
        %844 = vst [vmem:[#allocation4 + $0x98] sm:$0xff] %v820
        %845 = vst [vmem:[#allocation4 + $0xa0] sm:$0xf] %v821
        %846 = vst [vmem:[#allocation4 + $0xa8] sm:$0xff] %v822
        %847 = vst [vmem:[#allocation4 + $0xb0] sm:$0xff] %v823
        %848 = vst [vmem:[#allocation4 + $0xb8] sm:$0xf] %v824
        %v849 = vld [vmem:[#allocation4] ss:$2 sm:$0xff]
        %v850 = vld [vmem:[%s637] ss:$2 sm:$0xff]
        %v851 = vld [vmem:[%s639] ss:$2 sm:$0xff]
        %v852 = vld [vmem:[%s641] ss:$2 sm:$0xff]
        %v853 = vld [vmem:[%s643] ss:$2 sm:$0xff]
        %v854 = vld [vmem:[%s645] ss:$2 sm:$0xff]
        %v855 = vld [vmem:[%s647] ss:$2 sm:$0xff]
        %v856 = vld [vmem:[%s649] ss:$2 sm:$0xff]
        %v857 = vperm.slane %v584, 5
        %v858 = vmul.f32 %v849, %v857
        %v859 = vmul.f32 %v850, %v857
        %v860 = vmul.f32 %v851, %v857
        %v861 = vmul.f32 %v852, %v857
        %v862 = vmul.f32 %v853, %v857
        %v863 = vmul.f32 %v854, %v857
        %v864 = vmul.f32 %v855, %v857
        %v865 = vmul.f32 %v856, %v857
        %v866 = vadd.f32 %v792, %v858
        %v867 = vadd.f32 %v793, %v859
        %v868 = vadd.f32 %v794, %v860
        %v869 = vadd.f32 %v795, %v861
        %v870 = vadd.f32 %v796, %v862
        %v871 = vadd.f32 %v797, %v863
        %v872 = vadd.f32 %v798, %v864
        %v873 = vadd.f32 %v799, %v865
        %v874 = vld [vmem:[%s668] ss:$2 sm:$0xff]
        %v875 = vld [vmem:[%s670] ss:$2 sm:$0xff]
        %v876 = vld [vmem:[%s672] ss:$2 sm:$0xff]
        %v877 = vld [vmem:[%s674] ss:$2 sm:$0xff]
        %v878 = vld [vmem:[%s676] ss:$2 sm:$0xff]
        %v879 = vld [vmem:[%s678] ss:$2 sm:$0xff]
        %v880 = vld [vmem:[%s680] ss:$2 sm:$0xff]
        %v881 = vld [vmem:[%s682] ss:$2 sm:$0xff]
        %v882 = vperm.slane %v584, 6
        %v883 = vmul.f32 %v874, %v882
        %v884 = vmul.f32 %v875, %v882
        %v885 = vmul.f32 %v876, %v882
        %v886 = vmul.f32 %v877, %v882
        %v887 = vmul.f32 %v878, %v882
        %v888 = vmul.f32 %v879, %v882
        %v889 = vmul.f32 %v880, %v882
        %v890 = vmul.f32 %v881, %v882
        %v891 = vadd.f32 %v866, %v883
        %v892 = vadd.f32 %v867, %v884
        %v893 = vadd.f32 %v868, %v885
        %v894 = vadd.f32 %v869, %v886
        %v895 = vadd.f32 %v870, %v887
        %v896 = vadd.f32 %v871, %v888
        %v897 = vadd.f32 %v872, %v889
        %v898 = vadd.f32 %v873, %v890
        %v899 = vld [vmem:[%s701] ss:$2 sm:$0xff]
        %v900 = vld [vmem:[%s703] ss:$2 sm:$0xff]
        %v901 = vld [vmem:[%s705] ss:$2 sm:$0xff]
        %v902 = vld [vmem:[%s707] ss:$2 sm:$0xff]
        %v903 = vld [vmem:[%s709] ss:$2 sm:$0xff]
        %v904 = vld [vmem:[%s711] ss:$2 sm:$0xff]
        %v905 = vld [vmem:[%s713] ss:$2 sm:$0xff]
        %v906 = vld [vmem:[%s715] ss:$2 sm:$0xff]
        %v907 = vperm.slane %v584, 7
        %v908 = vmul.f32 %v899, %v907
        %v909 = vmul.f32 %v900, %v907
        %v910 = vmul.f32 %v901, %v907
        %v911 = vmul.f32 %v902, %v907
        %v912 = vmul.f32 %v903, %v907
        %v913 = vmul.f32 %v904, %v907
        %v914 = vmul.f32 %v905, %v907
        %v915 = vmul.f32 %v906, %v907
        %v916 = vadd.f32 %v891, %v908
        %v917 = vadd.f32 %v892, %v909
        %v918 = vadd.f32 %v893, %v910
        %v919 = vadd.f32 %v894, %v911
        %v920 = vadd.f32 %v895, %v912
        %v921 = vadd.f32 %v896, %v913
        %v922 = vadd.f32 %v897, %v914
        %v923 = vadd.f32 %v898, %v915
        %v924 = vld [vmem:[%s734] ss:$2 sm:$0xff]
        %v925 = vld [vmem:[%s736] ss:$2 sm:$0xff]
        %v926 = vld [vmem:[%s738] ss:$2 sm:$0xff]
        %v927 = vld [vmem:[%s740] ss:$2 sm:$0xff]
        %v928 = vld [vmem:[%s742] ss:$2 sm:$0xff]
        %v929 = vld [vmem:[%s744] ss:$2 sm:$0xff]
        %v930 = vld [vmem:[%s746] ss:$2 sm:$0xff]
        %v931 = vld [vmem:[%s748] ss:$2 sm:$0xff]
        %v932 = vperm.slane %v585, 0
        %v933 = vmul.f32 %v924, %v932
        %v934 = vmul.f32 %v925, %v932
        %v935 = vmul.f32 %v926, %v932
        %v936 = vmul.f32 %v927, %v932
        %v937 = vmul.f32 %v928, %v932
        %v938 = vmul.f32 %v929, %v932
        %v939 = vmul.f32 %v930, %v932
        %v940 = vmul.f32 %v931, %v932
        %v941 = vadd.f32 %v916, %v933
        %v942 = vadd.f32 %v917, %v934
        %v943 = vadd.f32 %v918, %v935
        %v944 = vadd.f32 %v919, %v936
        %v945 = vadd.f32 %v920, %v937
        %v946 = vadd.f32 %v921, %v938
        %v947 = vadd.f32 %v922, %v939
        %v948 = vadd.f32 %v923, %v940
        %v949 = vld [vmem:[%s767] ss:$2 sm:$0xff]
        %v950 = vld [vmem:[%s769] ss:$2 sm:$0xff]
        %v951 = vld [vmem:[%s771] ss:$2 sm:$0xff]
        %v952 = vld [vmem:[%s773] ss:$2 sm:$0xff]
        %v953 = vld [vmem:[%s775] ss:$2 sm:$0xff]
        %v954 = vld [vmem:[%s777] ss:$2 sm:$0xff]
        %v955 = vld [vmem:[%s779] ss:$2 sm:$0xff]
        %v956 = vld [vmem:[%s781] ss:$2 sm:$0xff]
        %v957 = vperm.slane %v585, 1
        %v958 = vmul.f32 %v949, %v957
        %v959 = vmul.f32 %v950, %v957
        %v960 = vmul.f32 %v951, %v957
        %v961 = vmul.f32 %v952, %v957
        %v962 = vmul.f32 %v953, %v957
        %v963 = vmul.f32 %v954, %v957
        %v964 = vmul.f32 %v955, %v957
        %v965 = vmul.f32 %v956, %v957
        %v966 = vadd.f32 %v941, %v958
        %v967 = vadd.f32 %v942, %v959
        %v968 = vadd.f32 %v943, %v960
        %v969 = vadd.f32 %v944, %v961
        %v970 = vadd.f32 %v945, %v962
        %v971 = vadd.f32 %v946, %v963
        %v972 = vadd.f32 %v947, %v964
        %v973 = vadd.f32 %v948, %v965
        %v974 = vld [vmem:[%s427] sm:$0xff]
        %v975 = vld [vmem:[%s427 + $0x8] sm:$0xff]
        %v976 = vld [vmem:[%s427 + $0x10] sm:$0xf]
        %v977 = vld [vmem:[%s427 + $0x30] sm:$0xff]
        %v978 = vld [vmem:[%s427 + $0x38] sm:$0xff]
        %v979 = vld [vmem:[%s427 + $0x40] sm:$0xf]
        %v980 = vld [vmem:[%s427 + $0x60] sm:$0xff]
        %v981 = vld [vmem:[%s427 + $0x68] sm:$0xff]
        %v982 = vld [vmem:[%s427 + $0x70] sm:$0xf]
        %v983 = vld [vmem:[%s427 + $0x90] sm:$0xff]
        %v984 = vld [vmem:[%s427 + $0x98] sm:$0xff]
        %v985 = vld [vmem:[%s427 + $0xa0] sm:$0xf]
        %v986 = vld [vmem:[%s427 + $0xc0] sm:$0xff]
        %v987 = vld [vmem:[%s427 + $0xc8] sm:$0xff]
        %v988 = vld [vmem:[%s427 + $0xd0] sm:$0xf]
        %v989 = vld [vmem:[%s427 + $0xf0] sm:$0xff]
        %v990 = vld [vmem:[%s427 + $0xf8] sm:$0xff]
        %v991 = vld [vmem:[%s427 + $0x100] sm:$0xf]
        %v992 = vld [vmem:[%s427 + $0x120] sm:$0xff]
        %v993 = vld [vmem:[%s427 + $0x128] sm:$0xff]
        %v994 = vld [vmem:[%s427 + $0x130] sm:$0xf]
        %v995 = vld [vmem:[%s427 + $0x150] sm:$0xff]
        %v996 = vld [vmem:[%s427 + $0x158] sm:$0xff]
        %v997 = vld [vmem:[%s427 + $0x160] sm:$0xf]
        %998 = vst [vmem:[#allocation4] sm:$0xff] %v974
        %999 = vst [vmem:[#allocation4 + $0x8] sm:$0xff] %v975
        %1000 = vst [vmem:[#allocation4 + $0x10] sm:$0xf] %v976
        %1001 = vst [vmem:[#allocation4 + $0x18] sm:$0xff] %v977
        %1002 = vst [vmem:[#allocation4 + $0x20] sm:$0xff] %v978
        %1003 = vst [vmem:[#allocation4 + $0x28] sm:$0xf] %v979
        %1004 = vst [vmem:[#allocation4 + $0x30] sm:$0xff] %v980
        %1005 = vst [vmem:[#allocation4 + $0x38] sm:$0xff] %v981
        %1006 = vst [vmem:[#allocation4 + $0x40] sm:$0xf] %v982
        %1007 = vst [vmem:[#allocation4 + $0x48] sm:$0xff] %v983
        %1008 = vst [vmem:[#allocation4 + $0x50] sm:$0xff] %v984
        %1009 = vst [vmem:[#allocation4 + $0x58] sm:$0xf] %v985
        %1010 = vst [vmem:[#allocation4 + $0x60] sm:$0xff] %v986
        %1011 = vst [vmem:[#allocation4 + $0x68] sm:$0xff] %v987
        %1012 = vst [vmem:[#allocation4 + $0x70] sm:$0xf] %v988
        %1013 = vst [vmem:[#allocation4 + $0x78] sm:$0xff] %v989
        %1014 = vst [vmem:[#allocation4 + $0x80] sm:$0xff] %v990
        %1015 = vst [vmem:[#allocation4 + $0x88] sm:$0xf] %v991
        %1016 = vst [vmem:[#allocation4 + $0x90] sm:$0xff] %v992
        %1017 = vst [vmem:[#allocation4 + $0x98] sm:$0xff] %v993
        %1018 = vst [vmem:[#allocation4 + $0xa0] sm:$0xf] %v994
        %1019 = vst [vmem:[#allocation4 + $0xa8] sm:$0xff] %v995
        %1020 = vst [vmem:[#allocation4 + $0xb0] sm:$0xff] %v996
        %1021 = vst [vmem:[#allocation4 + $0xb8] sm:$0xf] %v997
        %v1022 = vld [vmem:[#allocation4] ss:$2 sm:$0xff]
        %v1023 = vld [vmem:[%s637] ss:$2 sm:$0xff]
        %v1024 = vld [vmem:[%s639] ss:$2 sm:$0xff]
        %v1025 = vld [vmem:[%s641] ss:$2 sm:$0xff]
        %v1026 = vld [vmem:[%s643] ss:$2 sm:$0xff]
        %v1027 = vld [vmem:[%s645] ss:$2 sm:$0xff]
        %v1028 = vld [vmem:[%s647] ss:$2 sm:$0xff]
        %v1029 = vld [vmem:[%s649] ss:$2 sm:$0xff]
        %v1030 = vperm.slane %v585, 2
        %v1031 = vmul.f32 %v1022, %v1030
        %v1032 = vmul.f32 %v1023, %v1030
        %v1033 = vmul.f32 %v1024, %v1030
        %v1034 = vmul.f32 %v1025, %v1030
        %v1035 = vmul.f32 %v1026, %v1030
        %v1036 = vmul.f32 %v1027, %v1030
        %v1037 = vmul.f32 %v1028, %v1030
        %v1038 = vmul.f32 %v1029, %v1030
        %v1039 = vadd.f32 %v966, %v1031
        %v1040 = vadd.f32 %v967, %v1032
        %v1041 = vadd.f32 %v968, %v1033
        %v1042 = vadd.f32 %v969, %v1034
        %v1043 = vadd.f32 %v970, %v1035
        %v1044 = vadd.f32 %v971, %v1036
        %v1045 = vadd.f32 %v972, %v1037
        %v1046 = vadd.f32 %v973, %v1038
        %v1047 = vld [vmem:[%s668] ss:$2 sm:$0xff]
        %v1048 = vld [vmem:[%s670] ss:$2 sm:$0xff]
        %v1049 = vld [vmem:[%s672] ss:$2 sm:$0xff]
        %v1050 = vld [vmem:[%s674] ss:$2 sm:$0xff]
        %v1051 = vld [vmem:[%s676] ss:$2 sm:$0xff]
        %v1052 = vld [vmem:[%s678] ss:$2 sm:$0xff]
        %v1053 = vld [vmem:[%s680] ss:$2 sm:$0xff]
        %v1054 = vld [vmem:[%s682] ss:$2 sm:$0xff]
        %v1055 = vperm.slane %v585, 3
        %v1056 = vmul.f32 %v1047, %v1055
        %v1057 = vmul.f32 %v1048, %v1055
        %v1058 = vmul.f32 %v1049, %v1055
        %v1059 = vmul.f32 %v1050, %v1055
        %v1060 = vmul.f32 %v1051, %v1055
        %v1061 = vmul.f32 %v1052, %v1055
        %v1062 = vmul.f32 %v1053, %v1055
        %v1063 = vmul.f32 %v1054, %v1055
        %v1064 = vadd.f32 %v1039, %v1056
        %v1065 = vadd.f32 %v1040, %v1057
        %v1066 = vadd.f32 %v1041, %v1058
        %v1067 = vadd.f32 %v1042, %v1059
        %v1068 = vadd.f32 %v1043, %v1060
        %v1069 = vadd.f32 %v1044, %v1061
        %v1070 = vadd.f32 %v1045, %v1062
        %v1071 = vadd.f32 %v1046, %v1063
        %v1072 = vld [vmem:[%s701] ss:$2 sm:$0xff]
        %v1073 = vld [vmem:[%s703] ss:$2 sm:$0xff]
        %v1074 = vld [vmem:[%s705] ss:$2 sm:$0xff]
        %v1075 = vld [vmem:[%s707] ss:$2 sm:$0xff]
        %v1076 = vld [vmem:[%s709] ss:$2 sm:$0xff]
        %v1077 = vld [vmem:[%s711] ss:$2 sm:$0xff]
        %v1078 = vld [vmem:[%s713] ss:$2 sm:$0xff]
        %v1079 = vld [vmem:[%s715] ss:$2 sm:$0xff]
        %v1080 = vperm.slane %v585, 4
        %v1081 = vmul.f32 %v1072, %v1080
        %v1082 = vmul.f32 %v1073, %v1080
        %v1083 = vmul.f32 %v1074, %v1080
        %v1084 = vmul.f32 %v1075, %v1080
        %v1085 = vmul.f32 %v1076, %v1080
        %v1086 = vmul.f32 %v1077, %v1080
        %v1087 = vmul.f32 %v1078, %v1080
        %v1088 = vmul.f32 %v1079, %v1080
        %v1089 = vadd.f32 %v1064, %v1081
        %v1090 = vadd.f32 %v1065, %v1082
        %v1091 = vadd.f32 %v1066, %v1083
        %v1092 = vadd.f32 %v1067, %v1084
        %v1093 = vadd.f32 %v1068, %v1085
        %v1094 = vadd.f32 %v1069, %v1086
        %v1095 = vadd.f32 %v1070, %v1087
        %v1096 = vadd.f32 %v1071, %v1088
        %v1097 = vld [vmem:[%s734] ss:$2 sm:$0xff]
        %v1098 = vld [vmem:[%s736] ss:$2 sm:$0xff]
        %v1099 = vld [vmem:[%s738] ss:$2 sm:$0xff]
        %v1100 = vld [vmem:[%s740] ss:$2 sm:$0xff]
        %v1101 = vld [vmem:[%s742] ss:$2 sm:$0xff]
        %v1102 = vld [vmem:[%s744] ss:$2 sm:$0xff]
        %v1103 = vld [vmem:[%s746] ss:$2 sm:$0xff]
        %v1104 = vld [vmem:[%s748] ss:$2 sm:$0xff]
        %v1105 = vperm.slane %v585, 5
        %v1106 = vmul.f32 %v1097, %v1105
        %v1107 = vmul.f32 %v1098, %v1105
        %v1108 = vmul.f32 %v1099, %v1105
        %v1109 = vmul.f32 %v1100, %v1105
        %v1110 = vmul.f32 %v1101, %v1105
        %v1111 = vmul.f32 %v1102, %v1105
        %v1112 = vmul.f32 %v1103, %v1105
        %v1113 = vmul.f32 %v1104, %v1105
        %v1114 = vadd.f32 %v1089, %v1106
        %v1115 = vadd.f32 %v1090, %v1107
        %v1116 = vadd.f32 %v1091, %v1108
        %v1117 = vadd.f32 %v1092, %v1109
        %v1118 = vadd.f32 %v1093, %v1110
        %v1119 = vadd.f32 %v1094, %v1111
        %v1120 = vadd.f32 %v1095, %v1112
        %v1121 = vadd.f32 %v1096, %v1113
        %v1122 = vmax.f32 %v1072, %v1097
        %v1123 = vmax.f32 %v1073, %v1098
        %v1124 = vmax.f32 %v1074, %v1099
        %v1125 = vmax.f32 %v1075, %v1100
        %v1126 = vmax.f32 %v1076, %v1101
        %v1127 = vmax.f32 %v1077, %v1102
        %v1128 = vmax.f32 %v1078, %v1103
        %v1129 = vmax.f32 %v1079, %v1104
        %v1130 = vld [vmem:[%s767] ss:$2 sm:$0xff]
        %v1131 = vld [vmem:[%s769] ss:$2 sm:$0xff]
        %v1132 = vld [vmem:[%s771] ss:$2 sm:$0xff]
        %v1133 = vld [vmem:[%s773] ss:$2 sm:$0xff]
        %v1134 = vld [vmem:[%s775] ss:$2 sm:$0xff]
        %v1135 = vld [vmem:[%s777] ss:$2 sm:$0xff]
        %v1136 = vld [vmem:[%s779] ss:$2 sm:$0xff]
        %v1137 = vld [vmem:[%s781] ss:$2 sm:$0xff]
        %v1138 = vperm.slane %v585, 6
        %v1139 = vmul.f32 %v1130, %v1138
        %v1140 = vmul.f32 %v1131, %v1138
        %v1141 = vmul.f32 %v1132, %v1138
        %v1142 = vmul.f32 %v1133, %v1138
        %v1143 = vmul.f32 %v1134, %v1138
        %v1144 = vmul.f32 %v1135, %v1138
        %v1145 = vmul.f32 %v1136, %v1138
        %v1146 = vmul.f32 %v1137, %v1138
        %v1147 = vadd.f32 %v1114, %v1139
        %v1148 = vadd.f32 %v1115, %v1140
        %v1149 = vadd.f32 %v1116, %v1141
        %v1150 = vadd.f32 %v1117, %v1142
        %v1151 = vadd.f32 %v1118, %v1143
        %v1152 = vadd.f32 %v1119, %v1144
        %v1153 = vadd.f32 %v1120, %v1145
        %v1154 = vadd.f32 %v1121, %v1146
        %s1155 = scalar_lea.vmem [#allocation2], 72
        %v1156 = vld [vmem:[%s1155] sm:$0xff]
        %v1157 = vld [vmem:[%s1155 + $0x8] sm:$0xff]
        %v1158 = vld [vmem:[%s1155 + $0x10] sm:$0xf]
        %v1159 = vld [vmem:[%s1155 + $0x30] sm:$0xff]
        %v1160 = vld [vmem:[%s1155 + $0x38] sm:$0xff]
        %v1161 = vld [vmem:[%s1155 + $0x40] sm:$0xf]
        %v1162 = vld [vmem:[%s1155 + $0x60] sm:$0xff]
        %v1163 = vld [vmem:[%s1155 + $0x68] sm:$0xff]
        %v1164 = vld [vmem:[%s1155 + $0x70] sm:$0xf]
        %v1165 = vld [vmem:[%s1155 + $0x90] sm:$0xff]
        %v1166 = vld [vmem:[%s1155 + $0x98] sm:$0xff]
        %v1167 = vld [vmem:[%s1155 + $0xa0] sm:$0xf]
        %v1168 = vld [vmem:[%s1155 + $0xc0] sm:$0xff]
        %v1169 = vld [vmem:[%s1155 + $0xc8] sm:$0xff]
        %v1170 = vld [vmem:[%s1155 + $0xd0] sm:$0xf]
        %v1171 = vld [vmem:[%s1155 + $0xf0] sm:$0xff]
        %v1172 = vld [vmem:[%s1155 + $0xf8] sm:$0xff]
        %v1173 = vld [vmem:[%s1155 + $0x100] sm:$0xf]
        %v1174 = vld [vmem:[%s1155 + $0x120] sm:$0xff]
        %v1175 = vld [vmem:[%s1155 + $0x128] sm:$0xff]
        %v1176 = vld [vmem:[%s1155 + $0x130] sm:$0xf]
        %v1177 = vld [vmem:[%s1155 + $0x150] sm:$0xff]
        %v1178 = vld [vmem:[%s1155 + $0x158] sm:$0xff]
        %v1179 = vld [vmem:[%s1155 + $0x160] sm:$0xf]
        %1180 = vst [vmem:[#allocation4] sm:$0xff] %v1156
        %1181 = vst [vmem:[#allocation4 + $0x8] sm:$0xff] %v1157
        %1182 = vst [vmem:[#allocation4 + $0x10] sm:$0xf] %v1158
        %1183 = vst [vmem:[#allocation4 + $0x18] sm:$0xff] %v1159
        %1184 = vst [vmem:[#allocation4 + $0x20] sm:$0xff] %v1160
        %1185 = vst [vmem:[#allocation4 + $0x28] sm:$0xf] %v1161
        %1186 = vst [vmem:[#allocation4 + $0x30] sm:$0xff] %v1162
        %1187 = vst [vmem:[#allocation4 + $0x38] sm:$0xff] %v1163
        %1188 = vst [vmem:[#allocation4 + $0x40] sm:$0xf] %v1164
        %1189 = vst [vmem:[#allocation4 + $0x48] sm:$0xff] %v1165
        %1190 = vst [vmem:[#allocation4 + $0x50] sm:$0xff] %v1166
        %1191 = vst [vmem:[#allocation4 + $0x58] sm:$0xf] %v1167
        %1192 = vst [vmem:[#allocation4 + $0x60] sm:$0xff] %v1168
        %1193 = vst [vmem:[#allocation4 + $0x68] sm:$0xff] %v1169
        %1194 = vst [vmem:[#allocation4 + $0x70] sm:$0xf] %v1170
        %1195 = vst [vmem:[#allocation4 + $0x78] sm:$0xff] %v1171
        %1196 = vst [vmem:[#allocation4 + $0x80] sm:$0xff] %v1172
        %1197 = vst [vmem:[#allocation4 + $0x88] sm:$0xf] %v1173
        %1198 = vst [vmem:[#allocation4 + $0x90] sm:$0xff] %v1174
        %1199 = vst [vmem:[#allocation4 + $0x98] sm:$0xff] %v1175
        %1200 = vst [vmem:[#allocation4 + $0xa0] sm:$0xf] %v1176
        %1201 = vst [vmem:[#allocation4 + $0xa8] sm:$0xff] %v1177
        %1202 = vst [vmem:[#allocation4 + $0xb0] sm:$0xff] %v1178
        %1203 = vst [vmem:[#allocation4 + $0xb8] sm:$0xf] %v1179
        %v1204 = vld [vmem:[#allocation4] ss:$2 sm:$0xff]
        %v1205 = vld [vmem:[%s637] ss:$2 sm:$0xff]
        %v1206 = vld [vmem:[%s639] ss:$2 sm:$0xff]
        %v1207 = vld [vmem:[%s641] ss:$2 sm:$0xff]
        %v1208 = vld [vmem:[%s643] ss:$2 sm:$0xff]
        %v1209 = vld [vmem:[%s645] ss:$2 sm:$0xff]
        %v1210 = vld [vmem:[%s647] ss:$2 sm:$0xff]
        %v1211 = vld [vmem:[%s649] ss:$2 sm:$0xff]
        %v1212 = vperm.slane %v585, 7
        %v1213 = vmul.f32 %v1204, %v1212
        %v1214 = vmul.f32 %v1205, %v1212
        %v1215 = vmul.f32 %v1206, %v1212
        %v1216 = vmul.f32 %v1207, %v1212
        %v1217 = vmul.f32 %v1208, %v1212
        %v1218 = vmul.f32 %v1209, %v1212
        %v1219 = vmul.f32 %v1210, %v1212
        %v1220 = vmul.f32 %v1211, %v1212
        %v1221 = vadd.f32 %v1147, %v1213
        %v1222 = vadd.f32 %v1148, %v1214
        %v1223 = vadd.f32 %v1149, %v1215
        %v1224 = vadd.f32 %v1150, %v1216
        %v1225 = vadd.f32 %v1151, %v1217
        %v1226 = vadd.f32 %v1152, %v1218
        %v1227 = vadd.f32 %v1153, %v1219
        %v1228 = vadd.f32 %v1154, %v1220
        %v1229 = vld [vmem:[%s668] ss:$2 sm:$0xff]
        %v1230 = vld [vmem:[%s670] ss:$2 sm:$0xff]
        %v1231 = vld [vmem:[%s672] ss:$2 sm:$0xff]
        %v1232 = vld [vmem:[%s674] ss:$2 sm:$0xff]
        %v1233 = vld [vmem:[%s676] ss:$2 sm:$0xff]
        %v1234 = vld [vmem:[%s678] ss:$2 sm:$0xff]
        %v1235 = vld [vmem:[%s680] ss:$2 sm:$0xff]
        %v1236 = vld [vmem:[%s682] ss:$2 sm:$0xff]
        %v1237 = vperm.slane %v586, 0
        %v1238 = vmul.f32 %v1229, %v1237
        %v1239 = vmul.f32 %v1230, %v1237
        %v1240 = vmul.f32 %v1231, %v1237
        %v1241 = vmul.f32 %v1232, %v1237
        %v1242 = vmul.f32 %v1233, %v1237
        %v1243 = vmul.f32 %v1234, %v1237
        %v1244 = vmul.f32 %v1235, %v1237
        %v1245 = vmul.f32 %v1236, %v1237
        %v1246 = vadd.f32 %v1221, %v1238
        %v1247 = vadd.f32 %v1222, %v1239
        %v1248 = vadd.f32 %v1223, %v1240
        %v1249 = vadd.f32 %v1224, %v1241
        %v1250 = vadd.f32 %v1225, %v1242
        %v1251 = vadd.f32 %v1226, %v1243
        %v1252 = vadd.f32 %v1227, %v1244
        %v1253 = vadd.f32 %v1228, %v1245
        %v1254 = vld [vmem:[%s701] ss:$2 sm:$0xff]
        %v1255 = vld [vmem:[%s703] ss:$2 sm:$0xff]
        %v1256 = vld [vmem:[%s705] ss:$2 sm:$0xff]
        %v1257 = vld [vmem:[%s707] ss:$2 sm:$0xff]
        %v1258 = vld [vmem:[%s709] ss:$2 sm:$0xff]
        %v1259 = vld [vmem:[%s711] ss:$2 sm:$0xff]
        %v1260 = vld [vmem:[%s713] ss:$2 sm:$0xff]
        %v1261 = vld [vmem:[%s715] ss:$2 sm:$0xff]
        %v1262 = vperm.slane %v586, 1
        %v1263 = vmul.f32 %v1254, %v1262
        %v1264 = vmul.f32 %v1255, %v1262
        %v1265 = vmul.f32 %v1256, %v1262
        %v1266 = vmul.f32 %v1257, %v1262
        %v1267 = vmul.f32 %v1258, %v1262
        %v1268 = vmul.f32 %v1259, %v1262
        %v1269 = vmul.f32 %v1260, %v1262
        %v1270 = vmul.f32 %v1261, %v1262
        %v1271 = vadd.f32 %v1246, %v1263
        %v1272 = vadd.f32 %v1247, %v1264
        %v1273 = vadd.f32 %v1248, %v1265
        %v1274 = vadd.f32 %v1249, %v1266
        %v1275 = vadd.f32 %v1250, %v1267
        %v1276 = vadd.f32 %v1251, %v1268
        %v1277 = vadd.f32 %v1252, %v1269
        %v1278 = vadd.f32 %v1253, %v1270
        %v1279 = vmax.f32 %v1122, %v1254
        %v1280 = vmax.f32 %v1123, %v1255
        %v1281 = vmax.f32 %v1124, %v1256
        %v1282 = vmax.f32 %v1125, %v1257
        %v1283 = vmax.f32 %v1126, %v1258
        %v1284 = vmax.f32 %v1127, %v1259
        %v1285 = vmax.f32 %v1128, %v1260
        %v1286 = vmax.f32 %v1129, %v1261
        %v1287 = vld [vmem:[%s734] ss:$2 sm:$0xff]
        %v1288 = vld [vmem:[%s736] ss:$2 sm:$0xff]
        %v1289 = vld [vmem:[%s738] ss:$2 sm:$0xff]
        %v1290 = vld [vmem:[%s740] ss:$2 sm:$0xff]
        %v1291 = vld [vmem:[%s742] ss:$2 sm:$0xff]
        %v1292 = vld [vmem:[%s744] ss:$2 sm:$0xff]
        %v1293 = vld [vmem:[%s746] ss:$2 sm:$0xff]
        %v1294 = vld [vmem:[%s748] ss:$2 sm:$0xff]
        %v1295 = vperm.slane %v586, 2
        %v1296 = vmul.f32 %v1287, %v1295
        %v1297 = vmul.f32 %v1288, %v1295
        %v1298 = vmul.f32 %v1289, %v1295
        %v1299 = vmul.f32 %v1290, %v1295
        %v1300 = vmul.f32 %v1291, %v1295
        %v1301 = vmul.f32 %v1292, %v1295
        %v1302 = vmul.f32 %v1293, %v1295
        %v1303 = vmul.f32 %v1294, %v1295
        %v1304 = vadd.f32 %v1271, %v1296
        %v1305 = vadd.f32 %v1272, %v1297
        %v1306 = vadd.f32 %v1273, %v1298
        %v1307 = vadd.f32 %v1274, %v1299
        %v1308 = vadd.f32 %v1275, %v1300
        %v1309 = vadd.f32 %v1276, %v1301
        %v1310 = vadd.f32 %v1277, %v1302
        %v1311 = vadd.f32 %v1278, %v1303
        %v1312 = vmax.f32 %v1279, %v1287
        %v1313 = vmax.f32 %v1280, %v1288
        %v1314 = vmax.f32 %v1281, %v1289
        %v1315 = vmax.f32 %v1282, %v1290
        %v1316 = vmax.f32 %v1283, %v1291
        %v1317 = vmax.f32 %v1284, %v1292
        %v1318 = vmax.f32 %v1285, %v1293
        %v1319 = vmax.f32 %v1286, %v1294
        %v1320 = vld [vmem:[%s767] ss:$2 sm:$0xff]
        %v1321 = vld [vmem:[%s769] ss:$2 sm:$0xff]
        %v1322 = vld [vmem:[%s771] ss:$2 sm:$0xff]
        %v1323 = vld [vmem:[%s773] ss:$2 sm:$0xff]
        %v1324 = vld [vmem:[%s775] ss:$2 sm:$0xff]
        %v1325 = vld [vmem:[%s777] ss:$2 sm:$0xff]
        %v1326 = vld [vmem:[%s779] ss:$2 sm:$0xff]
        %v1327 = vld [vmem:[%s781] ss:$2 sm:$0xff]
        %v1328 = vperm.slane %v586, 3
        %v1329 = vmul.f32 %v1320, %v1328
        %v1330 = vmul.f32 %v1321, %v1328
        %v1331 = vmul.f32 %v1322, %v1328
        %v1332 = vmul.f32 %v1323, %v1328
        %v1333 = vmul.f32 %v1324, %v1328
        %v1334 = vmul.f32 %v1325, %v1328
        %v1335 = vmul.f32 %v1326, %v1328
        %v1336 = vmul.f32 %v1327, %v1328
        %v1337 = vadd.f32 %v1304, %v1329
        %v1338 = vadd.f32 %v1305, %v1330
        %v1339 = vadd.f32 %v1306, %v1331
        %v1340 = vadd.f32 %v1307, %v1332
        %v1341 = vadd.f32 %v1308, %v1333
        %v1342 = vadd.f32 %v1309, %v1334
        %v1343 = vadd.f32 %v1310, %v1335
        %v1344 = vadd.f32 %v1311, %v1336
        %s1345 = scalar_lea.vmem [#allocation2], 96
        %v1346 = vld [vmem:[%s1345] sm:$0xff]
        %v1347 = vld [vmem:[%s1345 + $0x8] sm:$0xff]
        %v1348 = vld [vmem:[%s1345 + $0x10] sm:$0xf]
        %v1349 = vld [vmem:[%s1345 + $0x30] sm:$0xff]
        %v1350 = vld [vmem:[%s1345 + $0x38] sm:$0xff]
        %v1351 = vld [vmem:[%s1345 + $0x40] sm:$0xf]
        %v1352 = vld [vmem:[%s1345 + $0x60] sm:$0xff]
        %v1353 = vld [vmem:[%s1345 + $0x68] sm:$0xff]
        %v1354 = vld [vmem:[%s1345 + $0x70] sm:$0xf]
        %v1355 = vld [vmem:[%s1345 + $0x90] sm:$0xff]
        %v1356 = vld [vmem:[%s1345 + $0x98] sm:$0xff]
        %v1357 = vld [vmem:[%s1345 + $0xa0] sm:$0xf]
        %v1358 = vld [vmem:[%s1345 + $0xc0] sm:$0xff]
        %v1359 = vld [vmem:[%s1345 + $0xc8] sm:$0xff]
        %v1360 = vld [vmem:[%s1345 + $0xd0] sm:$0xf]
        %v1361 = vld [vmem:[%s1345 + $0xf0] sm:$0xff]
        %v1362 = vld [vmem:[%s1345 + $0xf8] sm:$0xff]
        %v1363 = vld [vmem:[%s1345 + $0x100] sm:$0xf]
        %v1364 = vld [vmem:[%s1345 + $0x120] sm:$0xff]
        %v1365 = vld [vmem:[%s1345 + $0x128] sm:$0xff]
        %v1366 = vld [vmem:[%s1345 + $0x130] sm:$0xf]
        %v1367 = vld [vmem:[%s1345 + $0x150] sm:$0xff]
        %v1368 = vld [vmem:[%s1345 + $0x158] sm:$0xff]
        %v1369 = vld [vmem:[%s1345 + $0x160] sm:$0xf]
        %1370 = vst [vmem:[#allocation4] sm:$0xff] %v1346
        %1371 = vst [vmem:[#allocation4 + $0x8] sm:$0xff] %v1347
        %1372 = vst [vmem:[#allocation4 + $0x10] sm:$0xf] %v1348
        %1373 = vst [vmem:[#allocation4 + $0x18] sm:$0xff] %v1349
        %1374 = vst [vmem:[#allocation4 + $0x20] sm:$0xff] %v1350
        %1375 = vst [vmem:[#allocation4 + $0x28] sm:$0xf] %v1351
        %1376 = vst [vmem:[#allocation4 + $0x30] sm:$0xff] %v1352
        %1377 = vst [vmem:[#allocation4 + $0x38] sm:$0xff] %v1353
        %1378 = vst [vmem:[#allocation4 + $0x40] sm:$0xf] %v1354
        %1379 = vst [vmem:[#allocation4 + $0x48] sm:$0xff] %v1355
        %1380 = vst [vmem:[#allocation4 + $0x50] sm:$0xff] %v1356
        %1381 = vst [vmem:[#allocation4 + $0x58] sm:$0xf] %v1357
        %1382 = vst [vmem:[#allocation4 + $0x60] sm:$0xff] %v1358
        %1383 = vst [vmem:[#allocation4 + $0x68] sm:$0xff] %v1359
        %1384 = vst [vmem:[#allocation4 + $0x70] sm:$0xf] %v1360
        %1385 = vst [vmem:[#allocation4 + $0x78] sm:$0xff] %v1361
        %1386 = vst [vmem:[#allocation4 + $0x80] sm:$0xff] %v1362
        %1387 = vst [vmem:[#allocation4 + $0x88] sm:$0xf] %v1363
        %1388 = vst [vmem:[#allocation4 + $0x90] sm:$0xff] %v1364
        %1389 = vst [vmem:[#allocation4 + $0x98] sm:$0xff] %v1365
        %1390 = vst [vmem:[#allocation4 + $0xa0] sm:$0xf] %v1366
        %1391 = vst [vmem:[#allocation4 + $0xa8] sm:$0xff] %v1367
        %1392 = vst [vmem:[#allocation4 + $0xb0] sm:$0xff] %v1368
        %1393 = vst [vmem:[#allocation4 + $0xb8] sm:$0xf] %v1369
        %v1394 = vld [vmem:[#allocation4] ss:$2 sm:$0xff]
        %v1395 = vld [vmem:[%s637] ss:$2 sm:$0xff]
        %v1396 = vld [vmem:[%s639] ss:$2 sm:$0xff]
        %v1397 = vld [vmem:[%s641] ss:$2 sm:$0xff]
        %v1398 = vld [vmem:[%s643] ss:$2 sm:$0xff]
        %v1399 = vld [vmem:[%s645] ss:$2 sm:$0xff]
        %v1400 = vld [vmem:[%s647] ss:$2 sm:$0xff]
        %v1401 = vld [vmem:[%s649] ss:$2 sm:$0xff]
        %v1402 = vperm.slane %v586, 4
        %v1403 = vmul.f32 %v1394, %v1402
        %v1404 = vmul.f32 %v1395, %v1402
        %v1405 = vmul.f32 %v1396, %v1402
        %v1406 = vmul.f32 %v1397, %v1402
        %v1407 = vmul.f32 %v1398, %v1402
        %v1408 = vmul.f32 %v1399, %v1402
        %v1409 = vmul.f32 %v1400, %v1402
        %v1410 = vmul.f32 %v1401, %v1402
        %v1411 = vadd.f32 %v1337, %v1403
        %v1412 = vadd.f32 %v1338, %v1404
        %v1413 = vadd.f32 %v1339, %v1405
        %v1414 = vadd.f32 %v1340, %v1406
        %v1415 = vadd.f32 %v1341, %v1407
        %v1416 = vadd.f32 %v1342, %v1408
        %v1417 = vadd.f32 %v1343, %v1409
        %v1418 = vadd.f32 %v1344, %v1410
        %v1419 = vld [vmem:[%s668] ss:$2 sm:$0xff]
        %v1420 = vld [vmem:[%s670] ss:$2 sm:$0xff]
        %v1421 = vld [vmem:[%s672] ss:$2 sm:$0xff]
        %v1422 = vld [vmem:[%s674] ss:$2 sm:$0xff]
        %v1423 = vld [vmem:[%s676] ss:$2 sm:$0xff]
        %v1424 = vld [vmem:[%s678] ss:$2 sm:$0xff]
        %v1425 = vld [vmem:[%s680] ss:$2 sm:$0xff]
        %v1426 = vld [vmem:[%s682] ss:$2 sm:$0xff]
        %v1427 = vperm.slane %v586, 5
        %v1428 = vmul.f32 %v1419, %v1427
        %v1429 = vmul.f32 %v1420, %v1427
        %v1430 = vmul.f32 %v1421, %v1427
        %v1431 = vmul.f32 %v1422, %v1427
        %v1432 = vmul.f32 %v1423, %v1427
        %v1433 = vmul.f32 %v1424, %v1427
        %v1434 = vmul.f32 %v1425, %v1427
        %v1435 = vmul.f32 %v1426, %v1427
        %v1436 = vadd.f32 %v1411, %v1428
        %v1437 = vadd.f32 %v1412, %v1429
        %v1438 = vadd.f32 %v1413, %v1430
        %v1439 = vadd.f32 %v1414, %v1431
        %v1440 = vadd.f32 %v1415, %v1432
        %v1441 = vadd.f32 %v1416, %v1433
        %v1442 = vadd.f32 %v1417, %v1434
        %v1443 = vadd.f32 %v1418, %v1435
        %v1444 = vld [vmem:[%s701] ss:$2 sm:$0xff]
        %v1445 = vld [vmem:[%s703] ss:$2 sm:$0xff]
        %v1446 = vld [vmem:[%s705] ss:$2 sm:$0xff]
        %v1447 = vld [vmem:[%s707] ss:$2 sm:$0xff]
        %v1448 = vld [vmem:[%s709] ss:$2 sm:$0xff]
        %v1449 = vld [vmem:[%s711] ss:$2 sm:$0xff]
        %v1450 = vld [vmem:[%s713] ss:$2 sm:$0xff]
        %v1451 = vld [vmem:[%s715] ss:$2 sm:$0xff]
        %v1452 = vperm.slane %v586, 6
        %v1453 = vmul.f32 %v1444, %v1452
        %v1454 = vmul.f32 %v1445, %v1452
        %v1455 = vmul.f32 %v1446, %v1452
        %v1456 = vmul.f32 %v1447, %v1452
        %v1457 = vmul.f32 %v1448, %v1452
        %v1458 = vmul.f32 %v1449, %v1452
        %v1459 = vmul.f32 %v1450, %v1452
        %v1460 = vmul.f32 %v1451, %v1452
        %v1461 = vadd.f32 %v1436, %v1453
        %v1462 = vadd.f32 %v1437, %v1454
        %v1463 = vadd.f32 %v1438, %v1455
        %v1464 = vadd.f32 %v1439, %v1456
        %v1465 = vadd.f32 %v1440, %v1457
        %v1466 = vadd.f32 %v1441, %v1458
        %v1467 = vadd.f32 %v1442, %v1459
        %v1468 = vadd.f32 %v1443, %v1460
        %v1469 = vld [vmem:[%s734] ss:$2 sm:$0xff]
        %v1470 = vld [vmem:[%s736] ss:$2 sm:$0xff]
        %v1471 = vld [vmem:[%s738] ss:$2 sm:$0xff]
        %v1472 = vld [vmem:[%s740] ss:$2 sm:$0xff]
        %v1473 = vld [vmem:[%s742] ss:$2 sm:$0xff]
        %v1474 = vld [vmem:[%s744] ss:$2 sm:$0xff]
        %v1475 = vld [vmem:[%s746] ss:$2 sm:$0xff]
        %v1476 = vld [vmem:[%s748] ss:$2 sm:$0xff]
        %v1477 = vperm.slane %v586, 7
        %v1478 = vmul.f32 %v1469, %v1477
        %v1479 = vmul.f32 %v1470, %v1477
        %v1480 = vmul.f32 %v1471, %v1477
        %v1481 = vmul.f32 %v1472, %v1477
        %v1482 = vmul.f32 %v1473, %v1477
        %v1483 = vmul.f32 %v1474, %v1477
        %v1484 = vmul.f32 %v1475, %v1477
        %v1485 = vmul.f32 %v1476, %v1477
        %v1486 = vadd.f32 %v1461, %v1478
        %v1487 = vadd.f32 %v1462, %v1479
        %v1488 = vadd.f32 %v1463, %v1480
        %v1489 = vadd.f32 %v1464, %v1481
        %v1490 = vadd.f32 %v1465, %v1482
        %v1491 = vadd.f32 %v1466, %v1483
        %v1492 = vadd.f32 %v1467, %v1484
        %v1493 = vadd.f32 %v1468, %v1485
        %v1494 = vld [vmem:[%s767] ss:$2 sm:$0xff]
        %v1495 = vld [vmem:[%s769] ss:$2 sm:$0xff]
        %v1496 = vld [vmem:[%s771] ss:$2 sm:$0xff]
        %v1497 = vld [vmem:[%s773] ss:$2 sm:$0xff]
        %v1498 = vld [vmem:[%s775] ss:$2 sm:$0xff]
        %v1499 = vld [vmem:[%s777] ss:$2 sm:$0xff]
        %v1500 = vld [vmem:[%s779] ss:$2 sm:$0xff]
        %v1501 = vld [vmem:[%s781] ss:$2 sm:$0xff]
        %v1502 = vperm.slane %v587, 0
        %v1503 = vmul.f32 %v1494, %v1502
        %v1504 = vmul.f32 %v1495, %v1502
        %v1505 = vmul.f32 %v1496, %v1502
        %v1506 = vmul.f32 %v1497, %v1502
        %v1507 = vmul.f32 %v1498, %v1502
        %v1508 = vmul.f32 %v1499, %v1502
        %v1509 = vmul.f32 %v1500, %v1502
        %v1510 = vmul.f32 %v1501, %v1502
        %v1511 = vadd.f32 %v1486, %v1503
        %v1512 = vadd.f32 %v1487, %v1504
        %v1513 = vadd.f32 %v1488, %v1505
        %v1514 = vadd.f32 %v1489, %v1506
        %v1515 = vadd.f32 %v1490, %v1507
        %v1516 = vadd.f32 %v1491, %v1508
        %v1517 = vadd.f32 %v1492, %v1509
        %v1518 = vadd.f32 %v1493, %v1510
        %v1519 = vld [vmem:[#allocation9] sm:$0x1]
        %v1521 = vperm.slane %v1519, 0
        %v1523 = vadd.f32 %v1511, %v1521
        %v1524 = vadd.f32 %v1512, %v1521
        %v1525 = vadd.f32 %v1513, %v1521
        %v1526 = vadd.f32 %v1514, %v1521
        %v1527 = vadd.f32 %v1515, %v1521
        %v1528 = vadd.f32 %v1516, %v1521
        %v1529 = vadd.f32 %v1517, %v1521
        %v1530 = vadd.f32 %v1518, %v1521
        %v1531 = vld [vmem:[#allocation11] sm:$0xff]
        %v1532 = vld [vmem:[#allocation11 + $0x8] sm:$0xff]
        %v1533 = vld [vmem:[#allocation11 + $0x10] sm:$0xff]
        %v1534 = vld [vmem:[#allocation11 + $0x18] sm:$0xff]
        %v1535 = vld [vmem:[#allocation11 + $0x20] sm:$0xff]
        %v1536 = vld [vmem:[#allocation11 + $0x28] sm:$0xff]
        %v1537 = vld [vmem:[#allocation11 + $0x30] sm:$0xff]
        %v1538 = vld [vmem:[#allocation11 + $0x38] sm:$0xff]
        %v1539 = vld [vmem:[#allocation11 + $0x40] sm:$0xff]
        %v1540 = vld [vmem:[#allocation11 + $0x48] sm:$0xff]
        %v1541 = vld [vmem:[#allocation11 + $0x50] sm:$0xff]
        %v1542 = vld [vmem:[#allocation11 + $0x58] sm:$0xff]
        %v1543 = vld [vmem:[#allocation11 + $0x60] sm:$0xff]
        %v1544 = vld [vmem:[#allocation11 + $0x68] sm:$0xff]
        %v1545 = vld [vmem:[#allocation11 + $0x70] sm:$0xff]
        %v1546 = vld [vmem:[#allocation11 + $0x78] sm:$0xff]
        %v1547 = vld [vmem:[#allocation12] sm:$0x1]
        %v1549 = vperm.slane %v1547, 0
        %1551 = vmatpush.msra.mxu0 %v1546
        %1552 = vmatpush.msra.mxu0 %v1545
        %1553 = vmatpush.msra.mxu0 %v1544
        %1554 = vmatpush.msra.mxu0 %v1543
        %1555 = vmatpush.msra.mxu0 %v1542
        %1556 = vmatpush.msra.mxu0 %v1541
        %1557 = vmatpush.msra.mxu0 %v1540
        %1558 = vmatpush.msra.mxu0 %v1539
        %1559 = vmatpush.msra.mxu0 %v1538
        %1560 = vmatpush.msra.mxu0 %v1537
        %1561 = vmatpush.msra.mxu0 %v1536
        %1562 = vmatpush.msra.mxu0 %v1535
        %1563 = vmatpush.msra.mxu0 %v1534
        %1564 = vmatpush.msra.mxu0 %v1533
        %1565 = vmatpush.msra.mxu0 %v1532
        %1566 = vmatpush.msra.mxu0 %v1531
        %1567 = vmatmul.f32.gmra.mxu0 %v1523
        %v1568 = vpop.f32.mrf.mxu0
        %v1569 = vadd.f32 %v1549, %v1568
        %1570 = vmatmul.f32.gmra.mxu0 %v1524
        %v1571 = vpop.f32.mrf.mxu0
        %v1572 = vadd.f32 %v1549, %v1571
        %1573 = vmatmul.f32.gmra.mxu0 %v1525
        %v1574 = vpop.f32.mrf.mxu0
        %v1575 = vadd.f32 %v1549, %v1574
        %1576 = vmatmul.f32.gmra.mxu0 %v1526
        %v1577 = vpop.f32.mrf.mxu0
        %v1578 = vadd.f32 %v1549, %v1577
        %1579 = vmatmul.f32.gmra.mxu0 %v1527
        %v1580 = vpop.f32.mrf.mxu0
        %v1581 = vadd.f32 %v1549, %v1580
        %1582 = vmatmul.f32.gmra.mxu0 %v1528
        %v1583 = vpop.f32.mrf.mxu0
        %v1584 = vadd.f32 %v1549, %v1583
        %1585 = vmatmul.f32.gmra.mxu0 %v1529
        %v1586 = vpop.f32.mrf.mxu0
        %v1587 = vadd.f32 %v1549, %v1586
        %1588 = vmatmul.f32.gmra.mxu0 %v1530
        %v1589 = vpop.f32.mrf.mxu0
        %v1590 = vadd.f32 %v1549, %v1589
        %1591 = vdwg.mxu0
        %v1592 = vsub.f32 0.0, %v1569
        %v1593 = vsub.f32 0.0, %v1572
        %v1594 = vsub.f32 0.0, %v1575
        %v1595 = vsub.f32 0.0, %v1578
        %v1596 = vsub.f32 0.0, %v1581
        %v1597 = vsub.f32 0.0, %v1584
        %v1598 = vsub.f32 0.0, %v1587
        %v1599 = vsub.f32 0.0, %v1590
        %v1600 = vmin.f32 %v1592, 60.0
        %v1601 = vmin.f32 %v1593, 60.0
        %v1602 = vmin.f32 %v1594, 60.0
        %v1603 = vmin.f32 %v1595, 60.0
        %v1604 = vmin.f32 %v1596, 60.0
        %v1605 = vmin.f32 %v1597, 60.0
        %v1606 = vmin.f32 %v1598, 60.0
        %v1607 = vmin.f32 %v1599, 60.0
        %v1608 = vmul.f32 %v1600, 1.442695
        %v1609 = vpow.pop %v1608
        %v1610 = vmul.f32 %v1601, 1.442695
        %v1611 = vpow.pop %v1610
        %v1612 = vmul.f32 %v1602, 1.442695
        %v1613 = vpow.pop %v1612
        %v1614 = vmul.f32 %v1603, 1.442695
        %v1615 = vpow.pop %v1614
        %v1616 = vmul.f32 %v1604, 1.442695
        %v1617 = vpow.pop %v1616
        %v1618 = vmul.f32 %v1605, 1.442695
        %v1619 = vpow.pop %v1618
        %v1620 = vmul.f32 %v1606, 1.442695
        %v1621 = vpow.pop %v1620
        %v1622 = vmul.f32 %v1607, 1.442695
        %v1623 = vpow.pop %v1622
        %v1624 = vadd.f32 %v1609, 1.0
        %v1625 = vadd.f32 %v1611, 1.0
        %v1626 = vadd.f32 %v1613, 1.0
        %v1627 = vadd.f32 %v1615, 1.0
        %v1628 = vadd.f32 %v1617, 1.0
        %v1629 = vadd.f32 %v1619, 1.0
        %v1630 = vadd.f32 %v1621, 1.0
        %v1631 = vadd.f32 %v1623, 1.0
        %v1632 = vrcp.pop %v1624
        %v1633 = vrcp.pop %v1625
        %v1634 = vrcp.pop %v1626
        %v1635 = vrcp.pop %v1627
        %v1636 = vrcp.pop %v1628
        %v1637 = vrcp.pop %v1629
        %v1638 = vrcp.pop %v1630
        %v1639 = vrcp.pop %v1631
        %v1640 = vmul.f32 %v1624, %v1632
        %v1641 = vmul.f32 %v1625, %v1633
        %v1642 = vmul.f32 %v1626, %v1634
        %v1643 = vmul.f32 %v1627, %v1635
        %v1644 = vmul.f32 %v1628, %v1636
        %v1645 = vmul.f32 %v1629, %v1637
        %v1646 = vmul.f32 %v1630, %v1638
        %v1647 = vmul.f32 %v1631, %v1639
        %v1648 = vsub.f32 2.0, %v1640
        %v1649 = vsub.f32 2.0, %v1641
        %v1650 = vsub.f32 2.0, %v1642
        %v1651 = vsub.f32 2.0, %v1643
        %v1652 = vsub.f32 2.0, %v1644
        %v1653 = vsub.f32 2.0, %v1645
        %v1654 = vsub.f32 2.0, %v1646
        %v1655 = vsub.f32 2.0, %v1647
        %v1656 = vmul.f32 %v1632, %v1648
        %v1657 = vmul.f32 %v1633, %v1649
        %v1658 = vmul.f32 %v1634, %v1650
        %v1659 = vmul.f32 %v1635, %v1651
        %v1660 = vmul.f32 %v1636, %v1652
        %v1661 = vmul.f32 %v1637, %v1653
        %v1662 = vmul.f32 %v1638, %v1654
        %v1663 = vmul.f32 %v1639, %v1655
        %v1664 = vmul.f32 %v1569, %v1656
        %v1665 = vmul.f32 %v1572, %v1657
        %v1666 = vmul.f32 %v1575, %v1658
        %v1667 = vmul.f32 %v1578, %v1659
        %v1668 = vmul.f32 %v1581, %v1660
        %v1669 = vmul.f32 %v1584, %v1661
        %v1670 = vmul.f32 %v1587, %v1662
        %v1671 = vmul.f32 %v1590, %v1663
        %1672 = vst [vmem:[%s567 + $0x2] sm:$0xff] %v1664
        %1673 = vst [vmem:[%s567 + $0x12] sm:$0xff] %v1665
        %1674 = vst [vmem:[%s567 + $0x22] sm:$0xff] %v1666
        %1675 = vst [vmem:[%s567 + $0x32] sm:$0xff] %v1667
        %1676 = vst [vmem:[%s567 + $0x42] sm:$0xff] %v1668
        %1677 = vst [vmem:[%s567 + $0x52] sm:$0xff] %v1669
        %1678 = vst [vmem:[%s567 + $0x62] sm:$0xff] %v1670
        %1679 = vst [vmem:[%s567 + $0x72] sm:$0xff] %v1671
        %1680 = vst [vmem:[#allocation5] sm:$0xff] %v1312
        %1681 = vst [vmem:[#allocation5 + $0x8] sm:$0xff] %v1313
        %1682 = vst [vmem:[#allocation5 + $0x10] sm:$0xff] %v1314
        %1683 = vst [vmem:[#allocation5 + $0x18] sm:$0xff] %v1315
        %1684 = vst [vmem:[#allocation5 + $0x20] sm:$0xff] %v1316
        %1685 = vst [vmem:[#allocation5 + $0x28] sm:$0xff] %v1317
        %1686 = vst [vmem:[#allocation5 + $0x30] sm:$0xff] %v1318
        %1687 = vst [vmem:[#allocation5 + $0x38] sm:$0xff] %v1319
        %v1688 = vld [vmem:[#allocation3] sm:$0xff]
        %v1689 = vld [vmem:[#allocation3 + $0x10] sm:$0xff]
        %v1690 = vld [vmem:[#allocation3 + $0x20] sm:$0xff]
        %v1691 = vld [vmem:[#allocation3 + $0x30] sm:$0xff]
        %v1692 = vld [vmem:[#allocation3 + $0x40] sm:$0xff]
        %v1693 = vld [vmem:[#allocation3 + $0x50] sm:$0xff]
        %v1694 = vld [vmem:[#allocation3 + $0x60] sm:$0xff]
        %v1695 = vld [vmem:[#allocation3 + $0x70] sm:$0xff]
        %v1696 = vld [vmem:[#allocation14] sm:$0xff]
        %v1697 = vld [vmem:[#allocation14 + $0x8] sm:$0xff]
        %v1698 = vld [vmem:[#allocation14 + $0x10] sm:$0xff]
        %v1699 = vld [vmem:[#allocation14 + $0x18] sm:$0xff]
        %v1700 = vld [vmem:[#allocation14 + $0x20] sm:$0xff]
        %v1701 = vld [vmem:[#allocation14 + $0x28] sm:$0xff]
        %v1702 = vld [vmem:[#allocation14 + $0x30] sm:$0xff]
        %v1703 = vld [vmem:[#allocation14 + $0x38] sm:$0xff]
        %v1704 = vld [vmem:[#allocation14 + $0x40] sm:$0xff]
        %v1705 = vld [vmem:[#allocation14 + $0x48] sm:$0xff]
        %v1706 = vld [vmem:[#allocation14 + $0x50] sm:$0xff]
        %v1707 = vld [vmem:[#allocation14 + $0x58] sm:$0xff]
        %v1708 = vld [vmem:[#allocation14 + $0x60] sm:$0xff]
        %v1709 = vld [vmem:[#allocation14 + $0x68] sm:$0xff]
        %v1710 = vld [vmem:[#allocation14 + $0x70] sm:$0xff]
        %v1711 = vld [vmem:[#allocation14 + $0x78] sm:$0xff]
        %v1712 = vld [vmem:[#allocation3 + $0x1] sm:$0xff]
        %v1713 = vld [vmem:[#allocation3 + $0x11] sm:$0xff]
        %v1714 = vld [vmem:[#allocation3 + $0x21] sm:$0xff]
        %v1715 = vld [vmem:[#allocation3 + $0x31] sm:$0xff]
        %v1716 = vld [vmem:[#allocation3 + $0x41] sm:$0xff]
        %v1717 = vld [vmem:[#allocation3 + $0x51] sm:$0xff]
        %v1718 = vld [vmem:[#allocation3 + $0x61] sm:$0xff]
        %v1719 = vld [vmem:[#allocation3 + $0x71] sm:$0xff]
        %s1720 = scalar_lea.vmem [#allocation14], 128
        %v1721 = vld [vmem:[%s1720] sm:$0xff]
        %v1722 = vld [vmem:[%s1720 + $0x8] sm:$0xff]
        %v1723 = vld [vmem:[%s1720 + $0x10] sm:$0xff]
        %v1724 = vld [vmem:[%s1720 + $0x18] sm:$0xff]
        %v1725 = vld [vmem:[%s1720 + $0x20] sm:$0xff]
        %v1726 = vld [vmem:[%s1720 + $0x28] sm:$0xff]
        %v1727 = vld [vmem:[%s1720 + $0x30] sm:$0xff]
        %v1728 = vld [vmem:[%s1720 + $0x38] sm:$0xff]
        %v1729 = vld [vmem:[%s1720 + $0x40] sm:$0xff]
        %v1730 = vld [vmem:[%s1720 + $0x48] sm:$0xff]
        %v1731 = vld [vmem:[%s1720 + $0x50] sm:$0xff]
        %v1732 = vld [vmem:[%s1720 + $0x58] sm:$0xff]
        %v1733 = vld [vmem:[%s1720 + $0x60] sm:$0xff]
        %v1734 = vld [vmem:[%s1720 + $0x68] sm:$0xff]
        %v1735 = vld [vmem:[%s1720 + $0x70] sm:$0xff]
        %v1736 = vld [vmem:[%s1720 + $0x78] sm:$0xff]
        %1737 = vmatpush.msra.mxu0 %v1736
        %1738 = vmatpush.msra.mxu0 %v1735
        %1739 = vmatpush.msra.mxu0 %v1734
        %1740 = vmatpush.msra.mxu0 %v1733
        %1741 = vmatpush.msra.mxu0 %v1732
        %1742 = vmatpush.msra.mxu0 %v1731
        %1743 = vmatpush.msra.mxu0 %v1730
        %1744 = vmatpush.msra.mxu0 %v1729
        %1745 = vmatpush.msra.mxu0 %v1728
        %1746 = vmatpush.msra.mxu0 %v1727
        %1747 = vmatpush.msra.mxu0 %v1726
        %1748 = vmatpush.msra.mxu0 %v1725
        %1749 = vmatpush.msra.mxu0 %v1724
        %1750 = vmatpush.msra.mxu0 %v1723
        %1751 = vmatpush.msra.mxu0 %v1722
        %1752 = vmatpush.msra.mxu0 %v1721
        %1753 = vmatmul.f32.gmra.mxu0 %v1712
        %v1754 = vpop.f32.mrf.mxu0
        %v1755 = vadd.f32 0.0, %v1754
        %1756 = vmatmul.f32.gmra.mxu0 %v1713
        %v1757 = vpop.f32.mrf.mxu0
        %v1758 = vadd.f32 0.0, %v1757
        %1759 = vmatmul.f32.gmra.mxu0 %v1714
        %v1760 = vpop.f32.mrf.mxu0
        %v1761 = vadd.f32 0.0, %v1760
        %1762 = vmatmul.f32.gmra.mxu0 %v1715
        %v1763 = vpop.f32.mrf.mxu0
        %v1764 = vadd.f32 0.0, %v1763
        %1765 = vmatmul.f32.gmra.mxu0 %v1716
        %v1766 = vpop.f32.mrf.mxu0
        %v1767 = vadd.f32 0.0, %v1766
        %1768 = vmatmul.f32.gmra.mxu0 %v1717
        %v1769 = vpop.f32.mrf.mxu0
        %v1770 = vadd.f32 0.0, %v1769
        %1771 = vmatmul.f32.gmra.mxu0 %v1718
        %v1772 = vpop.f32.mrf.mxu0
        %v1773 = vadd.f32 0.0, %v1772
        %1774 = vmatmul.f32.gmra.mxu0 %v1719
        %v1775 = vpop.f32.mrf.mxu0
        %v1776 = vadd.f32 0.0, %v1775
        %1777 = vdwg.mxu0
        %1778 = vmatpush.msra.mxu0 %v1711
        %1779 = vmatpush.msra.mxu0 %v1710
        %1780 = vmatpush.msra.mxu0 %v1709
        %1781 = vmatpush.msra.mxu0 %v1708
        %1782 = vmatpush.msra.mxu0 %v1707
        %1783 = vmatpush.msra.mxu0 %v1706
        %1784 = vmatpush.msra.mxu0 %v1705
        %1785 = vmatpush.msra.mxu0 %v1704
        %1786 = vmatpush.msra.mxu0 %v1703
        %1787 = vmatpush.msra.mxu0 %v1702
        %1788 = vmatpush.msra.mxu0 %v1701
        %1789 = vmatpush.msra.mxu0 %v1700
        %1790 = vmatpush.msra.mxu0 %v1699
        %1791 = vmatpush.msra.mxu0 %v1698
        %1792 = vmatpush.msra.mxu0 %v1697
        %1793 = vmatpush.msra.mxu0 %v1696
        %1794 = vmatmul.f32.gmra.mxu0 %v1688
        %v1795 = vpop.f32.mrf.mxu0
        %v1796 = vadd.f32 %v1755, %v1795
        %1797 = vmatmul.f32.gmra.mxu0 %v1689
        %v1798 = vpop.f32.mrf.mxu0
        %v1799 = vadd.f32 %v1758, %v1798
        %1800 = vmatmul.f32.gmra.mxu0 %v1690
        %v1801 = vpop.f32.mrf.mxu0
        %v1802 = vadd.f32 %v1761, %v1801
        %1803 = vmatmul.f32.gmra.mxu0 %v1691
        %v1804 = vpop.f32.mrf.mxu0
        %v1805 = vadd.f32 %v1764, %v1804
        %1806 = vmatmul.f32.gmra.mxu0 %v1692
        %v1807 = vpop.f32.mrf.mxu0
        %v1808 = vadd.f32 %v1767, %v1807
        %1809 = vmatmul.f32.gmra.mxu0 %v1693
        %v1810 = vpop.f32.mrf.mxu0
        %v1811 = vadd.f32 %v1770, %v1810
        %1812 = vmatmul.f32.gmra.mxu0 %v1694
        %v1813 = vpop.f32.mrf.mxu0
        %v1814 = vadd.f32 %v1773, %v1813
        %1815 = vmatmul.f32.gmra.mxu0 %v1695
        %v1816 = vpop.f32.mrf.mxu0
        %v1817 = vadd.f32 %v1776, %v1816
        %1818 = vdwg.mxu0
        %v1819 = vld [vmem:[#allocation3 + $0x2] sm:$0xff]
        %v1820 = vld [vmem:[#allocation3 + $0x12] sm:$0xff]
        %v1821 = vld [vmem:[#allocation3 + $0x22] sm:$0xff]
        %v1822 = vld [vmem:[#allocation3 + $0x32] sm:$0xff]
        %v1823 = vld [vmem:[#allocation3 + $0x42] sm:$0xff]
        %v1824 = vld [vmem:[#allocation3 + $0x52] sm:$0xff]
        %v1825 = vld [vmem:[#allocation3 + $0x62] sm:$0xff]
        %v1826 = vld [vmem:[#allocation3 + $0x72] sm:$0xff]
        %s1827 = scalar_lea.vmem [#allocation14], 256
        %v1828 = vld [vmem:[%s1827] sm:$0xff]
        %v1829 = vld [vmem:[%s1827 + $0x8] sm:$0xff]
        %v1830 = vld [vmem:[%s1827 + $0x10] sm:$0xff]
        %v1831 = vld [vmem:[%s1827 + $0x18] sm:$0xff]
        %v1832 = vld [vmem:[%s1827 + $0x20] sm:$0xff]
        %v1833 = vld [vmem:[%s1827 + $0x28] sm:$0xff]
        %v1834 = vld [vmem:[%s1827 + $0x30] sm:$0xff]
        %v1835 = vld [vmem:[%s1827 + $0x38] sm:$0xff]
        %v1836 = vld [vmem:[%s1827 + $0x40] sm:$0xff]
        %v1837 = vld [vmem:[%s1827 + $0x48] sm:$0xff]
        %v1838 = vld [vmem:[%s1827 + $0x50] sm:$0xff]
        %v1839 = vld [vmem:[%s1827 + $0x58] sm:$0xff]
        %v1840 = vld [vmem:[%s1827 + $0x60] sm:$0xff]
        %v1841 = vld [vmem:[%s1827 + $0x68] sm:$0xff]
        %v1842 = vld [vmem:[%s1827 + $0x70] sm:$0xff]
        %v1843 = vld [vmem:[%s1827 + $0x78] sm:$0xff]
        %1844 = vmatpush.msra.mxu0 %v1843
        %1845 = vmatpush.msra.mxu0 %v1842
        %1846 = vmatpush.msra.mxu0 %v1841
        %1847 = vmatpush.msra.mxu0 %v1840
        %1848 = vmatpush.msra.mxu0 %v1839
        %1849 = vmatpush.msra.mxu0 %v1838
        %1850 = vmatpush.msra.mxu0 %v1837
        %1851 = vmatpush.msra.mxu0 %v1836
        %1852 = vmatpush.msra.mxu0 %v1835
        %1853 = vmatpush.msra.mxu0 %v1834
        %1854 = vmatpush.msra.mxu0 %v1833
        %1855 = vmatpush.msra.mxu0 %v1832
        %1856 = vmatpush.msra.mxu0 %v1831
        %1857 = vmatpush.msra.mxu0 %v1830
        %1858 = vmatpush.msra.mxu0 %v1829
        %1859 = vmatpush.msra.mxu0 %v1828
        %1860 = vmatmul.f32.gmra.mxu0 %v1819
        %v1861 = vpop.f32.mrf.mxu0
        %v1862 = vadd.f32 0.0, %v1861
        %1863 = vmatmul.f32.gmra.mxu0 %v1820
        %v1864 = vpop.f32.mrf.mxu0
        %v1865 = vadd.f32 0.0, %v1864
        %1866 = vmatmul.f32.gmra.mxu0 %v1821
        %v1867 = vpop.f32.mrf.mxu0
        %v1868 = vadd.f32 0.0, %v1867
        %1869 = vmatmul.f32.gmra.mxu0 %v1822
        %v1870 = vpop.f32.mrf.mxu0
        %v1871 = vadd.f32 0.0, %v1870
        %1872 = vmatmul.f32.gmra.mxu0 %v1823
        %v1873 = vpop.f32.mrf.mxu0
        %v1874 = vadd.f32 0.0, %v1873
        %1875 = vmatmul.f32.gmra.mxu0 %v1824
        %v1876 = vpop.f32.mrf.mxu0
        %v1877 = vadd.f32 0.0, %v1876
        %1878 = vmatmul.f32.gmra.mxu0 %v1825
        %v1879 = vpop.f32.mrf.mxu0
        %v1880 = vadd.f32 0.0, %v1879
        %1881 = vmatmul.f32.gmra.mxu0 %v1826
        %v1882 = vpop.f32.mrf.mxu0
        %v1883 = vadd.f32 0.0, %v1882
        %1884 = vdwg.mxu0
        %v1885 = vadd.f32 %v1796, %v1862
        %v1886 = vadd.f32 %v1799, %v1865
        %v1887 = vadd.f32 %v1802, %v1868
        %v1888 = vadd.f32 %v1805, %v1871
        %v1889 = vadd.f32 %v1808, %v1874
        %v1890 = vadd.f32 %v1811, %v1877
        %v1891 = vadd.f32 %v1814, %v1880
        %v1892 = vadd.f32 %v1817, %v1883
        %v1893 = vld [vmem:[#allocation3 + $0x3] sm:$0xff]
        %v1894 = vld [vmem:[#allocation3 + $0x13] sm:$0xff]
        %v1895 = vld [vmem:[#allocation3 + $0x23] sm:$0xff]
        %v1896 = vld [vmem:[#allocation3 + $0x33] sm:$0xff]
        %v1897 = vld [vmem:[#allocation3 + $0x43] sm:$0xff]
        %v1898 = vld [vmem:[#allocation3 + $0x53] sm:$0xff]
        %v1899 = vld [vmem:[#allocation3 + $0x63] sm:$0xff]
        %v1900 = vld [vmem:[#allocation3 + $0x73] sm:$0xff]
        %s1901 = scalar_lea.vmem [#allocation14], 384
        %v1902 = vld [vmem:[%s1901] sm:$0xff]
        %v1903 = vld [vmem:[%s1901 + $0x8] sm:$0xff]
        %v1904 = vld [vmem:[%s1901 + $0x10] sm:$0xff]
        %v1905 = vld [vmem:[%s1901 + $0x18] sm:$0xff]
        %v1906 = vld [vmem:[%s1901 + $0x20] sm:$0xff]
        %v1907 = vld [vmem:[%s1901 + $0x28] sm:$0xff]
        %v1908 = vld [vmem:[%s1901 + $0x30] sm:$0xff]
        %v1909 = vld [vmem:[%s1901 + $0x38] sm:$0xff]
        %v1910 = vld [vmem:[%s1901 + $0x40] sm:$0xff]
        %v1911 = vld [vmem:[%s1901 + $0x48] sm:$0xff]
        %v1912 = vld [vmem:[%s1901 + $0x50] sm:$0xff]
        %v1913 = vld [vmem:[%s1901 + $0x58] sm:$0xff]
        %v1914 = vld [vmem:[%s1901 + $0x60] sm:$0xff]
        %v1915 = vld [vmem:[%s1901 + $0x68] sm:$0xff]
        %v1916 = vld [vmem:[%s1901 + $0x70] sm:$0xff]
        %v1917 = vld [vmem:[%s1901 + $0x78] sm:$0xff]
        %1918 = vmatpush.msra.mxu0 %v1917
        %1919 = vmatpush.msra.mxu0 %v1916
        %1920 = vmatpush.msra.mxu0 %v1915
        %1921 = vmatpush.msra.mxu0 %v1914
        %1922 = vmatpush.msra.mxu0 %v1913
        %1923 = vmatpush.msra.mxu0 %v1912
        %1924 = vmatpush.msra.mxu0 %v1911
        %1925 = vmatpush.msra.mxu0 %v1910
        %1926 = vmatpush.msra.mxu0 %v1909
        %1927 = vmatpush.msra.mxu0 %v1908
        %1928 = vmatpush.msra.mxu0 %v1907
        %1929 = vmatpush.msra.mxu0 %v1906
        %1930 = vmatpush.msra.mxu0 %v1905
        %1931 = vmatpush.msra.mxu0 %v1904
        %1932 = vmatpush.msra.mxu0 %v1903
        %1933 = vmatpush.msra.mxu0 %v1902
        %1934 = vmatmul.f32.gmra.mxu0 %v1893
        %v1935 = vpop.f32.mrf.mxu0
        %v1936 = vadd.f32 0.0, %v1935
        %1937 = vmatmul.f32.gmra.mxu0 %v1894
        %v1938 = vpop.f32.mrf.mxu0
        %v1939 = vadd.f32 0.0, %v1938
        %1940 = vmatmul.f32.gmra.mxu0 %v1895
        %v1941 = vpop.f32.mrf.mxu0
        %v1942 = vadd.f32 0.0, %v1941
        %1943 = vmatmul.f32.gmra.mxu0 %v1896
        %v1944 = vpop.f32.mrf.mxu0
        %v1945 = vadd.f32 0.0, %v1944
        %1946 = vmatmul.f32.gmra.mxu0 %v1897
        %v1947 = vpop.f32.mrf.mxu0
        %v1948 = vadd.f32 0.0, %v1947
        %1949 = vmatmul.f32.gmra.mxu0 %v1898
        %v1950 = vpop.f32.mrf.mxu0
        %v1951 = vadd.f32 0.0, %v1950
        %1952 = vmatmul.f32.gmra.mxu0 %v1899
        %v1953 = vpop.f32.mrf.mxu0
        %v1954 = vadd.f32 0.0, %v1953
        %1955 = vmatmul.f32.gmra.mxu0 %v1900
        %v1956 = vpop.f32.mrf.mxu0
        %v1957 = vadd.f32 0.0, %v1956
        %1958 = vdwg.mxu0
        %v1959 = vadd.f32 %v1885, %v1936
        %v1960 = vadd.f32 %v1886, %v1939
        %v1961 = vadd.f32 %v1887, %v1942
        %v1962 = vadd.f32 %v1888, %v1945
        %v1963 = vadd.f32 %v1889, %v1948
        %v1964 = vadd.f32 %v1890, %v1951
        %v1965 = vadd.f32 %v1891, %v1954
        %v1966 = vadd.f32 %v1892, %v1957
        %v1967 = vld [vmem:[#allocation3 + $0x4] sm:$0xff]
        %v1968 = vld [vmem:[#allocation3 + $0x14] sm:$0xff]
        %v1969 = vld [vmem:[#allocation3 + $0x24] sm:$0xff]
        %v1970 = vld [vmem:[#allocation3 + $0x34] sm:$0xff]
        %v1971 = vld [vmem:[#allocation3 + $0x44] sm:$0xff]
        %v1972 = vld [vmem:[#allocation3 + $0x54] sm:$0xff]
        %v1973 = vld [vmem:[#allocation3 + $0x64] sm:$0xff]
        %v1974 = vld [vmem:[#allocation3 + $0x74] sm:$0xff]
        %s1975 = scalar_lea.vmem [#allocation14], 512
        %v1976 = vld [vmem:[%s1975] sm:$0xff]
        %v1977 = vld [vmem:[%s1975 + $0x8] sm:$0xff]
        %v1978 = vld [vmem:[%s1975 + $0x10] sm:$0xff]
        %v1979 = vld [vmem:[%s1975 + $0x18] sm:$0xff]
        %v1980 = vld [vmem:[%s1975 + $0x20] sm:$0xff]
        %v1981 = vld [vmem:[%s1975 + $0x28] sm:$0xff]
        %v1982 = vld [vmem:[%s1975 + $0x30] sm:$0xff]
        %v1983 = vld [vmem:[%s1975 + $0x38] sm:$0xff]
        %v1984 = vld [vmem:[%s1975 + $0x40] sm:$0xff]
        %v1985 = vld [vmem:[%s1975 + $0x48] sm:$0xff]
        %v1986 = vld [vmem:[%s1975 + $0x50] sm:$0xff]
        %v1987 = vld [vmem:[%s1975 + $0x58] sm:$0xff]
        %v1988 = vld [vmem:[%s1975 + $0x60] sm:$0xff]
        %v1989 = vld [vmem:[%s1975 + $0x68] sm:$0xff]
        %v1990 = vld [vmem:[%s1975 + $0x70] sm:$0xff]
        %v1991 = vld [vmem:[%s1975 + $0x78] sm:$0xff]
        %1992 = vmatpush.msra.mxu0 %v1991
        %1993 = vmatpush.msra.mxu0 %v1990
        %1994 = vmatpush.msra.mxu0 %v1989
        %1995 = vmatpush.msra.mxu0 %v1988
        %1996 = vmatpush.msra.mxu0 %v1987
        %1997 = vmatpush.msra.mxu0 %v1986
        %1998 = vmatpush.msra.mxu0 %v1985
        %1999 = vmatpush.msra.mxu0 %v1984
        %2000 = vmatpush.msra.mxu0 %v1983
        %2001 = vmatpush.msra.mxu0 %v1982
        %2002 = vmatpush.msra.mxu0 %v1981
        %2003 = vmatpush.msra.mxu0 %v1980
        %2004 = vmatpush.msra.mxu0 %v1979
        %2005 = vmatpush.msra.mxu0 %v1978
        %2006 = vmatpush.msra.mxu0 %v1977
        %2007 = vmatpush.msra.mxu0 %v1976
        %2008 = vmatmul.f32.gmra.mxu0 %v1967
        %v2009 = vpop.f32.mrf.mxu0
        %v2010 = vadd.f32 0.0, %v2009
        %2011 = vmatmul.f32.gmra.mxu0 %v1968
        %v2012 = vpop.f32.mrf.mxu0
        %v2013 = vadd.f32 0.0, %v2012
        %2014 = vmatmul.f32.gmra.mxu0 %v1969
        %v2015 = vpop.f32.mrf.mxu0
        %v2016 = vadd.f32 0.0, %v2015
        %2017 = vmatmul.f32.gmra.mxu0 %v1970
        %v2018 = vpop.f32.mrf.mxu0
        %v2019 = vadd.f32 0.0, %v2018
        %2020 = vmatmul.f32.gmra.mxu0 %v1971
        %v2021 = vpop.f32.mrf.mxu0
        %v2022 = vadd.f32 0.0, %v2021
        %2023 = vmatmul.f32.gmra.mxu0 %v1972
        %v2024 = vpop.f32.mrf.mxu0
        %v2025 = vadd.f32 0.0, %v2024
        %2026 = vmatmul.f32.gmra.mxu0 %v1973
        %v2027 = vpop.f32.mrf.mxu0
        %v2028 = vadd.f32 0.0, %v2027
        %2029 = vmatmul.f32.gmra.mxu0 %v1974
        %v2030 = vpop.f32.mrf.mxu0
        %v2031 = vadd.f32 0.0, %v2030
        %2032 = vdwg.mxu0
        %v2033 = vadd.f32 %v1959, %v2010
        %v2034 = vadd.f32 %v1960, %v2013
        %v2035 = vadd.f32 %v1961, %v2016
        %v2036 = vadd.f32 %v1962, %v2019
        %v2037 = vadd.f32 %v1963, %v2022
        %v2038 = vadd.f32 %v1964, %v2025
        %v2039 = vadd.f32 %v1965, %v2028
        %v2040 = vadd.f32 %v1966, %v2031
        %s2041 = scalar_lea.vmem [#allocation3], 16
        %v2042 = vld [vmem:[%s2041] sm:$0xff]
        %v2043 = vld [vmem:[%s2041 + $0x10] sm:$0xff]
        %v2044 = vld [vmem:[%s2041 + $0x20] sm:$0xff]
        %v2045 = vld [vmem:[%s2041 + $0x30] sm:$0xff]
        %v2046 = vld [vmem:[%s2041 + $0x40] sm:$0xff]
        %v2047 = vld [vmem:[%s2041 + $0x50] sm:$0xff]
        %v2048 = vld [vmem:[%s2041 + $0x60] sm:$0xff]
        %v2049 = vld [vmem:[%s2041 + $0x70] sm:$0xff]
        %s2050 = scalar_lea.vmem [#allocation14], 640
        %v2051 = vld [vmem:[%s2050] sm:$0xff]
        %v2052 = vld [vmem:[%s2050 + $0x8] sm:$0xff]
        %v2053 = vld [vmem:[%s2050 + $0x10] sm:$0xff]
        %v2054 = vld [vmem:[%s2050 + $0x18] sm:$0xff]
        %v2055 = vld [vmem:[%s2050 + $0x20] sm:$0xff]
        %v2056 = vld [vmem:[%s2050 + $0x28] sm:$0xff]
        %v2057 = vld [vmem:[%s2050 + $0x30] sm:$0xff]
        %v2058 = vld [vmem:[%s2050 + $0x38] sm:$0xff]
        %v2059 = vld [vmem:[%s2050 + $0x40] sm:$0xff]
        %v2060 = vld [vmem:[%s2050 + $0x48] sm:$0xff]
        %v2061 = vld [vmem:[%s2050 + $0x50] sm:$0xff]
        %v2062 = vld [vmem:[%s2050 + $0x58] sm:$0xff]
        %v2063 = vld [vmem:[%s2050 + $0x60] sm:$0xff]
        %v2064 = vld [vmem:[%s2050 + $0x68] sm:$0xff]
        %v2065 = vld [vmem:[%s2050 + $0x70] sm:$0xff]
        %v2066 = vld [vmem:[%s2050 + $0x78] sm:$0xff]
        %2067 = vmatpush.msra.mxu0 %v2066
        %2068 = vmatpush.msra.mxu0 %v2065
        %2069 = vmatpush.msra.mxu0 %v2064
        %2070 = vmatpush.msra.mxu0 %v2063
        %2071 = vmatpush.msra.mxu0 %v2062
        %2072 = vmatpush.msra.mxu0 %v2061
        %2073 = vmatpush.msra.mxu0 %v2060
        %2074 = vmatpush.msra.mxu0 %v2059
        %2075 = vmatpush.msra.mxu0 %v2058
        %2076 = vmatpush.msra.mxu0 %v2057
        %2077 = vmatpush.msra.mxu0 %v2056
        %2078 = vmatpush.msra.mxu0 %v2055
        %2079 = vmatpush.msra.mxu0 %v2054
        %2080 = vmatpush.msra.mxu0 %v2053
        %2081 = vmatpush.msra.mxu0 %v2052
        %2082 = vmatpush.msra.mxu0 %v2051
        %2083 = vmatmul.f32.gmra.mxu0 %v2042
        %v2084 = vpop.f32.mrf.mxu0
        %v2085 = vadd.f32 0.0, %v2084
        %2086 = vmatmul.f32.gmra.mxu0 %v2043
        %v2087 = vpop.f32.mrf.mxu0
        %v2088 = vadd.f32 0.0, %v2087
        %2089 = vmatmul.f32.gmra.mxu0 %v2044
        %v2090 = vpop.f32.mrf.mxu0
        %v2091 = vadd.f32 0.0, %v2090
        %2092 = vmatmul.f32.gmra.mxu0 %v2045
        %v2093 = vpop.f32.mrf.mxu0
        %v2094 = vadd.f32 0.0, %v2093
        %2095 = vmatmul.f32.gmra.mxu0 %v2046
        %v2096 = vpop.f32.mrf.mxu0
        %v2097 = vadd.f32 0.0, %v2096
        %2098 = vmatmul.f32.gmra.mxu0 %v2047
        %v2099 = vpop.f32.mrf.mxu0
        %v2100 = vadd.f32 0.0, %v2099
        %2101 = vmatmul.f32.gmra.mxu0 %v2048
        %v2102 = vpop.f32.mrf.mxu0
        %v2103 = vadd.f32 0.0, %v2102
        %2104 = vmatmul.f32.gmra.mxu0 %v2049
        %v2105 = vpop.f32.mrf.mxu0
        %v2106 = vadd.f32 0.0, %v2105
        %2107 = vdwg.mxu0
        %v2108 = vadd.f32 %v2033, %v2085
        %v2109 = vadd.f32 %v2034, %v2088
        %v2110 = vadd.f32 %v2035, %v2091
        %v2111 = vadd.f32 %v2036, %v2094
        %v2112 = vadd.f32 %v2037, %v2097
        %v2113 = vadd.f32 %v2038, %v2100
        %v2114 = vadd.f32 %v2039, %v2103
        %v2115 = vadd.f32 %v2040, %v2106
        %v2116 = vld [vmem:[%s2041 + $0x1] sm:$0xff]
        %v2117 = vld [vmem:[%s2041 + $0x11] sm:$0xff]
        %v2118 = vld [vmem:[%s2041 + $0x21] sm:$0xff]
        %v2119 = vld [vmem:[%s2041 + $0x31] sm:$0xff]
        %v2120 = vld [vmem:[%s2041 + $0x41] sm:$0xff]
        %v2121 = vld [vmem:[%s2041 + $0x51] sm:$0xff]
        %v2122 = vld [vmem:[%s2041 + $0x61] sm:$0xff]
        %v2123 = vld [vmem:[%s2041 + $0x71] sm:$0xff]
        %s2124 = scalar_lea.vmem [#allocation14], 768
        %v2125 = vld [vmem:[%s2124] sm:$0xff]
        %v2126 = vld [vmem:[%s2124 + $0x8] sm:$0xff]
        %v2127 = vld [vmem:[%s2124 + $0x10] sm:$0xff]
        %v2128 = vld [vmem:[%s2124 + $0x18] sm:$0xff]
        %v2129 = vld [vmem:[%s2124 + $0x20] sm:$0xff]
        %v2130 = vld [vmem:[%s2124 + $0x28] sm:$0xff]
        %v2131 = vld [vmem:[%s2124 + $0x30] sm:$0xff]
        %v2132 = vld [vmem:[%s2124 + $0x38] sm:$0xff]
        %v2133 = vld [vmem:[%s2124 + $0x40] sm:$0xff]
        %v2134 = vld [vmem:[%s2124 + $0x48] sm:$0xff]
        %v2135 = vld [vmem:[%s2124 + $0x50] sm:$0xff]
        %v2136 = vld [vmem:[%s2124 + $0x58] sm:$0xff]
        %v2137 = vld [vmem:[%s2124 + $0x60] sm:$0xff]
        %v2138 = vld [vmem:[%s2124 + $0x68] sm:$0xff]
        %v2139 = vld [vmem:[%s2124 + $0x70] sm:$0xff]
        %v2140 = vld [vmem:[%s2124 + $0x78] sm:$0xff]
        %2141 = vmatpush.msra.mxu0 %v2140
        %2142 = vmatpush.msra.mxu0 %v2139
        %2143 = vmatpush.msra.mxu0 %v2138
        %2144 = vmatpush.msra.mxu0 %v2137
        %2145 = vmatpush.msra.mxu0 %v2136
        %2146 = vmatpush.msra.mxu0 %v2135
        %2147 = vmatpush.msra.mxu0 %v2134
        %2148 = vmatpush.msra.mxu0 %v2133
        %2149 = vmatpush.msra.mxu0 %v2132
        %2150 = vmatpush.msra.mxu0 %v2131
        %2151 = vmatpush.msra.mxu0 %v2130
        %2152 = vmatpush.msra.mxu0 %v2129
        %2153 = vmatpush.msra.mxu0 %v2128
        %2154 = vmatpush.msra.mxu0 %v2127
        %2155 = vmatpush.msra.mxu0 %v2126
        %2156 = vmatpush.msra.mxu0 %v2125
        %2157 = vmatmul.f32.gmra.mxu0 %v2116
        %v2158 = vpop.f32.mrf.mxu0
        %v2159 = vadd.f32 0.0, %v2158
        %2160 = vmatmul.f32.gmra.mxu0 %v2117
        %v2161 = vpop.f32.mrf.mxu0
        %v2162 = vadd.f32 0.0, %v2161
        %2163 = vmatmul.f32.gmra.mxu0 %v2118
        %v2164 = vpop.f32.mrf.mxu0
        %v2165 = vadd.f32 0.0, %v2164
        %2166 = vmatmul.f32.gmra.mxu0 %v2119
        %v2167 = vpop.f32.mrf.mxu0
        %v2168 = vadd.f32 0.0, %v2167
        %2169 = vmatmul.f32.gmra.mxu0 %v2120
        %v2170 = vpop.f32.mrf.mxu0
        %v2171 = vadd.f32 0.0, %v2170
        %2172 = vmatmul.f32.gmra.mxu0 %v2121
        %v2173 = vpop.f32.mrf.mxu0
        %v2174 = vadd.f32 0.0, %v2173
        %2175 = vmatmul.f32.gmra.mxu0 %v2122
        %v2176 = vpop.f32.mrf.mxu0
        %v2177 = vadd.f32 0.0, %v2176
        %2178 = vmatmul.f32.gmra.mxu0 %v2123
        %v2179 = vpop.f32.mrf.mxu0
        %v2180 = vadd.f32 0.0, %v2179
        %2181 = vdwg.mxu0
        %v2182 = vadd.f32 %v2108, %v2159
        %v2183 = vadd.f32 %v2109, %v2162
        %v2184 = vadd.f32 %v2110, %v2165
        %v2185 = vadd.f32 %v2111, %v2168
        %v2186 = vadd.f32 %v2112, %v2171
        %v2187 = vadd.f32 %v2113, %v2174
        %v2188 = vadd.f32 %v2114, %v2177
        %v2189 = vadd.f32 %v2115, %v2180
        %v2190 = vld [vmem:[%s2041 + $0x2] sm:$0xff]
        %v2191 = vld [vmem:[%s2041 + $0x12] sm:$0xff]
        %v2192 = vld [vmem:[%s2041 + $0x22] sm:$0xff]
        %v2193 = vld [vmem:[%s2041 + $0x32] sm:$0xff]
        %v2194 = vld [vmem:[%s2041 + $0x42] sm:$0xff]
        %v2195 = vld [vmem:[%s2041 + $0x52] sm:$0xff]
        %v2196 = vld [vmem:[%s2041 + $0x62] sm:$0xff]
        %v2197 = vld [vmem:[%s2041 + $0x72] sm:$0xff]
        %s2198 = scalar_lea.vmem [#allocation14], 896
        %v2199 = vld [vmem:[%s2198] sm:$0xff]
        %v2200 = vld [vmem:[%s2198 + $0x8] sm:$0xff]
        %v2201 = vld [vmem:[%s2198 + $0x10] sm:$0xff]
        %v2202 = vld [vmem:[%s2198 + $0x18] sm:$0xff]
        %v2203 = vld [vmem:[%s2198 + $0x20] sm:$0xff]
        %v2204 = vld [vmem:[%s2198 + $0x28] sm:$0xff]
        %v2205 = vld [vmem:[%s2198 + $0x30] sm:$0xff]
        %v2206 = vld [vmem:[%s2198 + $0x38] sm:$0xff]
        %v2207 = vld [vmem:[%s2198 + $0x40] sm:$0xff]
        %v2208 = vld [vmem:[%s2198 + $0x48] sm:$0xff]
        %v2209 = vld [vmem:[%s2198 + $0x50] sm:$0xff]
        %v2210 = vld [vmem:[%s2198 + $0x58] sm:$0xff]
        %v2211 = vld [vmem:[%s2198 + $0x60] sm:$0xff]
        %v2212 = vld [vmem:[%s2198 + $0x68] sm:$0xff]
        %v2213 = vld [vmem:[%s2198 + $0x70] sm:$0xff]
        %v2214 = vld [vmem:[%s2198 + $0x78] sm:$0xff]
        %2215 = vmatpush.msra.mxu0 %v2214
        %2216 = vmatpush.msra.mxu0 %v2213
        %2217 = vmatpush.msra.mxu0 %v2212
        %2218 = vmatpush.msra.mxu0 %v2211
        %2219 = vmatpush.msra.mxu0 %v2210
        %2220 = vmatpush.msra.mxu0 %v2209
        %2221 = vmatpush.msra.mxu0 %v2208
        %2222 = vmatpush.msra.mxu0 %v2207
        %2223 = vmatpush.msra.mxu0 %v2206
        %2224 = vmatpush.msra.mxu0 %v2205
        %2225 = vmatpush.msra.mxu0 %v2204
        %2226 = vmatpush.msra.mxu0 %v2203
        %2227 = vmatpush.msra.mxu0 %v2202
        %2228 = vmatpush.msra.mxu0 %v2201
        %2229 = vmatpush.msra.mxu0 %v2200
        %2230 = vmatpush.msra.mxu0 %v2199
        %2231 = vmatmul.f32.gmra.mxu0 %v2190
        %v2232 = vpop.f32.mrf.mxu0
        %v2233 = vadd.f32 0.0, %v2232
        %2234 = vmatmul.f32.gmra.mxu0 %v2191
        %v2235 = vpop.f32.mrf.mxu0
        %v2236 = vadd.f32 0.0, %v2235
        %2237 = vmatmul.f32.gmra.mxu0 %v2192
        %v2238 = vpop.f32.mrf.mxu0
        %v2239 = vadd.f32 0.0, %v2238
        %2240 = vmatmul.f32.gmra.mxu0 %v2193
        %v2241 = vpop.f32.mrf.mxu0
        %v2242 = vadd.f32 0.0, %v2241
        %2243 = vmatmul.f32.gmra.mxu0 %v2194
        %v2244 = vpop.f32.mrf.mxu0
        %v2245 = vadd.f32 0.0, %v2244
        %2246 = vmatmul.f32.gmra.mxu0 %v2195
        %v2247 = vpop.f32.mrf.mxu0
        %v2248 = vadd.f32 0.0, %v2247
        %2249 = vmatmul.f32.gmra.mxu0 %v2196
        %v2250 = vpop.f32.mrf.mxu0
        %v2251 = vadd.f32 0.0, %v2250
        %2252 = vmatmul.f32.gmra.mxu0 %v2197
        %v2253 = vpop.f32.mrf.mxu0
        %v2254 = vadd.f32 0.0, %v2253
        %2255 = vdwg.mxu0
        %v2256 = vadd.f32 %v2182, %v2233
        %v2257 = vadd.f32 %v2183, %v2236
        %v2258 = vadd.f32 %v2184, %v2239
        %v2259 = vadd.f32 %v2185, %v2242
        %v2260 = vadd.f32 %v2186, %v2245
        %v2261 = vadd.f32 %v2187, %v2248
        %v2262 = vadd.f32 %v2188, %v2251
        %v2263 = vadd.f32 %v2189, %v2254
        %v2264 = vld [vmem:[%s2041 + $0x3] sm:$0xff]
        %v2265 = vld [vmem:[%s2041 + $0x13] sm:$0xff]
        %v2266 = vld [vmem:[%s2041 + $0x23] sm:$0xff]
        %v2267 = vld [vmem:[%s2041 + $0x33] sm:$0xff]
        %v2268 = vld [vmem:[%s2041 + $0x43] sm:$0xff]
        %v2269 = vld [vmem:[%s2041 + $0x53] sm:$0xff]
        %v2270 = vld [vmem:[%s2041 + $0x63] sm:$0xff]
        %v2271 = vld [vmem:[%s2041 + $0x73] sm:$0xff]
        %s2272 = scalar_lea.vmem [#allocation14], 1024
        %v2273 = vld [vmem:[%s2272] sm:$0xff]
        %v2274 = vld [vmem:[%s2272 + $0x8] sm:$0xff]
        %v2275 = vld [vmem:[%s2272 + $0x10] sm:$0xff]
        %v2276 = vld [vmem:[%s2272 + $0x18] sm:$0xff]
        %v2277 = vld [vmem:[%s2272 + $0x20] sm:$0xff]
        %v2278 = vld [vmem:[%s2272 + $0x28] sm:$0xff]
        %v2279 = vld [vmem:[%s2272 + $0x30] sm:$0xff]
        %v2280 = vld [vmem:[%s2272 + $0x38] sm:$0xff]
        %v2281 = vld [vmem:[%s2272 + $0x40] sm:$0xff]
        %v2282 = vld [vmem:[%s2272 + $0x48] sm:$0xff]
        %v2283 = vld [vmem:[%s2272 + $0x50] sm:$0xff]
        %v2284 = vld [vmem:[%s2272 + $0x58] sm:$0xff]
        %v2285 = vld [vmem:[%s2272 + $0x60] sm:$0xff]
        %v2286 = vld [vmem:[%s2272 + $0x68] sm:$0xff]
        %v2287 = vld [vmem:[%s2272 + $0x70] sm:$0xff]
        %v2288 = vld [vmem:[%s2272 + $0x78] sm:$0xff]
        %2289 = vmatpush.msra.mxu0 %v2288
        %2290 = vmatpush.msra.mxu0 %v2287
        %2291 = vmatpush.msra.mxu0 %v2286
        %2292 = vmatpush.msra.mxu0 %v2285
        %2293 = vmatpush.msra.mxu0 %v2284
        %2294 = vmatpush.msra.mxu0 %v2283
        %2295 = vmatpush.msra.mxu0 %v2282
        %2296 = vmatpush.msra.mxu0 %v2281
        %2297 = vmatpush.msra.mxu0 %v2280
        %2298 = vmatpush.msra.mxu0 %v2279
        %2299 = vmatpush.msra.mxu0 %v2278
        %2300 = vmatpush.msra.mxu0 %v2277
        %2301 = vmatpush.msra.mxu0 %v2276
        %2302 = vmatpush.msra.mxu0 %v2275
        %2303 = vmatpush.msra.mxu0 %v2274
        %2304 = vmatpush.msra.mxu0 %v2273
        %2305 = vmatmul.f32.gmra.mxu0 %v2264
        %v2306 = vpop.f32.mrf.mxu0
        %v2307 = vadd.f32 0.0, %v2306
        %2308 = vmatmul.f32.gmra.mxu0 %v2265
        %v2309 = vpop.f32.mrf.mxu0
        %v2310 = vadd.f32 0.0, %v2309
        %2311 = vmatmul.f32.gmra.mxu0 %v2266
        %v2312 = vpop.f32.mrf.mxu0
        %v2313 = vadd.f32 0.0, %v2312
        %2314 = vmatmul.f32.gmra.mxu0 %v2267
        %v2315 = vpop.f32.mrf.mxu0
        %v2316 = vadd.f32 0.0, %v2315
        %2317 = vmatmul.f32.gmra.mxu0 %v2268
        %v2318 = vpop.f32.mrf.mxu0
        %v2319 = vadd.f32 0.0, %v2318
        %2320 = vmatmul.f32.gmra.mxu0 %v2269
        %v2321 = vpop.f32.mrf.mxu0
        %v2322 = vadd.f32 0.0, %v2321
        %2323 = vmatmul.f32.gmra.mxu0 %v2270
        %v2324 = vpop.f32.mrf.mxu0
        %v2325 = vadd.f32 0.0, %v2324
        %2326 = vmatmul.f32.gmra.mxu0 %v2271
        %v2327 = vpop.f32.mrf.mxu0
        %v2328 = vadd.f32 0.0, %v2327
        %2329 = vdwg.mxu0
        %v2330 = vadd.f32 %v2256, %v2307
        %v2331 = vadd.f32 %v2257, %v2310
        %v2332 = vadd.f32 %v2258, %v2313
        %v2333 = vadd.f32 %v2259, %v2316
        %v2334 = vadd.f32 %v2260, %v2319
        %v2335 = vadd.f32 %v2261, %v2322
        %v2336 = vadd.f32 %v2262, %v2325
        %v2337 = vadd.f32 %v2263, %v2328
        %v2338 = vld [vmem:[%s2041 + $0x4] sm:$0xff]
        %v2339 = vld [vmem:[%s2041 + $0x14] sm:$0xff]
        %v2340 = vld [vmem:[%s2041 + $0x24] sm:$0xff]
        %v2341 = vld [vmem:[%s2041 + $0x34] sm:$0xff]
        %v2342 = vld [vmem:[%s2041 + $0x44] sm:$0xff]
        %v2343 = vld [vmem:[%s2041 + $0x54] sm:$0xff]
        %v2344 = vld [vmem:[%s2041 + $0x64] sm:$0xff]
        %v2345 = vld [vmem:[%s2041 + $0x74] sm:$0xff]
        %s2346 = scalar_lea.vmem [#allocation14], 1152
        %v2347 = vld [vmem:[%s2346] sm:$0xff]
        %v2348 = vld [vmem:[%s2346 + $0x8] sm:$0xff]
        %v2349 = vld [vmem:[%s2346 + $0x10] sm:$0xff]
        %v2350 = vld [vmem:[%s2346 + $0x18] sm:$0xff]
        %v2351 = vld [vmem:[%s2346 + $0x20] sm:$0xff]
        %v2352 = vld [vmem:[%s2346 + $0x28] sm:$0xff]
        %v2353 = vld [vmem:[%s2346 + $0x30] sm:$0xff]
        %v2354 = vld [vmem:[%s2346 + $0x38] sm:$0xff]
        %v2355 = vld [vmem:[%s2346 + $0x40] sm:$0xff]
        %v2356 = vld [vmem:[%s2346 + $0x48] sm:$0xff]
        %v2357 = vld [vmem:[%s2346 + $0x50] sm:$0xff]
        %v2358 = vld [vmem:[%s2346 + $0x58] sm:$0xff]
        %v2359 = vld [vmem:[%s2346 + $0x60] sm:$0xff]
        %v2360 = vld [vmem:[%s2346 + $0x68] sm:$0xff]
        %v2361 = vld [vmem:[%s2346 + $0x70] sm:$0xff]
        %v2362 = vld [vmem:[%s2346 + $0x78] sm:$0xff]
        %2363 = vmatpush.msra.mxu0 %v2362
        %2364 = vmatpush.msra.mxu0 %v2361
        %2365 = vmatpush.msra.mxu0 %v2360
        %2366 = vmatpush.msra.mxu0 %v2359
        %2367 = vmatpush.msra.mxu0 %v2358
        %2368 = vmatpush.msra.mxu0 %v2357
        %2369 = vmatpush.msra.mxu0 %v2356
        %2370 = vmatpush.msra.mxu0 %v2355
        %2371 = vmatpush.msra.mxu0 %v2354
        %2372 = vmatpush.msra.mxu0 %v2353
        %2373 = vmatpush.msra.mxu0 %v2352
        %2374 = vmatpush.msra.mxu0 %v2351
        %2375 = vmatpush.msra.mxu0 %v2350
        %2376 = vmatpush.msra.mxu0 %v2349
        %2377 = vmatpush.msra.mxu0 %v2348
        %2378 = vmatpush.msra.mxu0 %v2347
        %2379 = vmatmul.f32.gmra.mxu0 %v2338
        %v2380 = vpop.f32.mrf.mxu0
        %v2381 = vadd.f32 0.0, %v2380
        %2382 = vmatmul.f32.gmra.mxu0 %v2339
        %v2383 = vpop.f32.mrf.mxu0
        %v2384 = vadd.f32 0.0, %v2383
        %2385 = vmatmul.f32.gmra.mxu0 %v2340
        %v2386 = vpop.f32.mrf.mxu0
        %v2387 = vadd.f32 0.0, %v2386
        %2388 = vmatmul.f32.gmra.mxu0 %v2341
        %v2389 = vpop.f32.mrf.mxu0
        %v2390 = vadd.f32 0.0, %v2389
        %2391 = vmatmul.f32.gmra.mxu0 %v2342
        %v2392 = vpop.f32.mrf.mxu0
        %v2393 = vadd.f32 0.0, %v2392
        %2394 = vmatmul.f32.gmra.mxu0 %v2343
        %v2395 = vpop.f32.mrf.mxu0
        %v2396 = vadd.f32 0.0, %v2395
        %2397 = vmatmul.f32.gmra.mxu0 %v2344
        %v2398 = vpop.f32.mrf.mxu0
        %v2399 = vadd.f32 0.0, %v2398
        %2400 = vmatmul.f32.gmra.mxu0 %v2345
        %v2401 = vpop.f32.mrf.mxu0
        %v2402 = vadd.f32 0.0, %v2401
        %2403 = vdwg.mxu0
        %v2404 = vadd.f32 %v2330, %v2381
        %v2405 = vadd.f32 %v2331, %v2384
        %v2406 = vadd.f32 %v2332, %v2387
        %v2407 = vadd.f32 %v2333, %v2390
        %v2408 = vadd.f32 %v2334, %v2393
        %v2409 = vadd.f32 %v2335, %v2396
        %v2410 = vadd.f32 %v2336, %v2399
        %v2411 = vadd.f32 %v2337, %v2402
        %v2412 = vld [vmem:[%s567] sm:$0xff]
        %v2413 = vld [vmem:[%s567 + $0x10] sm:$0xff]
        %v2414 = vld [vmem:[%s567 + $0x20] sm:$0xff]
        %v2415 = vld [vmem:[%s567 + $0x30] sm:$0xff]
        %v2416 = vld [vmem:[%s567 + $0x40] sm:$0xff]
        %v2417 = vld [vmem:[%s567 + $0x50] sm:$0xff]
        %v2418 = vld [vmem:[%s567 + $0x60] sm:$0xff]
        %v2419 = vld [vmem:[%s567 + $0x70] sm:$0xff]
        %s2420 = scalar_lea.vmem [#allocation14], 1280
        %v2421 = vld [vmem:[%s2420] sm:$0xff]
        %v2422 = vld [vmem:[%s2420 + $0x8] sm:$0xff]
        %v2423 = vld [vmem:[%s2420 + $0x10] sm:$0xff]
        %v2424 = vld [vmem:[%s2420 + $0x18] sm:$0xff]
        %v2425 = vld [vmem:[%s2420 + $0x20] sm:$0xff]
        %v2426 = vld [vmem:[%s2420 + $0x28] sm:$0xff]
        %v2427 = vld [vmem:[%s2420 + $0x30] sm:$0xff]
        %v2428 = vld [vmem:[%s2420 + $0x38] sm:$0xff]
        %v2429 = vld [vmem:[%s2420 + $0x40] sm:$0xff]
        %v2430 = vld [vmem:[%s2420 + $0x48] sm:$0xff]
        %v2431 = vld [vmem:[%s2420 + $0x50] sm:$0xff]
        %v2432 = vld [vmem:[%s2420 + $0x58] sm:$0xff]
        %v2433 = vld [vmem:[%s2420 + $0x60] sm:$0xff]
        %v2434 = vld [vmem:[%s2420 + $0x68] sm:$0xff]
        %v2435 = vld [vmem:[%s2420 + $0x70] sm:$0xff]
        %v2436 = vld [vmem:[%s2420 + $0x78] sm:$0xff]
        %2437 = vmatpush.msra.mxu0 %v2436
        %2438 = vmatpush.msra.mxu0 %v2435
        %2439 = vmatpush.msra.mxu0 %v2434
        %2440 = vmatpush.msra.mxu0 %v2433
        %2441 = vmatpush.msra.mxu0 %v2432
        %2442 = vmatpush.msra.mxu0 %v2431
        %2443 = vmatpush.msra.mxu0 %v2430
        %2444 = vmatpush.msra.mxu0 %v2429
        %2445 = vmatpush.msra.mxu0 %v2428
        %2446 = vmatpush.msra.mxu0 %v2427
        %2447 = vmatpush.msra.mxu0 %v2426
        %2448 = vmatpush.msra.mxu0 %v2425
        %2449 = vmatpush.msra.mxu0 %v2424
        %2450 = vmatpush.msra.mxu0 %v2423
        %2451 = vmatpush.msra.mxu0 %v2422
        %2452 = vmatpush.msra.mxu0 %v2421
        %2453 = vmatmul.f32.gmra.mxu0 %v2412
        %v2454 = vpop.f32.mrf.mxu0
        %v2455 = vadd.f32 0.0, %v2454
        %2456 = vmatmul.f32.gmra.mxu0 %v2413
        %v2457 = vpop.f32.mrf.mxu0
        %v2458 = vadd.f32 0.0, %v2457
        %2459 = vmatmul.f32.gmra.mxu0 %v2414
        %v2460 = vpop.f32.mrf.mxu0
        %v2461 = vadd.f32 0.0, %v2460
        %2462 = vmatmul.f32.gmra.mxu0 %v2415
        %v2463 = vpop.f32.mrf.mxu0
        %v2464 = vadd.f32 0.0, %v2463
        %2465 = vmatmul.f32.gmra.mxu0 %v2416
        %v2466 = vpop.f32.mrf.mxu0
        %v2467 = vadd.f32 0.0, %v2466
        %2468 = vmatmul.f32.gmra.mxu0 %v2417
        %v2469 = vpop.f32.mrf.mxu0
        %v2470 = vadd.f32 0.0, %v2469
        %2471 = vmatmul.f32.gmra.mxu0 %v2418
        %v2472 = vpop.f32.mrf.mxu0
        %v2473 = vadd.f32 0.0, %v2472
        %2474 = vmatmul.f32.gmra.mxu0 %v2419
        %v2475 = vpop.f32.mrf.mxu0
        %v2476 = vadd.f32 0.0, %v2475
        %2477 = vdwg.mxu0
        %v2478 = vadd.f32 %v2404, %v2455
        %v2479 = vadd.f32 %v2405, %v2458
        %v2480 = vadd.f32 %v2406, %v2461
        %v2481 = vadd.f32 %v2407, %v2464
        %v2482 = vadd.f32 %v2408, %v2467
        %v2483 = vadd.f32 %v2409, %v2470
        %v2484 = vadd.f32 %v2410, %v2473
        %v2485 = vadd.f32 %v2411, %v2476
        %v2486 = vld [vmem:[%s567 + $0x1] sm:$0xff]
        %v2487 = vld [vmem:[%s567 + $0x11] sm:$0xff]
        %v2488 = vld [vmem:[%s567 + $0x21] sm:$0xff]
        %v2489 = vld [vmem:[%s567 + $0x31] sm:$0xff]
        %v2490 = vld [vmem:[%s567 + $0x41] sm:$0xff]
        %v2491 = vld [vmem:[%s567 + $0x51] sm:$0xff]
        %v2492 = vld [vmem:[%s567 + $0x61] sm:$0xff]
        %v2493 = vld [vmem:[%s567 + $0x71] sm:$0xff]
        %s2494 = scalar_lea.vmem [#allocation14], 1408
        %v2495 = vld [vmem:[%s2494] sm:$0xff]
        %v2496 = vld [vmem:[%s2494 + $0x8] sm:$0xff]
        %v2497 = vld [vmem:[%s2494 + $0x10] sm:$0xff]
        %v2498 = vld [vmem:[%s2494 + $0x18] sm:$0xff]
        %v2499 = vld [vmem:[%s2494 + $0x20] sm:$0xff]
        %v2500 = vld [vmem:[%s2494 + $0x28] sm:$0xff]
        %v2501 = vld [vmem:[%s2494 + $0x30] sm:$0xff]
        %v2502 = vld [vmem:[%s2494 + $0x38] sm:$0xff]
        %v2503 = vld [vmem:[%s2494 + $0x40] sm:$0xff]
        %v2504 = vld [vmem:[%s2494 + $0x48] sm:$0xff]
        %v2505 = vld [vmem:[%s2494 + $0x50] sm:$0xff]
        %v2506 = vld [vmem:[%s2494 + $0x58] sm:$0xff]
        %v2507 = vld [vmem:[%s2494 + $0x60] sm:$0xff]
        %v2508 = vld [vmem:[%s2494 + $0x68] sm:$0xff]
        %v2509 = vld [vmem:[%s2494 + $0x70] sm:$0xff]
        %v2510 = vld [vmem:[%s2494 + $0x78] sm:$0xff]
        %2511 = vmatpush.msra.mxu0 %v2510
        %2512 = vmatpush.msra.mxu0 %v2509
        %2513 = vmatpush.msra.mxu0 %v2508
        %2514 = vmatpush.msra.mxu0 %v2507
        %2515 = vmatpush.msra.mxu0 %v2506
        %2516 = vmatpush.msra.mxu0 %v2505
        %2517 = vmatpush.msra.mxu0 %v2504
        %2518 = vmatpush.msra.mxu0 %v2503
        %2519 = vmatpush.msra.mxu0 %v2502
        %2520 = vmatpush.msra.mxu0 %v2501
        %2521 = vmatpush.msra.mxu0 %v2500
        %2522 = vmatpush.msra.mxu0 %v2499
        %2523 = vmatpush.msra.mxu0 %v2498
        %2524 = vmatpush.msra.mxu0 %v2497
        %2525 = vmatpush.msra.mxu0 %v2496
        %2526 = vmatpush.msra.mxu0 %v2495
        %2527 = vmatmul.f32.gmra.mxu0 %v2486
        %v2528 = vpop.f32.mrf.mxu0
        %v2529 = vadd.f32 0.0, %v2528
        %2530 = vmatmul.f32.gmra.mxu0 %v2487
        %v2531 = vpop.f32.mrf.mxu0
        %v2532 = vadd.f32 0.0, %v2531
        %2533 = vmatmul.f32.gmra.mxu0 %v2488
        %v2534 = vpop.f32.mrf.mxu0
        %v2535 = vadd.f32 0.0, %v2534
        %2536 = vmatmul.f32.gmra.mxu0 %v2489
        %v2537 = vpop.f32.mrf.mxu0
        %v2538 = vadd.f32 0.0, %v2537
        %2539 = vmatmul.f32.gmra.mxu0 %v2490
        %v2540 = vpop.f32.mrf.mxu0
        %v2541 = vadd.f32 0.0, %v2540
        %2542 = vmatmul.f32.gmra.mxu0 %v2491
        %v2543 = vpop.f32.mrf.mxu0
        %v2544 = vadd.f32 0.0, %v2543
        %2545 = vmatmul.f32.gmra.mxu0 %v2492
        %v2546 = vpop.f32.mrf.mxu0
        %v2547 = vadd.f32 0.0, %v2546
        %2548 = vmatmul.f32.gmra.mxu0 %v2493
        %v2549 = vpop.f32.mrf.mxu0
        %v2550 = vadd.f32 0.0, %v2549
        %2551 = vdwg.mxu0
        %v2552 = vadd.f32 %v2478, %v2529
        %v2553 = vadd.f32 %v2479, %v2532
        %v2554 = vadd.f32 %v2480, %v2535
        %v2555 = vadd.f32 %v2481, %v2538
        %v2556 = vadd.f32 %v2482, %v2541
        %v2557 = vadd.f32 %v2483, %v2544
        %v2558 = vadd.f32 %v2484, %v2547
        %v2559 = vadd.f32 %v2485, %v2550
        %v2560 = vld [vmem:[%s567 + $0x2] sm:$0xff]
        %v2561 = vld [vmem:[%s567 + $0x12] sm:$0xff]
        %v2562 = vld [vmem:[%s567 + $0x22] sm:$0xff]
        %v2563 = vld [vmem:[%s567 + $0x32] sm:$0xff]
        %v2564 = vld [vmem:[%s567 + $0x42] sm:$0xff]
        %v2565 = vld [vmem:[%s567 + $0x52] sm:$0xff]
        %v2566 = vld [vmem:[%s567 + $0x62] sm:$0xff]
        %v2567 = vld [vmem:[%s567 + $0x72] sm:$0xff]
        %s2568 = scalar_lea.vmem [#allocation14], 1536
        %v2569 = vld [vmem:[%s2568] sm:$0xff]
        %v2570 = vld [vmem:[%s2568 + $0x8] sm:$0xff]
        %v2571 = vld [vmem:[%s2568 + $0x10] sm:$0xff]
        %v2572 = vld [vmem:[%s2568 + $0x18] sm:$0xff]
        %v2573 = vld [vmem:[%s2568 + $0x20] sm:$0xff]
        %v2574 = vld [vmem:[%s2568 + $0x28] sm:$0xff]
        %v2575 = vld [vmem:[%s2568 + $0x30] sm:$0xff]
        %v2576 = vld [vmem:[%s2568 + $0x38] sm:$0xff]
        %v2577 = vld [vmem:[%s2568 + $0x40] sm:$0xff]
        %v2578 = vld [vmem:[%s2568 + $0x48] sm:$0xff]
        %v2579 = vld [vmem:[%s2568 + $0x50] sm:$0xff]
        %v2580 = vld [vmem:[%s2568 + $0x58] sm:$0xff]
        %v2581 = vld [vmem:[%s2568 + $0x60] sm:$0xff]
        %v2582 = vld [vmem:[%s2568 + $0x68] sm:$0xff]
        %v2583 = vld [vmem:[%s2568 + $0x70] sm:$0xff]
        %v2584 = vld [vmem:[%s2568 + $0x78] sm:$0xff]
        %2585 = vmatpush.msra.mxu0 %v2584
        %2586 = vmatpush.msra.mxu0 %v2583
        %2587 = vmatpush.msra.mxu0 %v2582
        %2588 = vmatpush.msra.mxu0 %v2581
        %2589 = vmatpush.msra.mxu0 %v2580
        %2590 = vmatpush.msra.mxu0 %v2579
        %2591 = vmatpush.msra.mxu0 %v2578
        %2592 = vmatpush.msra.mxu0 %v2577
        %2593 = vmatpush.msra.mxu0 %v2576
        %2594 = vmatpush.msra.mxu0 %v2575
        %2595 = vmatpush.msra.mxu0 %v2574
        %2596 = vmatpush.msra.mxu0 %v2573
        %2597 = vmatpush.msra.mxu0 %v2572
        %2598 = vmatpush.msra.mxu0 %v2571
        %2599 = vmatpush.msra.mxu0 %v2570
        %2600 = vmatpush.msra.mxu0 %v2569
        %2601 = vmatmul.f32.gmra.mxu0 %v2560
        %v2602 = vpop.f32.mrf.mxu0
        %v2603 = vadd.f32 0.0, %v2602
        %2604 = vmatmul.f32.gmra.mxu0 %v2561
        %v2605 = vpop.f32.mrf.mxu0
        %v2606 = vadd.f32 0.0, %v2605
        %2607 = vmatmul.f32.gmra.mxu0 %v2562
        %v2608 = vpop.f32.mrf.mxu0
        %v2609 = vadd.f32 0.0, %v2608
        %2610 = vmatmul.f32.gmra.mxu0 %v2563
        %v2611 = vpop.f32.mrf.mxu0
        %v2612 = vadd.f32 0.0, %v2611
        %2613 = vmatmul.f32.gmra.mxu0 %v2564
        %v2614 = vpop.f32.mrf.mxu0
        %v2615 = vadd.f32 0.0, %v2614
        %2616 = vmatmul.f32.gmra.mxu0 %v2565
        %v2617 = vpop.f32.mrf.mxu0
        %v2618 = vadd.f32 0.0, %v2617
        %2619 = vmatmul.f32.gmra.mxu0 %v2566
        %v2620 = vpop.f32.mrf.mxu0
        %v2621 = vadd.f32 0.0, %v2620
        %2622 = vmatmul.f32.gmra.mxu0 %v2567
        %v2623 = vpop.f32.mrf.mxu0
        %v2624 = vadd.f32 0.0, %v2623
        %2625 = vdwg.mxu0
        %v2626 = vadd.f32 %v2552, %v2603
        %v2627 = vadd.f32 %v2553, %v2606
        %v2628 = vadd.f32 %v2554, %v2609
        %v2629 = vadd.f32 %v2555, %v2612
        %v2630 = vadd.f32 %v2556, %v2615
        %v2631 = vadd.f32 %v2557, %v2618
        %v2632 = vadd.f32 %v2558, %v2621
        %v2633 = vadd.f32 %v2559, %v2624
        %v2634 = vld [vmem:[%s567 + $0x3] sm:$0xff]
        %v2635 = vld [vmem:[%s567 + $0x13] sm:$0xff]
        %v2636 = vld [vmem:[%s567 + $0x23] sm:$0xff]
        %v2637 = vld [vmem:[%s567 + $0x33] sm:$0xff]
        %v2638 = vld [vmem:[%s567 + $0x43] sm:$0xff]
        %v2639 = vld [vmem:[%s567 + $0x53] sm:$0xff]
        %v2640 = vld [vmem:[%s567 + $0x63] sm:$0xff]
        %v2641 = vld [vmem:[%s567 + $0x73] sm:$0xff]
        %s2642 = scalar_lea.vmem [#allocation14], 1664
        %v2643 = vld [vmem:[%s2642] sm:$0xff]
        %v2644 = vld [vmem:[%s2642 + $0x8] sm:$0xff]
        %v2645 = vld [vmem:[%s2642 + $0x10] sm:$0xff]
        %v2646 = vld [vmem:[%s2642 + $0x18] sm:$0xff]
        %v2647 = vld [vmem:[%s2642 + $0x20] sm:$0xff]
        %v2648 = vld [vmem:[%s2642 + $0x28] sm:$0xff]
        %v2649 = vld [vmem:[%s2642 + $0x30] sm:$0xff]
        %v2650 = vld [vmem:[%s2642 + $0x38] sm:$0xff]
        %v2651 = vld [vmem:[%s2642 + $0x40] sm:$0xff]
        %v2652 = vld [vmem:[%s2642 + $0x48] sm:$0xff]
        %v2653 = vld [vmem:[%s2642 + $0x50] sm:$0xff]
        %v2654 = vld [vmem:[%s2642 + $0x58] sm:$0xff]
        %v2655 = vld [vmem:[%s2642 + $0x60] sm:$0xff]
        %v2656 = vld [vmem:[%s2642 + $0x68] sm:$0xff]
        %v2657 = vld [vmem:[%s2642 + $0x70] sm:$0xff]
        %v2658 = vld [vmem:[%s2642 + $0x78] sm:$0xff]
        %2659 = vmatpush.msra.mxu0 %v2658
        %2660 = vmatpush.msra.mxu0 %v2657
        %2661 = vmatpush.msra.mxu0 %v2656
        %2662 = vmatpush.msra.mxu0 %v2655
        %2663 = vmatpush.msra.mxu0 %v2654
        %2664 = vmatpush.msra.mxu0 %v2653
        %2665 = vmatpush.msra.mxu0 %v2652
        %2666 = vmatpush.msra.mxu0 %v2651
        %2667 = vmatpush.msra.mxu0 %v2650
        %2668 = vmatpush.msra.mxu0 %v2649
        %2669 = vmatpush.msra.mxu0 %v2648
        %2670 = vmatpush.msra.mxu0 %v2647
        %2671 = vmatpush.msra.mxu0 %v2646
        %2672 = vmatpush.msra.mxu0 %v2645
        %2673 = vmatpush.msra.mxu0 %v2644
        %2674 = vmatpush.msra.mxu0 %v2643
        %2675 = vmatmul.f32.gmra.mxu0 %v2634
        %v2676 = vpop.f32.mrf.mxu0
        %v2677 = vadd.f32 0.0, %v2676
        %2678 = vmatmul.f32.gmra.mxu0 %v2635
        %v2679 = vpop.f32.mrf.mxu0
        %v2680 = vadd.f32 0.0, %v2679
        %2681 = vmatmul.f32.gmra.mxu0 %v2636
        %v2682 = vpop.f32.mrf.mxu0
        %v2683 = vadd.f32 0.0, %v2682
        %2684 = vmatmul.f32.gmra.mxu0 %v2637
        %v2685 = vpop.f32.mrf.mxu0
        %v2686 = vadd.f32 0.0, %v2685
        %2687 = vmatmul.f32.gmra.mxu0 %v2638
        %v2688 = vpop.f32.mrf.mxu0
        %v2689 = vadd.f32 0.0, %v2688
        %2690 = vmatmul.f32.gmra.mxu0 %v2639
        %v2691 = vpop.f32.mrf.mxu0
        %v2692 = vadd.f32 0.0, %v2691
        %2693 = vmatmul.f32.gmra.mxu0 %v2640
        %v2694 = vpop.f32.mrf.mxu0
        %v2695 = vadd.f32 0.0, %v2694
        %2696 = vmatmul.f32.gmra.mxu0 %v2641
        %v2697 = vpop.f32.mrf.mxu0
        %v2698 = vadd.f32 0.0, %v2697
        %2699 = vdwg.mxu0
        %v2700 = vadd.f32 %v2626, %v2677
        %v2701 = vadd.f32 %v2627, %v2680
        %v2702 = vadd.f32 %v2628, %v2683
        %v2703 = vadd.f32 %v2629, %v2686
        %v2704 = vadd.f32 %v2630, %v2689
        %v2705 = vadd.f32 %v2631, %v2692
        %v2706 = vadd.f32 %v2632, %v2695
        %v2707 = vadd.f32 %v2633, %v2698
        %v2708 = vld [vmem:[%s567 + $0x4] sm:$0xff]
        %v2709 = vld [vmem:[%s567 + $0x14] sm:$0xff]
        %v2710 = vld [vmem:[%s567 + $0x24] sm:$0xff]
        %v2711 = vld [vmem:[%s567 + $0x34] sm:$0xff]
        %v2712 = vld [vmem:[%s567 + $0x44] sm:$0xff]
        %v2713 = vld [vmem:[%s567 + $0x54] sm:$0xff]
        %v2714 = vld [vmem:[%s567 + $0x64] sm:$0xff]
        %v2715 = vld [vmem:[%s567 + $0x74] sm:$0xff]
        %s2716 = scalar_lea.vmem [#allocation14], 1792
        %v2717 = vld [vmem:[%s2716] sm:$0xff]
        %v2718 = vld [vmem:[%s2716 + $0x8] sm:$0xff]
        %v2719 = vld [vmem:[%s2716 + $0x10] sm:$0xff]
        %v2720 = vld [vmem:[%s2716 + $0x18] sm:$0xff]
        %v2721 = vld [vmem:[%s2716 + $0x20] sm:$0xff]
        %v2722 = vld [vmem:[%s2716 + $0x28] sm:$0xff]
        %v2723 = vld [vmem:[%s2716 + $0x30] sm:$0xff]
        %v2724 = vld [vmem:[%s2716 + $0x38] sm:$0xff]
        %v2725 = vld [vmem:[%s2716 + $0x40] sm:$0xff]
        %v2726 = vld [vmem:[%s2716 + $0x48] sm:$0xff]
        %v2727 = vld [vmem:[%s2716 + $0x50] sm:$0xff]
        %v2728 = vld [vmem:[%s2716 + $0x58] sm:$0xff]
        %v2729 = vld [vmem:[%s2716 + $0x60] sm:$0xff]
        %v2730 = vld [vmem:[%s2716 + $0x68] sm:$0xff]
        %v2731 = vld [vmem:[%s2716 + $0x70] sm:$0xff]
        %v2732 = vld [vmem:[%s2716 + $0x78] sm:$0xff]
        %2733 = vmatpush.msra.mxu0 %v2732
        %2734 = vmatpush.msra.mxu0 %v2731
        %2735 = vmatpush.msra.mxu0 %v2730
        %2736 = vmatpush.msra.mxu0 %v2729
        %2737 = vmatpush.msra.mxu0 %v2728
        %2738 = vmatpush.msra.mxu0 %v2727
        %2739 = vmatpush.msra.mxu0 %v2726
        %2740 = vmatpush.msra.mxu0 %v2725
        %2741 = vmatpush.msra.mxu0 %v2724
        %2742 = vmatpush.msra.mxu0 %v2723
        %2743 = vmatpush.msra.mxu0 %v2722
        %2744 = vmatpush.msra.mxu0 %v2721
        %2745 = vmatpush.msra.mxu0 %v2720
        %2746 = vmatpush.msra.mxu0 %v2719
        %2747 = vmatpush.msra.mxu0 %v2718
        %2748 = vmatpush.msra.mxu0 %v2717
        %2749 = vmatmul.f32.gmra.mxu0 %v2708
        %v2750 = vpop.f32.mrf.mxu0
        %v2751 = vadd.f32 0.0, %v2750
        %2752 = vmatmul.f32.gmra.mxu0 %v2709
        %v2753 = vpop.f32.mrf.mxu0
        %v2754 = vadd.f32 0.0, %v2753
        %2755 = vmatmul.f32.gmra.mxu0 %v2710
        %v2756 = vpop.f32.mrf.mxu0
        %v2757 = vadd.f32 0.0, %v2756
        %2758 = vmatmul.f32.gmra.mxu0 %v2711
        %v2759 = vpop.f32.mrf.mxu0
        %v2760 = vadd.f32 0.0, %v2759
        %2761 = vmatmul.f32.gmra.mxu0 %v2712
        %v2762 = vpop.f32.mrf.mxu0
        %v2763 = vadd.f32 0.0, %v2762
        %2764 = vmatmul.f32.gmra.mxu0 %v2713
        %v2765 = vpop.f32.mrf.mxu0
        %v2766 = vadd.f32 0.0, %v2765
        %2767 = vmatmul.f32.gmra.mxu0 %v2714
        %v2768 = vpop.f32.mrf.mxu0
        %v2769 = vadd.f32 0.0, %v2768
        %2770 = vmatmul.f32.gmra.mxu0 %v2715
        %v2771 = vpop.f32.mrf.mxu0
        %v2772 = vadd.f32 0.0, %v2771
        %2773 = vdwg.mxu0
        %v2774 = vadd.f32 %v2700, %v2751
        %v2775 = vadd.f32 %v2701, %v2754
        %v2776 = vadd.f32 %v2702, %v2757
        %v2777 = vadd.f32 %v2703, %v2760
        %v2778 = vadd.f32 %v2704, %v2763
        %v2779 = vadd.f32 %v2705, %v2766
        %v2780 = vadd.f32 %v2706, %v2769
        %v2781 = vadd.f32 %v2707, %v2772
        %s2782 = scalar_lea.vmem [#allocation3], 48
        %v2783 = vld [vmem:[%s2782] sm:$0xff]
        %v2784 = vld [vmem:[%s2782 + $0x10] sm:$0xff]
        %v2785 = vld [vmem:[%s2782 + $0x20] sm:$0xff]
        %v2786 = vld [vmem:[%s2782 + $0x30] sm:$0xff]
        %v2787 = vld [vmem:[%s2782 + $0x40] sm:$0xff]
        %v2788 = vld [vmem:[%s2782 + $0x50] sm:$0xff]
        %v2789 = vld [vmem:[%s2782 + $0x60] sm:$0xff]
        %v2790 = vld [vmem:[%s2782 + $0x70] sm:$0xff]
        %s2791 = scalar_lea.vmem [#allocation14], 1920
        %v2792 = vld [vmem:[%s2791] sm:$0xff]
        %v2793 = vld [vmem:[%s2791 + $0x8] sm:$0xff]
        %v2794 = vld [vmem:[%s2791 + $0x10] sm:$0xff]
        %v2795 = vld [vmem:[%s2791 + $0x18] sm:$0xff]
        %v2796 = vld [vmem:[%s2791 + $0x20] sm:$0xff]
        %v2797 = vld [vmem:[%s2791 + $0x28] sm:$0xff]
        %v2798 = vld [vmem:[%s2791 + $0x30] sm:$0xff]
        %v2799 = vld [vmem:[%s2791 + $0x38] sm:$0xff]
        %v2800 = vld [vmem:[%s2791 + $0x40] sm:$0xff]
        %v2801 = vld [vmem:[%s2791 + $0x48] sm:$0xff]
        %v2802 = vld [vmem:[%s2791 + $0x50] sm:$0xff]
        %v2803 = vld [vmem:[%s2791 + $0x58] sm:$0xff]
        %v2804 = vld [vmem:[%s2791 + $0x60] sm:$0xff]
        %v2805 = vld [vmem:[%s2791 + $0x68] sm:$0xff]
        %v2806 = vld [vmem:[%s2791 + $0x70] sm:$0xff]
        %v2807 = vld [vmem:[%s2791 + $0x78] sm:$0xff]
        %2808 = vmatpush.msra.mxu0 %v2807
        %2809 = vmatpush.msra.mxu0 %v2806
        %2810 = vmatpush.msra.mxu0 %v2805
        %2811 = vmatpush.msra.mxu0 %v2804
        %2812 = vmatpush.msra.mxu0 %v2803
        %2813 = vmatpush.msra.mxu0 %v2802
        %2814 = vmatpush.msra.mxu0 %v2801
        %2815 = vmatpush.msra.mxu0 %v2800
        %2816 = vmatpush.msra.mxu0 %v2799
        %2817 = vmatpush.msra.mxu0 %v2798
        %2818 = vmatpush.msra.mxu0 %v2797
        %2819 = vmatpush.msra.mxu0 %v2796
        %2820 = vmatpush.msra.mxu0 %v2795
        %2821 = vmatpush.msra.mxu0 %v2794
        %2822 = vmatpush.msra.mxu0 %v2793
        %2823 = vmatpush.msra.mxu0 %v2792
        %2824 = vmatmul.f32.gmra.mxu0 %v2783
        %v2825 = vpop.f32.mrf.mxu0
        %v2826 = vadd.f32 0.0, %v2825
        %2827 = vmatmul.f32.gmra.mxu0 %v2784
        %v2828 = vpop.f32.mrf.mxu0
        %v2829 = vadd.f32 0.0, %v2828
        %2830 = vmatmul.f32.gmra.mxu0 %v2785
        %v2831 = vpop.f32.mrf.mxu0
        %v2832 = vadd.f32 0.0, %v2831
        %2833 = vmatmul.f32.gmra.mxu0 %v2786
        %v2834 = vpop.f32.mrf.mxu0
        %v2835 = vadd.f32 0.0, %v2834
        %2836 = vmatmul.f32.gmra.mxu0 %v2787
        %v2837 = vpop.f32.mrf.mxu0
        %v2838 = vadd.f32 0.0, %v2837
        %2839 = vmatmul.f32.gmra.mxu0 %v2788
        %v2840 = vpop.f32.mrf.mxu0
        %v2841 = vadd.f32 0.0, %v2840
        %2842 = vmatmul.f32.gmra.mxu0 %v2789
        %v2843 = vpop.f32.mrf.mxu0
        %v2844 = vadd.f32 0.0, %v2843
        %2845 = vmatmul.f32.gmra.mxu0 %v2790
        %v2846 = vpop.f32.mrf.mxu0
        %v2847 = vadd.f32 0.0, %v2846
        %2848 = vdwg.mxu0
        %v2849 = vadd.f32 %v2774, %v2826
        %v2850 = vadd.f32 %v2775, %v2829
        %v2851 = vadd.f32 %v2776, %v2832
        %v2852 = vadd.f32 %v2777, %v2835
        %v2853 = vadd.f32 %v2778, %v2838
        %v2854 = vadd.f32 %v2779, %v2841
        %v2855 = vadd.f32 %v2780, %v2844
        %v2856 = vadd.f32 %v2781, %v2847
        %v2857 = vld [vmem:[%s2782 + $0x1] sm:$0xff]
        %v2858 = vld [vmem:[%s2782 + $0x11] sm:$0xff]
        %v2859 = vld [vmem:[%s2782 + $0x21] sm:$0xff]
        %v2860 = vld [vmem:[%s2782 + $0x31] sm:$0xff]
        %v2861 = vld [vmem:[%s2782 + $0x41] sm:$0xff]
        %v2862 = vld [vmem:[%s2782 + $0x51] sm:$0xff]
        %v2863 = vld [vmem:[%s2782 + $0x61] sm:$0xff]
        %v2864 = vld [vmem:[%s2782 + $0x71] sm:$0xff]
        %s2865 = scalar_lea.vmem [#allocation14], 2048
        %v2866 = vld [vmem:[%s2865] sm:$0xff]
        %v2867 = vld [vmem:[%s2865 + $0x8] sm:$0xff]
        %v2868 = vld [vmem:[%s2865 + $0x10] sm:$0xff]
        %v2869 = vld [vmem:[%s2865 + $0x18] sm:$0xff]
        %v2870 = vld [vmem:[%s2865 + $0x20] sm:$0xff]
        %v2871 = vld [vmem:[%s2865 + $0x28] sm:$0xff]
        %v2872 = vld [vmem:[%s2865 + $0x30] sm:$0xff]
        %v2873 = vld [vmem:[%s2865 + $0x38] sm:$0xff]
        %v2874 = vld [vmem:[%s2865 + $0x40] sm:$0xff]
        %v2875 = vld [vmem:[%s2865 + $0x48] sm:$0xff]
        %v2876 = vld [vmem:[%s2865 + $0x50] sm:$0xff]
        %v2877 = vld [vmem:[%s2865 + $0x58] sm:$0xff]
        %v2878 = vld [vmem:[%s2865 + $0x60] sm:$0xff]
        %v2879 = vld [vmem:[%s2865 + $0x68] sm:$0xff]
        %v2880 = vld [vmem:[%s2865 + $0x70] sm:$0xff]
        %v2881 = vld [vmem:[%s2865 + $0x78] sm:$0xff]
        %2882 = vmatpush.msra.mxu0 %v2881
        %2883 = vmatpush.msra.mxu0 %v2880
        %2884 = vmatpush.msra.mxu0 %v2879
        %2885 = vmatpush.msra.mxu0 %v2878
        %2886 = vmatpush.msra.mxu0 %v2877
        %2887 = vmatpush.msra.mxu0 %v2876
        %2888 = vmatpush.msra.mxu0 %v2875
        %2889 = vmatpush.msra.mxu0 %v2874
        %2890 = vmatpush.msra.mxu0 %v2873
        %2891 = vmatpush.msra.mxu0 %v2872
        %2892 = vmatpush.msra.mxu0 %v2871
        %2893 = vmatpush.msra.mxu0 %v2870
        %2894 = vmatpush.msra.mxu0 %v2869
        %2895 = vmatpush.msra.mxu0 %v2868
        %2896 = vmatpush.msra.mxu0 %v2867
        %2897 = vmatpush.msra.mxu0 %v2866
        %2898 = vmatmul.f32.gmra.mxu0 %v2857
        %v2899 = vpop.f32.mrf.mxu0
        %v2900 = vadd.f32 0.0, %v2899
        %2901 = vmatmul.f32.gmra.mxu0 %v2858
        %v2902 = vpop.f32.mrf.mxu0
        %v2903 = vadd.f32 0.0, %v2902
        %2904 = vmatmul.f32.gmra.mxu0 %v2859
        %v2905 = vpop.f32.mrf.mxu0
        %v2906 = vadd.f32 0.0, %v2905
        %2907 = vmatmul.f32.gmra.mxu0 %v2860
        %v2908 = vpop.f32.mrf.mxu0
        %v2909 = vadd.f32 0.0, %v2908
        %2910 = vmatmul.f32.gmra.mxu0 %v2861
        %v2911 = vpop.f32.mrf.mxu0
        %v2912 = vadd.f32 0.0, %v2911
        %2913 = vmatmul.f32.gmra.mxu0 %v2862
        %v2914 = vpop.f32.mrf.mxu0
        %v2915 = vadd.f32 0.0, %v2914
        %2916 = vmatmul.f32.gmra.mxu0 %v2863
        %v2917 = vpop.f32.mrf.mxu0
        %v2918 = vadd.f32 0.0, %v2917
        %2919 = vmatmul.f32.gmra.mxu0 %v2864
        %v2920 = vpop.f32.mrf.mxu0
        %v2921 = vadd.f32 0.0, %v2920
        %2922 = vdwg.mxu0
        %v2923 = vadd.f32 %v2849, %v2900
        %v2924 = vadd.f32 %v2850, %v2903
        %v2925 = vadd.f32 %v2851, %v2906
        %v2926 = vadd.f32 %v2852, %v2909
        %v2927 = vadd.f32 %v2853, %v2912
        %v2928 = vadd.f32 %v2854, %v2915
        %v2929 = vadd.f32 %v2855, %v2918
        %v2930 = vadd.f32 %v2856, %v2921
        %v2931 = vld [vmem:[%s2782 + $0x2] sm:$0xff]
        %v2932 = vld [vmem:[%s2782 + $0x12] sm:$0xff]
        %v2933 = vld [vmem:[%s2782 + $0x22] sm:$0xff]
        %v2934 = vld [vmem:[%s2782 + $0x32] sm:$0xff]
        %v2935 = vld [vmem:[%s2782 + $0x42] sm:$0xff]
        %v2936 = vld [vmem:[%s2782 + $0x52] sm:$0xff]
        %v2937 = vld [vmem:[%s2782 + $0x62] sm:$0xff]
        %v2938 = vld [vmem:[%s2782 + $0x72] sm:$0xff]
        %s2939 = scalar_lea.vmem [#allocation14], 2176
        %v2940 = vld [vmem:[%s2939] sm:$0xff]
        %v2941 = vld [vmem:[%s2939 + $0x8] sm:$0xff]
        %v2942 = vld [vmem:[%s2939 + $0x10] sm:$0xff]
        %v2943 = vld [vmem:[%s2939 + $0x18] sm:$0xff]
        %v2944 = vld [vmem:[%s2939 + $0x20] sm:$0xff]
        %v2945 = vld [vmem:[%s2939 + $0x28] sm:$0xff]
        %v2946 = vld [vmem:[%s2939 + $0x30] sm:$0xff]
        %v2947 = vld [vmem:[%s2939 + $0x38] sm:$0xff]
        %v2948 = vld [vmem:[%s2939 + $0x40] sm:$0xff]
        %v2949 = vld [vmem:[%s2939 + $0x48] sm:$0xff]
        %v2950 = vld [vmem:[%s2939 + $0x50] sm:$0xff]
        %v2951 = vld [vmem:[%s2939 + $0x58] sm:$0xff]
        %v2952 = vld [vmem:[%s2939 + $0x60] sm:$0xff]
        %v2953 = vld [vmem:[%s2939 + $0x68] sm:$0xff]
        %v2954 = vld [vmem:[%s2939 + $0x70] sm:$0xff]
        %v2955 = vld [vmem:[%s2939 + $0x78] sm:$0xff]
        %2956 = vmatpush.msra.mxu0 %v2955
        %2957 = vmatpush.msra.mxu0 %v2954
        %2958 = vmatpush.msra.mxu0 %v2953
        %2959 = vmatpush.msra.mxu0 %v2952
        %2960 = vmatpush.msra.mxu0 %v2951
        %2961 = vmatpush.msra.mxu0 %v2950
        %2962 = vmatpush.msra.mxu0 %v2949
        %2963 = vmatpush.msra.mxu0 %v2948
        %2964 = vmatpush.msra.mxu0 %v2947
        %2965 = vmatpush.msra.mxu0 %v2946
        %2966 = vmatpush.msra.mxu0 %v2945
        %2967 = vmatpush.msra.mxu0 %v2944
        %2968 = vmatpush.msra.mxu0 %v2943
        %2969 = vmatpush.msra.mxu0 %v2942
        %2970 = vmatpush.msra.mxu0 %v2941
        %2971 = vmatpush.msra.mxu0 %v2940
        %2972 = vmatmul.f32.gmra.mxu0 %v2931
        %v2973 = vpop.f32.mrf.mxu0
        %v2974 = vadd.f32 0.0, %v2973
        %2975 = vmatmul.f32.gmra.mxu0 %v2932
        %v2976 = vpop.f32.mrf.mxu0
        %v2977 = vadd.f32 0.0, %v2976
        %2978 = vmatmul.f32.gmra.mxu0 %v2933
        %v2979 = vpop.f32.mrf.mxu0
        %v2980 = vadd.f32 0.0, %v2979
        %2981 = vmatmul.f32.gmra.mxu0 %v2934
        %v2982 = vpop.f32.mrf.mxu0
        %v2983 = vadd.f32 0.0, %v2982
        %2984 = vmatmul.f32.gmra.mxu0 %v2935
        %v2985 = vpop.f32.mrf.mxu0
        %v2986 = vadd.f32 0.0, %v2985
        %2987 = vmatmul.f32.gmra.mxu0 %v2936
        %v2988 = vpop.f32.mrf.mxu0
        %v2989 = vadd.f32 0.0, %v2988
        %2990 = vmatmul.f32.gmra.mxu0 %v2937
        %v2991 = vpop.f32.mrf.mxu0
        %v2992 = vadd.f32 0.0, %v2991
        %2993 = vmatmul.f32.gmra.mxu0 %v2938
        %v2994 = vpop.f32.mrf.mxu0
        %v2995 = vadd.f32 0.0, %v2994
        %2996 = vdwg.mxu0
        %v2997 = vadd.f32 %v2923, %v2974
        %v2998 = vadd.f32 %v2924, %v2977
        %v2999 = vadd.f32 %v2925, %v2980
        %v3000 = vadd.f32 %v2926, %v2983
        %v3001 = vadd.f32 %v2927, %v2986
        %v3002 = vadd.f32 %v2928, %v2989
        %v3003 = vadd.f32 %v2929, %v2992
        %v3004 = vadd.f32 %v2930, %v2995
        %v3005 = vld [vmem:[%s2782 + $0x3] sm:$0xff]
        %v3006 = vld [vmem:[%s2782 + $0x13] sm:$0xff]
        %v3007 = vld [vmem:[%s2782 + $0x23] sm:$0xff]
        %v3008 = vld [vmem:[%s2782 + $0x33] sm:$0xff]
        %v3009 = vld [vmem:[%s2782 + $0x43] sm:$0xff]
        %v3010 = vld [vmem:[%s2782 + $0x53] sm:$0xff]
        %v3011 = vld [vmem:[%s2782 + $0x63] sm:$0xff]
        %v3012 = vld [vmem:[%s2782 + $0x73] sm:$0xff]
        %s3013 = scalar_lea.vmem [#allocation14], 2304
        %v3014 = vld [vmem:[%s3013] sm:$0xff]
        %v3015 = vld [vmem:[%s3013 + $0x8] sm:$0xff]
        %v3016 = vld [vmem:[%s3013 + $0x10] sm:$0xff]
        %v3017 = vld [vmem:[%s3013 + $0x18] sm:$0xff]
        %v3018 = vld [vmem:[%s3013 + $0x20] sm:$0xff]
        %v3019 = vld [vmem:[%s3013 + $0x28] sm:$0xff]
        %v3020 = vld [vmem:[%s3013 + $0x30] sm:$0xff]
        %v3021 = vld [vmem:[%s3013 + $0x38] sm:$0xff]
        %v3022 = vld [vmem:[%s3013 + $0x40] sm:$0xff]
        %v3023 = vld [vmem:[%s3013 + $0x48] sm:$0xff]
        %v3024 = vld [vmem:[%s3013 + $0x50] sm:$0xff]
        %v3025 = vld [vmem:[%s3013 + $0x58] sm:$0xff]
        %v3026 = vld [vmem:[%s3013 + $0x60] sm:$0xff]
        %v3027 = vld [vmem:[%s3013 + $0x68] sm:$0xff]
        %v3028 = vld [vmem:[%s3013 + $0x70] sm:$0xff]
        %v3029 = vld [vmem:[%s3013 + $0x78] sm:$0xff]
        %3030 = vmatpush.msra.mxu0 %v3029
        %3031 = vmatpush.msra.mxu0 %v3028
        %3032 = vmatpush.msra.mxu0 %v3027
        %3033 = vmatpush.msra.mxu0 %v3026
        %3034 = vmatpush.msra.mxu0 %v3025
        %3035 = vmatpush.msra.mxu0 %v3024
        %3036 = vmatpush.msra.mxu0 %v3023
        %3037 = vmatpush.msra.mxu0 %v3022
        %3038 = vmatpush.msra.mxu0 %v3021
        %3039 = vmatpush.msra.mxu0 %v3020
        %3040 = vmatpush.msra.mxu0 %v3019
        %3041 = vmatpush.msra.mxu0 %v3018
        %3042 = vmatpush.msra.mxu0 %v3017
        %3043 = vmatpush.msra.mxu0 %v3016
        %3044 = vmatpush.msra.mxu0 %v3015
        %3045 = vmatpush.msra.mxu0 %v3014
        %3046 = vmatmul.f32.gmra.mxu0 %v3005
        %v3047 = vpop.f32.mrf.mxu0
        %v3048 = vadd.f32 0.0, %v3047
        %3049 = vmatmul.f32.gmra.mxu0 %v3006
        %v3050 = vpop.f32.mrf.mxu0
        %v3051 = vadd.f32 0.0, %v3050
        %3052 = vmatmul.f32.gmra.mxu0 %v3007
        %v3053 = vpop.f32.mrf.mxu0
        %v3054 = vadd.f32 0.0, %v3053
        %3055 = vmatmul.f32.gmra.mxu0 %v3008
        %v3056 = vpop.f32.mrf.mxu0
        %v3057 = vadd.f32 0.0, %v3056
        %3058 = vmatmul.f32.gmra.mxu0 %v3009
        %v3059 = vpop.f32.mrf.mxu0
        %v3060 = vadd.f32 0.0, %v3059
        %3061 = vmatmul.f32.gmra.mxu0 %v3010
        %v3062 = vpop.f32.mrf.mxu0
        %v3063 = vadd.f32 0.0, %v3062
        %3064 = vmatmul.f32.gmra.mxu0 %v3011
        %v3065 = vpop.f32.mrf.mxu0
        %v3066 = vadd.f32 0.0, %v3065
        %3067 = vmatmul.f32.gmra.mxu0 %v3012
        %v3068 = vpop.f32.mrf.mxu0
        %v3069 = vadd.f32 0.0, %v3068
        %3070 = vdwg.mxu0
        %v3071 = vadd.f32 %v2997, %v3048
        %v3072 = vadd.f32 %v2998, %v3051
        %v3073 = vadd.f32 %v2999, %v3054
        %v3074 = vadd.f32 %v3000, %v3057
        %v3075 = vadd.f32 %v3001, %v3060
        %v3076 = vadd.f32 %v3002, %v3063
        %v3077 = vadd.f32 %v3003, %v3066
        %v3078 = vadd.f32 %v3004, %v3069
        %v3079 = vld [vmem:[%s2782 + $0x4] sm:$0xff]
        %v3080 = vld [vmem:[%s2782 + $0x14] sm:$0xff]
        %v3081 = vld [vmem:[%s2782 + $0x24] sm:$0xff]
        %v3082 = vld [vmem:[%s2782 + $0x34] sm:$0xff]
        %v3083 = vld [vmem:[%s2782 + $0x44] sm:$0xff]
        %v3084 = vld [vmem:[%s2782 + $0x54] sm:$0xff]
        %v3085 = vld [vmem:[%s2782 + $0x64] sm:$0xff]
        %v3086 = vld [vmem:[%s2782 + $0x74] sm:$0xff]
        %s3087 = scalar_lea.vmem [#allocation14], 2432
        %v3088 = vld [vmem:[%s3087] sm:$0xff]
        %v3089 = vld [vmem:[%s3087 + $0x8] sm:$0xff]
        %v3090 = vld [vmem:[%s3087 + $0x10] sm:$0xff]
        %v3091 = vld [vmem:[%s3087 + $0x18] sm:$0xff]
        %v3092 = vld [vmem:[%s3087 + $0x20] sm:$0xff]
        %v3093 = vld [vmem:[%s3087 + $0x28] sm:$0xff]
        %v3094 = vld [vmem:[%s3087 + $0x30] sm:$0xff]
        %v3095 = vld [vmem:[%s3087 + $0x38] sm:$0xff]
        %v3096 = vld [vmem:[%s3087 + $0x40] sm:$0xff]
        %v3097 = vld [vmem:[%s3087 + $0x48] sm:$0xff]
        %v3098 = vld [vmem:[%s3087 + $0x50] sm:$0xff]
        %v3099 = vld [vmem:[%s3087 + $0x58] sm:$0xff]
        %v3100 = vld [vmem:[%s3087 + $0x60] sm:$0xff]
        %v3101 = vld [vmem:[%s3087 + $0x68] sm:$0xff]
        %v3102 = vld [vmem:[%s3087 + $0x70] sm:$0xff]
        %v3103 = vld [vmem:[%s3087 + $0x78] sm:$0xff]
        %3104 = vmatpush.msra.mxu0 %v3103
        %3105 = vmatpush.msra.mxu0 %v3102
        %3106 = vmatpush.msra.mxu0 %v3101
        %3107 = vmatpush.msra.mxu0 %v3100
        %3108 = vmatpush.msra.mxu0 %v3099
        %3109 = vmatpush.msra.mxu0 %v3098
        %3110 = vmatpush.msra.mxu0 %v3097
        %3111 = vmatpush.msra.mxu0 %v3096
        %3112 = vmatpush.msra.mxu0 %v3095
        %3113 = vmatpush.msra.mxu0 %v3094
        %3114 = vmatpush.msra.mxu0 %v3093
        %3115 = vmatpush.msra.mxu0 %v3092
        %3116 = vmatpush.msra.mxu0 %v3091
        %3117 = vmatpush.msra.mxu0 %v3090
        %3118 = vmatpush.msra.mxu0 %v3089
        %3119 = vmatpush.msra.mxu0 %v3088
        %3120 = vmatmul.f32.gmra.mxu0 %v3079
        %v3121 = vpop.f32.mrf.mxu0
        %v3122 = vadd.f32 0.0, %v3121
        %3123 = vmatmul.f32.gmra.mxu0 %v3080
        %v3124 = vpop.f32.mrf.mxu0
        %v3125 = vadd.f32 0.0, %v3124
        %3126 = vmatmul.f32.gmra.mxu0 %v3081
        %v3127 = vpop.f32.mrf.mxu0
        %v3128 = vadd.f32 0.0, %v3127
        %3129 = vmatmul.f32.gmra.mxu0 %v3082
        %v3130 = vpop.f32.mrf.mxu0
        %v3131 = vadd.f32 0.0, %v3130
        %3132 = vmatmul.f32.gmra.mxu0 %v3083
        %v3133 = vpop.f32.mrf.mxu0
        %v3134 = vadd.f32 0.0, %v3133
        %3135 = vmatmul.f32.gmra.mxu0 %v3084
        %v3136 = vpop.f32.mrf.mxu0
        %v3137 = vadd.f32 0.0, %v3136
        %3138 = vmatmul.f32.gmra.mxu0 %v3085
        %v3139 = vpop.f32.mrf.mxu0
        %v3140 = vadd.f32 0.0, %v3139
        %3141 = vmatmul.f32.gmra.mxu0 %v3086
        %v3142 = vpop.f32.mrf.mxu0
        %v3143 = vadd.f32 0.0, %v3142
        %3144 = vdwg.mxu0
        %v3145 = vadd.f32 %v3071, %v3122
        %v3146 = vadd.f32 %v3072, %v3125
        %v3147 = vadd.f32 %v3073, %v3128
        %v3148 = vadd.f32 %v3074, %v3131
        %v3149 = vadd.f32 %v3075, %v3134
        %v3150 = vadd.f32 %v3076, %v3137
        %v3151 = vadd.f32 %v3077, %v3140
        %v3152 = vadd.f32 %v3078, %v3143
        %s3153 = scalar_lea.vmem [#allocation3], 64
        %v3154 = vld [vmem:[%s3153] sm:$0xff]
        %v3155 = vld [vmem:[%s3153 + $0x10] sm:$0xff]
        %v3156 = vld [vmem:[%s3153 + $0x20] sm:$0xff]
        %v3157 = vld [vmem:[%s3153 + $0x30] sm:$0xff]
        %v3158 = vld [vmem:[%s3153 + $0x40] sm:$0xff]
        %v3159 = vld [vmem:[%s3153 + $0x50] sm:$0xff]
        %v3160 = vld [vmem:[%s3153 + $0x60] sm:$0xff]
        %v3161 = vld [vmem:[%s3153 + $0x70] sm:$0xff]
        %s3162 = scalar_lea.vmem [#allocation14], 2560
        %v3163 = vld [vmem:[%s3162] sm:$0xff]
        %v3164 = vld [vmem:[%s3162 + $0x8] sm:$0xff]
        %v3165 = vld [vmem:[%s3162 + $0x10] sm:$0xff]
        %v3166 = vld [vmem:[%s3162 + $0x18] sm:$0xff]
        %v3167 = vld [vmem:[%s3162 + $0x20] sm:$0xff]
        %v3168 = vld [vmem:[%s3162 + $0x28] sm:$0xff]
        %v3169 = vld [vmem:[%s3162 + $0x30] sm:$0xff]
        %v3170 = vld [vmem:[%s3162 + $0x38] sm:$0xff]
        %v3171 = vld [vmem:[%s3162 + $0x40] sm:$0xff]
        %v3172 = vld [vmem:[%s3162 + $0x48] sm:$0xff]
        %v3173 = vld [vmem:[%s3162 + $0x50] sm:$0xff]
        %v3174 = vld [vmem:[%s3162 + $0x58] sm:$0xff]
        %v3175 = vld [vmem:[%s3162 + $0x60] sm:$0xff]
        %v3176 = vld [vmem:[%s3162 + $0x68] sm:$0xff]
        %v3177 = vld [vmem:[%s3162 + $0x70] sm:$0xff]
        %v3178 = vld [vmem:[%s3162 + $0x78] sm:$0xff]
        %3179 = vmatpush.msra.mxu0 %v3178
        %3180 = vmatpush.msra.mxu0 %v3177
        %3181 = vmatpush.msra.mxu0 %v3176
        %3182 = vmatpush.msra.mxu0 %v3175
        %3183 = vmatpush.msra.mxu0 %v3174
        %3184 = vmatpush.msra.mxu0 %v3173
        %3185 = vmatpush.msra.mxu0 %v3172
        %3186 = vmatpush.msra.mxu0 %v3171
        %3187 = vmatpush.msra.mxu0 %v3170
        %3188 = vmatpush.msra.mxu0 %v3169
        %3189 = vmatpush.msra.mxu0 %v3168
        %3190 = vmatpush.msra.mxu0 %v3167
        %3191 = vmatpush.msra.mxu0 %v3166
        %3192 = vmatpush.msra.mxu0 %v3165
        %3193 = vmatpush.msra.mxu0 %v3164
        %3194 = vmatpush.msra.mxu0 %v3163
        %3195 = vmatmul.f32.gmra.mxu0 %v3154
        %v3196 = vpop.f32.mrf.mxu0
        %v3197 = vadd.f32 0.0, %v3196
        %3198 = vmatmul.f32.gmra.mxu0 %v3155
        %v3199 = vpop.f32.mrf.mxu0
        %v3200 = vadd.f32 0.0, %v3199
        %3201 = vmatmul.f32.gmra.mxu0 %v3156
        %v3202 = vpop.f32.mrf.mxu0
        %v3203 = vadd.f32 0.0, %v3202
        %3204 = vmatmul.f32.gmra.mxu0 %v3157
        %v3205 = vpop.f32.mrf.mxu0
        %v3206 = vadd.f32 0.0, %v3205
        %3207 = vmatmul.f32.gmra.mxu0 %v3158
        %v3208 = vpop.f32.mrf.mxu0
        %v3209 = vadd.f32 0.0, %v3208
        %3210 = vmatmul.f32.gmra.mxu0 %v3159
        %v3211 = vpop.f32.mrf.mxu0
        %v3212 = vadd.f32 0.0, %v3211
        %3213 = vmatmul.f32.gmra.mxu0 %v3160
        %v3214 = vpop.f32.mrf.mxu0
        %v3215 = vadd.f32 0.0, %v3214
        %3216 = vmatmul.f32.gmra.mxu0 %v3161
        %v3217 = vpop.f32.mrf.mxu0
        %v3218 = vadd.f32 0.0, %v3217
        %3219 = vdwg.mxu0
        %v3220 = vadd.f32 %v3145, %v3197
        %v3221 = vadd.f32 %v3146, %v3200
        %v3222 = vadd.f32 %v3147, %v3203
        %v3223 = vadd.f32 %v3148, %v3206
        %v3224 = vadd.f32 %v3149, %v3209
        %v3225 = vadd.f32 %v3150, %v3212
        %v3226 = vadd.f32 %v3151, %v3215
        %v3227 = vadd.f32 %v3152, %v3218
        %v3228 = vld [vmem:[%s3153 + $0x1] sm:$0xff]
        %v3229 = vld [vmem:[%s3153 + $0x11] sm:$0xff]
        %v3230 = vld [vmem:[%s3153 + $0x21] sm:$0xff]
        %v3231 = vld [vmem:[%s3153 + $0x31] sm:$0xff]
        %v3232 = vld [vmem:[%s3153 + $0x41] sm:$0xff]
        %v3233 = vld [vmem:[%s3153 + $0x51] sm:$0xff]
        %v3234 = vld [vmem:[%s3153 + $0x61] sm:$0xff]
        %v3235 = vld [vmem:[%s3153 + $0x71] sm:$0xff]
        %s3236 = scalar_lea.vmem [#allocation14], 2688
        %v3237 = vld [vmem:[%s3236] sm:$0xff]
        %v3238 = vld [vmem:[%s3236 + $0x8] sm:$0xff]
        %v3239 = vld [vmem:[%s3236 + $0x10] sm:$0xff]
        %v3240 = vld [vmem:[%s3236 + $0x18] sm:$0xff]
        %v3241 = vld [vmem:[%s3236 + $0x20] sm:$0xff]
        %v3242 = vld [vmem:[%s3236 + $0x28] sm:$0xff]
        %v3243 = vld [vmem:[%s3236 + $0x30] sm:$0xff]
        %v3244 = vld [vmem:[%s3236 + $0x38] sm:$0xff]
        %v3245 = vld [vmem:[%s3236 + $0x40] sm:$0xff]
        %v3246 = vld [vmem:[%s3236 + $0x48] sm:$0xff]
        %v3247 = vld [vmem:[%s3236 + $0x50] sm:$0xff]
        %v3248 = vld [vmem:[%s3236 + $0x58] sm:$0xff]
        %v3249 = vld [vmem:[%s3236 + $0x60] sm:$0xff]
        %v3250 = vld [vmem:[%s3236 + $0x68] sm:$0xff]
        %v3251 = vld [vmem:[%s3236 + $0x70] sm:$0xff]
        %v3252 = vld [vmem:[%s3236 + $0x78] sm:$0xff]
        %3253 = vmatpush.msra.mxu0 %v3252
        %3254 = vmatpush.msra.mxu0 %v3251
        %3255 = vmatpush.msra.mxu0 %v3250
        %3256 = vmatpush.msra.mxu0 %v3249
        %3257 = vmatpush.msra.mxu0 %v3248
        %3258 = vmatpush.msra.mxu0 %v3247
        %3259 = vmatpush.msra.mxu0 %v3246
        %3260 = vmatpush.msra.mxu0 %v3245
        %3261 = vmatpush.msra.mxu0 %v3244
        %3262 = vmatpush.msra.mxu0 %v3243
        %3263 = vmatpush.msra.mxu0 %v3242
        %3264 = vmatpush.msra.mxu0 %v3241
        %3265 = vmatpush.msra.mxu0 %v3240
        %3266 = vmatpush.msra.mxu0 %v3239
        %3267 = vmatpush.msra.mxu0 %v3238
        %3268 = vmatpush.msra.mxu0 %v3237
        %3269 = vmatmul.f32.gmra.mxu0 %v3228
        %v3270 = vpop.f32.mrf.mxu0
        %v3271 = vadd.f32 0.0, %v3270
        %3272 = vmatmul.f32.gmra.mxu0 %v3229
        %v3273 = vpop.f32.mrf.mxu0
        %v3274 = vadd.f32 0.0, %v3273
        %3275 = vmatmul.f32.gmra.mxu0 %v3230
        %v3276 = vpop.f32.mrf.mxu0
        %v3277 = vadd.f32 0.0, %v3276
        %3278 = vmatmul.f32.gmra.mxu0 %v3231
        %v3279 = vpop.f32.mrf.mxu0
        %v3280 = vadd.f32 0.0, %v3279
        %3281 = vmatmul.f32.gmra.mxu0 %v3232
        %v3282 = vpop.f32.mrf.mxu0
        %v3283 = vadd.f32 0.0, %v3282
        %3284 = vmatmul.f32.gmra.mxu0 %v3233
        %v3285 = vpop.f32.mrf.mxu0
        %v3286 = vadd.f32 0.0, %v3285
        %3287 = vmatmul.f32.gmra.mxu0 %v3234
        %v3288 = vpop.f32.mrf.mxu0
        %v3289 = vadd.f32 0.0, %v3288
        %3290 = vmatmul.f32.gmra.mxu0 %v3235
        %v3291 = vpop.f32.mrf.mxu0
        %v3292 = vadd.f32 0.0, %v3291
        %3293 = vdwg.mxu0
        %v3294 = vadd.f32 %v3220, %v3271
        %v3295 = vadd.f32 %v3221, %v3274
        %v3296 = vadd.f32 %v3222, %v3277
        %v3297 = vadd.f32 %v3223, %v3280
        %v3298 = vadd.f32 %v3224, %v3283
        %v3299 = vadd.f32 %v3225, %v3286
        %v3300 = vadd.f32 %v3226, %v3289
        %v3301 = vadd.f32 %v3227, %v3292
        %v3302 = vld [vmem:[%s3153 + $0x2] sm:$0xff]
        %v3303 = vld [vmem:[%s3153 + $0x12] sm:$0xff]
        %v3304 = vld [vmem:[%s3153 + $0x22] sm:$0xff]
        %v3305 = vld [vmem:[%s3153 + $0x32] sm:$0xff]
        %v3306 = vld [vmem:[%s3153 + $0x42] sm:$0xff]
        %v3307 = vld [vmem:[%s3153 + $0x52] sm:$0xff]
        %v3308 = vld [vmem:[%s3153 + $0x62] sm:$0xff]
        %v3309 = vld [vmem:[%s3153 + $0x72] sm:$0xff]
        %s3310 = scalar_lea.vmem [#allocation14], 2816
        %v3311 = vld [vmem:[%s3310] sm:$0xff]
        %v3312 = vld [vmem:[%s3310 + $0x8] sm:$0xff]
        %v3313 = vld [vmem:[%s3310 + $0x10] sm:$0xff]
        %v3314 = vld [vmem:[%s3310 + $0x18] sm:$0xff]
        %v3315 = vld [vmem:[%s3310 + $0x20] sm:$0xff]
        %v3316 = vld [vmem:[%s3310 + $0x28] sm:$0xff]
        %v3317 = vld [vmem:[%s3310 + $0x30] sm:$0xff]
        %v3318 = vld [vmem:[%s3310 + $0x38] sm:$0xff]
        %v3319 = vld [vmem:[%s3310 + $0x40] sm:$0xff]
        %v3320 = vld [vmem:[%s3310 + $0x48] sm:$0xff]
        %v3321 = vld [vmem:[%s3310 + $0x50] sm:$0xff]
        %v3322 = vld [vmem:[%s3310 + $0x58] sm:$0xff]
        %v3323 = vld [vmem:[%s3310 + $0x60] sm:$0xff]
        %v3324 = vld [vmem:[%s3310 + $0x68] sm:$0xff]
        %v3325 = vld [vmem:[%s3310 + $0x70] sm:$0xff]
        %v3326 = vld [vmem:[%s3310 + $0x78] sm:$0xff]
        %3327 = vmatpush.msra.mxu0 %v3326
        %3328 = vmatpush.msra.mxu0 %v3325
        %3329 = vmatpush.msra.mxu0 %v3324
        %3330 = vmatpush.msra.mxu0 %v3323
        %3331 = vmatpush.msra.mxu0 %v3322
        %3332 = vmatpush.msra.mxu0 %v3321
        %3333 = vmatpush.msra.mxu0 %v3320
        %3334 = vmatpush.msra.mxu0 %v3319
        %3335 = vmatpush.msra.mxu0 %v3318
        %3336 = vmatpush.msra.mxu0 %v3317
        %3337 = vmatpush.msra.mxu0 %v3316
        %3338 = vmatpush.msra.mxu0 %v3315
        %3339 = vmatpush.msra.mxu0 %v3314
        %3340 = vmatpush.msra.mxu0 %v3313
        %3341 = vmatpush.msra.mxu0 %v3312
        %3342 = vmatpush.msra.mxu0 %v3311
        %3343 = vmatmul.f32.gmra.mxu0 %v3302
        %v3344 = vpop.f32.mrf.mxu0
        %v3345 = vadd.f32 0.0, %v3344
        %3346 = vmatmul.f32.gmra.mxu0 %v3303
        %v3347 = vpop.f32.mrf.mxu0
        %v3348 = vadd.f32 0.0, %v3347
        %3349 = vmatmul.f32.gmra.mxu0 %v3304
        %v3350 = vpop.f32.mrf.mxu0
        %v3351 = vadd.f32 0.0, %v3350
        %3352 = vmatmul.f32.gmra.mxu0 %v3305
        %v3353 = vpop.f32.mrf.mxu0
        %v3354 = vadd.f32 0.0, %v3353
        %3355 = vmatmul.f32.gmra.mxu0 %v3306
        %v3356 = vpop.f32.mrf.mxu0
        %v3357 = vadd.f32 0.0, %v3356
        %3358 = vmatmul.f32.gmra.mxu0 %v3307
        %v3359 = vpop.f32.mrf.mxu0
        %v3360 = vadd.f32 0.0, %v3359
        %3361 = vmatmul.f32.gmra.mxu0 %v3308
        %v3362 = vpop.f32.mrf.mxu0
        %v3363 = vadd.f32 0.0, %v3362
        %3364 = vmatmul.f32.gmra.mxu0 %v3309
        %v3365 = vpop.f32.mrf.mxu0
        %v3366 = vadd.f32 0.0, %v3365
        %3367 = vdwg.mxu0
        %v3368 = vadd.f32 %v3294, %v3345
        %v3369 = vadd.f32 %v3295, %v3348
        %v3370 = vadd.f32 %v3296, %v3351
        %v3371 = vadd.f32 %v3297, %v3354
        %v3372 = vadd.f32 %v3298, %v3357
        %v3373 = vadd.f32 %v3299, %v3360
        %v3374 = vadd.f32 %v3300, %v3363
        %v3375 = vadd.f32 %v3301, %v3366
        %v3376 = vld [vmem:[%s3153 + $0x3] sm:$0xff]
        %v3377 = vld [vmem:[%s3153 + $0x13] sm:$0xff]
        %v3378 = vld [vmem:[%s3153 + $0x23] sm:$0xff]
        %v3379 = vld [vmem:[%s3153 + $0x33] sm:$0xff]
        %v3380 = vld [vmem:[%s3153 + $0x43] sm:$0xff]
        %v3381 = vld [vmem:[%s3153 + $0x53] sm:$0xff]
        %v3382 = vld [vmem:[%s3153 + $0x63] sm:$0xff]
        %v3383 = vld [vmem:[%s3153 + $0x73] sm:$0xff]
        %s3384 = scalar_lea.vmem [#allocation14], 2944
        %v3385 = vld [vmem:[%s3384] sm:$0xff]
        %v3386 = vld [vmem:[%s3384 + $0x8] sm:$0xff]
        %v3387 = vld [vmem:[%s3384 + $0x10] sm:$0xff]
        %v3388 = vld [vmem:[%s3384 + $0x18] sm:$0xff]
        %v3389 = vld [vmem:[%s3384 + $0x20] sm:$0xff]
        %v3390 = vld [vmem:[%s3384 + $0x28] sm:$0xff]
        %v3391 = vld [vmem:[%s3384 + $0x30] sm:$0xff]
        %v3392 = vld [vmem:[%s3384 + $0x38] sm:$0xff]
        %v3393 = vld [vmem:[%s3384 + $0x40] sm:$0xff]
        %v3394 = vld [vmem:[%s3384 + $0x48] sm:$0xff]
        %v3395 = vld [vmem:[%s3384 + $0x50] sm:$0xff]
        %v3396 = vld [vmem:[%s3384 + $0x58] sm:$0xff]
        %v3397 = vld [vmem:[%s3384 + $0x60] sm:$0xff]
        %v3398 = vld [vmem:[%s3384 + $0x68] sm:$0xff]
        %v3399 = vld [vmem:[%s3384 + $0x70] sm:$0xff]
        %v3400 = vld [vmem:[%s3384 + $0x78] sm:$0xff]
        %3401 = vmatpush.msra.mxu0 %v3400
        %3402 = vmatpush.msra.mxu0 %v3399
        %3403 = vmatpush.msra.mxu0 %v3398
        %3404 = vmatpush.msra.mxu0 %v3397
        %3405 = vmatpush.msra.mxu0 %v3396
        %3406 = vmatpush.msra.mxu0 %v3395
        %3407 = vmatpush.msra.mxu0 %v3394
        %3408 = vmatpush.msra.mxu0 %v3393
        %3409 = vmatpush.msra.mxu0 %v3392
        %3410 = vmatpush.msra.mxu0 %v3391
        %3411 = vmatpush.msra.mxu0 %v3390
        %3412 = vmatpush.msra.mxu0 %v3389
        %3413 = vmatpush.msra.mxu0 %v3388
        %3414 = vmatpush.msra.mxu0 %v3387
        %3415 = vmatpush.msra.mxu0 %v3386
        %3416 = vmatpush.msra.mxu0 %v3385
        %3417 = vmatmul.f32.gmra.mxu0 %v3376
        %v3418 = vpop.f32.mrf.mxu0
        %v3419 = vadd.f32 0.0, %v3418
        %3420 = vmatmul.f32.gmra.mxu0 %v3377
        %v3421 = vpop.f32.mrf.mxu0
        %v3422 = vadd.f32 0.0, %v3421
        %3423 = vmatmul.f32.gmra.mxu0 %v3378
        %v3424 = vpop.f32.mrf.mxu0
        %v3425 = vadd.f32 0.0, %v3424
        %3426 = vmatmul.f32.gmra.mxu0 %v3379
        %v3427 = vpop.f32.mrf.mxu0
        %v3428 = vadd.f32 0.0, %v3427
        %3429 = vmatmul.f32.gmra.mxu0 %v3380
        %v3430 = vpop.f32.mrf.mxu0
        %v3431 = vadd.f32 0.0, %v3430
        %3432 = vmatmul.f32.gmra.mxu0 %v3381
        %v3433 = vpop.f32.mrf.mxu0
        %v3434 = vadd.f32 0.0, %v3433
        %3435 = vmatmul.f32.gmra.mxu0 %v3382
        %v3436 = vpop.f32.mrf.mxu0
        %v3437 = vadd.f32 0.0, %v3436
        %3438 = vmatmul.f32.gmra.mxu0 %v3383
        %v3439 = vpop.f32.mrf.mxu0
        %v3440 = vadd.f32 0.0, %v3439
        %3441 = vdwg.mxu0
        %v3442 = vadd.f32 %v3368, %v3419
        %v3443 = vadd.f32 %v3369, %v3422
        %v3444 = vadd.f32 %v3370, %v3425
        %v3445 = vadd.f32 %v3371, %v3428
        %v3446 = vadd.f32 %v3372, %v3431
        %v3447 = vadd.f32 %v3373, %v3434
        %v3448 = vadd.f32 %v3374, %v3437
        %v3449 = vadd.f32 %v3375, %v3440
        %v3450 = vld [vmem:[%s3153 + $0x4] sm:$0xff]
        %v3451 = vld [vmem:[%s3153 + $0x14] sm:$0xff]
        %v3452 = vld [vmem:[%s3153 + $0x24] sm:$0xff]
        %v3453 = vld [vmem:[%s3153 + $0x34] sm:$0xff]
        %v3454 = vld [vmem:[%s3153 + $0x44] sm:$0xff]
        %v3455 = vld [vmem:[%s3153 + $0x54] sm:$0xff]
        %v3456 = vld [vmem:[%s3153 + $0x64] sm:$0xff]
        %v3457 = vld [vmem:[%s3153 + $0x74] sm:$0xff]
        %s3458 = scalar_lea.vmem [#allocation14], 3072
        %v3459 = vld [vmem:[%s3458] sm:$0xff]
        %v3460 = vld [vmem:[%s3458 + $0x8] sm:$0xff]
        %v3461 = vld [vmem:[%s3458 + $0x10] sm:$0xff]
        %v3462 = vld [vmem:[%s3458 + $0x18] sm:$0xff]
        %v3463 = vld [vmem:[%s3458 + $0x20] sm:$0xff]
        %v3464 = vld [vmem:[%s3458 + $0x28] sm:$0xff]
        %v3465 = vld [vmem:[%s3458 + $0x30] sm:$0xff]
        %v3466 = vld [vmem:[%s3458 + $0x38] sm:$0xff]
        %v3467 = vld [vmem:[%s3458 + $0x40] sm:$0xff]
        %v3468 = vld [vmem:[%s3458 + $0x48] sm:$0xff]
        %v3469 = vld [vmem:[%s3458 + $0x50] sm:$0xff]
        %v3470 = vld [vmem:[%s3458 + $0x58] sm:$0xff]
        %v3471 = vld [vmem:[%s3458 + $0x60] sm:$0xff]
        %v3472 = vld [vmem:[%s3458 + $0x68] sm:$0xff]
        %v3473 = vld [vmem:[%s3458 + $0x70] sm:$0xff]
        %v3474 = vld [vmem:[%s3458 + $0x78] sm:$0xff]
        %3475 = vmatpush.msra.mxu0 %v3474
        %3476 = vmatpush.msra.mxu0 %v3473
        %3477 = vmatpush.msra.mxu0 %v3472
        %3478 = vmatpush.msra.mxu0 %v3471
        %3479 = vmatpush.msra.mxu0 %v3470
        %3480 = vmatpush.msra.mxu0 %v3469
        %3481 = vmatpush.msra.mxu0 %v3468
        %3482 = vmatpush.msra.mxu0 %v3467
        %3483 = vmatpush.msra.mxu0 %v3466
        %3484 = vmatpush.msra.mxu0 %v3465
        %3485 = vmatpush.msra.mxu0 %v3464
        %3486 = vmatpush.msra.mxu0 %v3463
        %3487 = vmatpush.msra.mxu0 %v3462
        %3488 = vmatpush.msra.mxu0 %v3461
        %3489 = vmatpush.msra.mxu0 %v3460
        %3490 = vmatpush.msra.mxu0 %v3459
        %3491 = vmatmul.f32.gmra.mxu0 %v3450
        %v3492 = vpop.f32.mrf.mxu0
        %v3493 = vadd.f32 0.0, %v3492
        %3494 = vmatmul.f32.gmra.mxu0 %v3451
        %v3495 = vpop.f32.mrf.mxu0
        %v3496 = vadd.f32 0.0, %v3495
        %3497 = vmatmul.f32.gmra.mxu0 %v3452
        %v3498 = vpop.f32.mrf.mxu0
        %v3499 = vadd.f32 0.0, %v3498
        %3500 = vmatmul.f32.gmra.mxu0 %v3453
        %v3501 = vpop.f32.mrf.mxu0
        %v3502 = vadd.f32 0.0, %v3501
        %3503 = vmatmul.f32.gmra.mxu0 %v3454
        %v3504 = vpop.f32.mrf.mxu0
        %v3505 = vadd.f32 0.0, %v3504
        %3506 = vmatmul.f32.gmra.mxu0 %v3455
        %v3507 = vpop.f32.mrf.mxu0
        %v3508 = vadd.f32 0.0, %v3507
        %3509 = vmatmul.f32.gmra.mxu0 %v3456
        %v3510 = vpop.f32.mrf.mxu0
        %v3511 = vadd.f32 0.0, %v3510
        %3512 = vmatmul.f32.gmra.mxu0 %v3457
        %v3513 = vpop.f32.mrf.mxu0
        %v3514 = vadd.f32 0.0, %v3513
        %3515 = vdwg.mxu0
        %v3516 = vadd.f32 %v3442, %v3493
        %v3517 = vadd.f32 %v3443, %v3496
        %v3518 = vadd.f32 %v3444, %v3499
        %v3519 = vadd.f32 %v3445, %v3502
        %v3520 = vadd.f32 %v3446, %v3505
        %v3521 = vadd.f32 %v3447, %v3508
        %v3522 = vadd.f32 %v3448, %v3511
        %v3523 = vadd.f32 %v3449, %v3514
        %v3524 = vld [vmem:[#allocation5] sm:$0xff]
        %v3525 = vld [vmem:[#allocation5 + $0x8] sm:$0xff]
        %v3526 = vld [vmem:[#allocation5 + $0x10] sm:$0xff]
        %v3527 = vld [vmem:[#allocation5 + $0x18] sm:$0xff]
        %v3528 = vld [vmem:[#allocation5 + $0x20] sm:$0xff]
        %v3529 = vld [vmem:[#allocation5 + $0x28] sm:$0xff]
        %v3530 = vld [vmem:[#allocation5 + $0x30] sm:$0xff]
        %v3531 = vld [vmem:[#allocation5 + $0x38] sm:$0xff]
        %v3532 = vld [vmem:[#allocation15] sm:$0xff]
        %v3533 = vld [vmem:[#allocation15 + $0x8] sm:$0xff]
        %v3534 = vld [vmem:[#allocation15 + $0x10] sm:$0xff]
        %v3535 = vld [vmem:[#allocation15 + $0x18] sm:$0xff]
        %v3536 = vld [vmem:[#allocation15 + $0x20] sm:$0xff]
        %v3537 = vld [vmem:[#allocation15 + $0x28] sm:$0xff]
        %v3538 = vld [vmem:[#allocation15 + $0x30] sm:$0xff]
        %v3539 = vld [vmem:[#allocation15 + $0x38] sm:$0xff]
        %v3540 = vld [vmem:[#allocation15 + $0x40] sm:$0xff]
        %v3541 = vld [vmem:[#allocation15 + $0x48] sm:$0xff]
        %v3542 = vld [vmem:[#allocation15 + $0x50] sm:$0xff]
        %v3543 = vld [vmem:[#allocation15 + $0x58] sm:$0xff]
        %v3544 = vld [vmem:[#allocation15 + $0x60] sm:$0xff]
        %v3545 = vld [vmem:[#allocation15 + $0x68] sm:$0xff]
        %v3546 = vld [vmem:[#allocation15 + $0x70] sm:$0xff]
        %v3547 = vld [vmem:[#allocation15 + $0x78] sm:$0xff]
        %v3548 = vld [vmem:[#allocation15 + $0x80] sm:$0xff]
        %v3549 = vld [vmem:[#allocation15 + $0x88] sm:$0xff]
        %v3550 = vld [vmem:[#allocation15 + $0x90] sm:$0xff]
        %v3551 = vld [vmem:[#allocation15 + $0x98] sm:$0xff]
        %v3552 = vld [vmem:[#allocation15 + $0xa0] sm:$0xff]
        %v3553 = vld [vmem:[#allocation15 + $0xa8] sm:$0xff]
        %v3554 = vld [vmem:[#allocation15 + $0xb0] sm:$0xff]
        %v3555 = vld [vmem:[#allocation15 + $0xb8] sm:$0xff]
        %v3556 = vld [vmem:[#allocation15 + $0xc0] sm:$0xff]
        %v3557 = vld [vmem:[#allocation15 + $0xc8] sm:$0xff]
        %v3558 = vld [vmem:[#allocation15 + $0xd0] sm:$0xff]
        %v3559 = vld [vmem:[#allocation15 + $0xd8] sm:$0xff]
        %v3560 = vld [vmem:[#allocation15 + $0xe0] sm:$0xff]
        %v3561 = vld [vmem:[#allocation15 + $0xe8] sm:$0xff]
        %v3562 = vld [vmem:[#allocation15 + $0xf0] sm:$0xff]
        %v3563 = vld [vmem:[#allocation15 + $0xf8] sm:$0xff]
        %v3564 = vld [vmem:[#allocation17] sm:$0x1]
        %v3566 = vperm.slane %v3564, 0
        %3568 = vmatpush.msra.mxu0 %v3547
        %3569 = vmatpush.msra.mxu0 %v3546
        %3570 = vmatpush.msra.mxu0 %v3545
        %3571 = vmatpush.msra.mxu0 %v3544
        %3572 = vmatpush.msra.mxu0 %v3543
        %3573 = vmatpush.msra.mxu0 %v3542
        %3574 = vmatpush.msra.mxu0 %v3541
        %3575 = vmatpush.msra.mxu0 %v3540
        %3576 = vmatpush.msra.mxu0 %v3539
        %3577 = vmatpush.msra.mxu0 %v3538
        %3578 = vmatpush.msra.mxu0 %v3537
        %3579 = vmatpush.msra.mxu0 %v3536
        %3580 = vmatpush.msra.mxu0 %v3535
        %3581 = vmatpush.msra.mxu0 %v3534
        %3582 = vmatpush.msra.mxu0 %v3533
        %3583 = vmatpush.msra.mxu0 %v3532
        %3584 = vmatmul.f32.gmra.mxu0 %v3516
        %v3585 = vpop.f32.mrf.mxu0
        %v3586 = vadd.f32 %v3566, %v3585
        %3587 = vmatmul.f32.gmra.mxu0 %v3517
        %v3588 = vpop.f32.mrf.mxu0
        %v3589 = vadd.f32 %v3566, %v3588
        %3590 = vmatmul.f32.gmra.mxu0 %v3518
        %v3591 = vpop.f32.mrf.mxu0
        %v3592 = vadd.f32 %v3566, %v3591
        %3593 = vmatmul.f32.gmra.mxu0 %v3519
        %v3594 = vpop.f32.mrf.mxu0
        %v3595 = vadd.f32 %v3566, %v3594
        %3596 = vmatmul.f32.gmra.mxu0 %v3520
        %v3597 = vpop.f32.mrf.mxu0
        %v3598 = vadd.f32 %v3566, %v3597
        %3599 = vmatmul.f32.gmra.mxu0 %v3521
        %v3600 = vpop.f32.mrf.mxu0
        %v3601 = vadd.f32 %v3566, %v3600
        %3602 = vmatmul.f32.gmra.mxu0 %v3522
        %v3603 = vpop.f32.mrf.mxu0
        %v3604 = vadd.f32 %v3566, %v3603
        %3605 = vmatmul.f32.gmra.mxu0 %v3523
        %v3606 = vpop.f32.mrf.mxu0
        %v3607 = vadd.f32 %v3566, %v3606
        %3608 = vdwg.mxu0
        %3609 = vmatpush.msra.mxu0 %v3563
        %3610 = vmatpush.msra.mxu0 %v3562
        %3611 = vmatpush.msra.mxu0 %v3561
        %3612 = vmatpush.msra.mxu0 %v3560
        %3613 = vmatpush.msra.mxu0 %v3559
        %3614 = vmatpush.msra.mxu0 %v3558
        %3615 = vmatpush.msra.mxu0 %v3557
        %3616 = vmatpush.msra.mxu0 %v3556
        %3617 = vmatpush.msra.mxu0 %v3555
        %3618 = vmatpush.msra.mxu0 %v3554
        %3619 = vmatpush.msra.mxu0 %v3553
        %3620 = vmatpush.msra.mxu0 %v3552
        %3621 = vmatpush.msra.mxu0 %v3551
        %3622 = vmatpush.msra.mxu0 %v3550
        %3623 = vmatpush.msra.mxu0 %v3549
        %3624 = vmatpush.msra.mxu0 %v3548
        %3625 = vmatmul.f32.gmra.mxu0 %v3524
        %v3626 = vpop.f32.mrf.mxu0
        %v3627 = vadd.f32 %v3586, %v3626
        %3628 = vmatmul.f32.gmra.mxu0 %v3525
        %v3629 = vpop.f32.mrf.mxu0
        %v3630 = vadd.f32 %v3589, %v3629
        %3631 = vmatmul.f32.gmra.mxu0 %v3526
        %v3632 = vpop.f32.mrf.mxu0
        %v3633 = vadd.f32 %v3592, %v3632
        %3634 = vmatmul.f32.gmra.mxu0 %v3527
        %v3635 = vpop.f32.mrf.mxu0
        %v3636 = vadd.f32 %v3595, %v3635
        %3637 = vmatmul.f32.gmra.mxu0 %v3528
        %v3638 = vpop.f32.mrf.mxu0
        %v3639 = vadd.f32 %v3598, %v3638
        %3640 = vmatmul.f32.gmra.mxu0 %v3529
        %v3641 = vpop.f32.mrf.mxu0
        %v3642 = vadd.f32 %v3601, %v3641
        %3643 = vmatmul.f32.gmra.mxu0 %v3530
        %v3644 = vpop.f32.mrf.mxu0
        %v3645 = vadd.f32 %v3604, %v3644
        %3646 = vmatmul.f32.gmra.mxu0 %v3531
        %v3647 = vpop.f32.mrf.mxu0
        %v3648 = vadd.f32 %v3607, %v3647
        %3649 = vdwg.mxu0
        %v3650 = vsub.f32 0.0, %v3627
        %v3651 = vsub.f32 0.0, %v3630
        %v3652 = vsub.f32 0.0, %v3633
        %v3653 = vsub.f32 0.0, %v3636
        %v3654 = vsub.f32 0.0, %v3639
        %v3655 = vsub.f32 0.0, %v3642
        %v3656 = vsub.f32 0.0, %v3645
        %v3657 = vsub.f32 0.0, %v3648
        %v3658 = vmin.f32 %v3650, 60.0
        %v3659 = vmin.f32 %v3651, 60.0
        %v3660 = vmin.f32 %v3652, 60.0
        %v3661 = vmin.f32 %v3653, 60.0
        %v3662 = vmin.f32 %v3654, 60.0
        %v3663 = vmin.f32 %v3655, 60.0
        %v3664 = vmin.f32 %v3656, 60.0
        %v3665 = vmin.f32 %v3657, 60.0
        %v3666 = vmul.f32 %v3658, 1.442695
        %v3667 = vpow.pop %v3666
        %v3668 = vmul.f32 %v3659, 1.442695
        %v3669 = vpow.pop %v3668
        %v3670 = vmul.f32 %v3660, 1.442695
        %v3671 = vpow.pop %v3670
        %v3672 = vmul.f32 %v3661, 1.442695
        %v3673 = vpow.pop %v3672
        %v3674 = vmul.f32 %v3662, 1.442695
        %v3675 = vpow.pop %v3674
        %v3676 = vmul.f32 %v3663, 1.442695
        %v3677 = vpow.pop %v3676
        %v3678 = vmul.f32 %v3664, 1.442695
        %v3679 = vpow.pop %v3678
        %v3680 = vmul.f32 %v3665, 1.442695
        %v3681 = vpow.pop %v3680
        %v3682 = vadd.f32 %v3667, 1.0
        %v3683 = vadd.f32 %v3669, 1.0
        %v3684 = vadd.f32 %v3671, 1.0
        %v3685 = vadd.f32 %v3673, 1.0
        %v3686 = vadd.f32 %v3675, 1.0
        %v3687 = vadd.f32 %v3677, 1.0
        %v3688 = vadd.f32 %v3679, 1.0
        %v3689 = vadd.f32 %v3681, 1.0
        %v3690 = vrcp.pop %v3682
        %v3691 = vrcp.pop %v3683
        %v3692 = vrcp.pop %v3684
        %v3693 = vrcp.pop %v3685
        %v3694 = vrcp.pop %v3686
        %v3695 = vrcp.pop %v3687
        %v3696 = vrcp.pop %v3688
        %v3697 = vrcp.pop %v3689
        %v3698 = vmul.f32 %v3682, %v3690
        %v3699 = vmul.f32 %v3683, %v3691
        %v3700 = vmul.f32 %v3684, %v3692
        %v3701 = vmul.f32 %v3685, %v3693
        %v3702 = vmul.f32 %v3686, %v3694
        %v3703 = vmul.f32 %v3687, %v3695
        %v3704 = vmul.f32 %v3688, %v3696
        %v3705 = vmul.f32 %v3689, %v3697
        %v3706 = vsub.f32 2.0, %v3698
        %v3707 = vsub.f32 2.0, %v3699
        %v3708 = vsub.f32 2.0, %v3700
        %v3709 = vsub.f32 2.0, %v3701
        %v3710 = vsub.f32 2.0, %v3702
        %v3711 = vsub.f32 2.0, %v3703
        %v3712 = vsub.f32 2.0, %v3704
        %v3713 = vsub.f32 2.0, %v3705
        %v3714 = vmul.f32 %v3690, %v3706
        %v3715 = vmul.f32 %v3691, %v3707
        %v3716 = vmul.f32 %v3692, %v3708
        %v3717 = vmul.f32 %v3693, %v3709
        %v3718 = vmul.f32 %v3694, %v3710
        %v3719 = vmul.f32 %v3695, %v3711
        %v3720 = vmul.f32 %v3696, %v3712
        %v3721 = vmul.f32 %v3697, %v3713
        %v3722 = vmul.f32 %v3627, %v3714
        %v3723 = vmul.f32 %v3630, %v3715
        %v3724 = vmul.f32 %v3633, %v3716
        %v3725 = vmul.f32 %v3636, %v3717
        %v3726 = vmul.f32 %v3639, %v3718
        %v3727 = vmul.f32 %v3642, %v3719
        %v3728 = vmul.f32 %v3645, %v3720
        %v3729 = vmul.f32 %v3648, %v3721
        %3730 = vst [vmem:[%s408] sm:$0xff] %v3722
        %3731 = vst [vmem:[%s408 + $0x8] sm:$0xff] %v3723
        %3732 = vst [vmem:[%s408 + $0x10] sm:$0xff] %v3724
        %3733 = vst [vmem:[%s408 + $0x18] sm:$0xff] %v3725
        %3734 = vst [vmem:[%s408 + $0x20] sm:$0xff] %v3726
        %3735 = vst [vmem:[%s408 + $0x28] sm:$0xff] %v3727
        %3736 = vst [vmem:[%s408 + $0x30] sm:$0xff] %v3728
        %3737 = vst [vmem:[%s408 + $0x38] sm:$0xff] %v3729
        %s3738 = sand.u32 %s207, 1
        %s3739 = scalar_lea.sflag [#allocation8], %s3738
        %s3740 = sand.u32 %s207, 1
        %s3741 = smul.addr %s3740, 64
        %s3742 = scalar_lea.vmem [#allocation18], %s3741
        // Predicated region
        $region81: #{tpu_custom_call.1} parent=51 // pred_check
          %p3743 = pneg %p217
        $region82: #{tpu_custom_call.1} parent=51 // pred_check_branch
          %3745 = sbr.rel (%p3743) target = $region84
        $region83: #{tpu_custom_call.1} parent=51 // pred_region
          %3747 = vsyncadd %s3739, 0
          %s3748 = smul.addr %s26, 8
          %s3749 = smul.addr %s3748, 8
          %s3750 = scalar_lea.hbm %s8, %s3749
          %s3751 = sshll.u32 %s3742, 4
          %s3752 = int_to_ptr.vmem [resolvable:$true] %s3751
          %s3753 = sshll.u32 %s3750, 4
          %s3754 = int_to_ptr.hbm [resolvable:$true] %s3753
          %3759 = dma.vmem_to_hbm [thread:$0]  %s3752, 1024, %s3754, %s3739, 128, 128, 8
        $region84: #{tpu_custom_call.1} parent=51 // pred_fallthru
          _
      $region52: #{tpu_custom_call.1} parent=5 // pred_fallthru
        _
      %p3760 = scmp.le.s32.totalorder 2, %s21
      // Predicated region
      $region85: #{tpu_custom_call.1} parent=5 // pred_check
        %p3761 = pneg %p3760
      $region86: #{tpu_custom_call.1} parent=5 // pred_check_branch
        %3763 = sbr.rel (%p3761) target = $region88
      $region87: #{tpu_custom_call.1} parent=5 // pred_region
        %s3764 = ssub.s32 %s21, 2
        // Predicated region
        $region89: #{tpu_custom_call.1} parent=87 // pred_check
          %p3765 = pneg %p223
        $region90: #{tpu_custom_call.1} parent=87 // pred_check_branch
          %3767 = sbr.rel (%p3765) target = $region92
        $region91: #{tpu_custom_call.1} parent=87 // pred_region
          %s3768 = sand.u32 %s208, 1
          %s3769 = scalar_lea.sflag [#allocation8], %s3768
          %s3770 = sand.u32 %s208, 1
          %s3771 = smul.addr %s3770, 64
          %s3772 = scalar_lea.vmem [#allocation18], %s3771
          %3774 = dma.done %s3769, 1024
        $region92: #{tpu_custom_call.1} parent=87 // pred_fallthru
          _
      $region88: #{tpu_custom_call.1} parent=5 // pred_fallthru
        _
    $region6: #{tpu_custom_call.1} parent=1 // loop_footer
      %s25 = sadd.s32 1, %s21
    $region7: #{tpu_custom_call.1} parent=1 // loop_footer_branch
      %20 = sbr.rel target = $region3
    $region8: #{tpu_custom_call.1} parent=1 // loop_exit
      _
    %3775 = vsyncpa [#allocation7], 1
    %s3776 = scalar_lea.sflag [#allocation7], 1
    %3777 = vsyncpa %s3776, 1
    %3778 = vsyncpa [#allocation10], 1
    %3779 = vsyncpa [#allocation13], 1
    %3780 = vsyncpa [#allocation16], 1
    %3781 = vsyncpa [#allocation8], 1
    %s3782 = scalar_lea.sflag [#allocation8], 1
    %3783 = vsyncpa %s3782, 1

</llo_original>
